<compile_context>
chip_gen: v7x
topology: tpu7x:2x2x1
jax: 0.10.0
libtpu: 0.0.40
codegen_flags: <defaults>
</compile_context>

<pallas_src>
import functools

import jax
import jax.numpy as jnp
from jax.experimental import pallas as pl
from jax.experimental.pallas import tpu as pltpu


# ----------------------------------------------------------------------------
# Fused ASPP kernel (one batch element per grid step)
# ----------------------------------------------------------------------------

def _make_aspp_kernel(H, W, Cin, C, n_br, pool, fused_slots, real_meta):
    """fused_slots: cat-slot index per stacked 1x1 row-group (pool first if any)
       real_meta  : tuple of (slot, live (dh, dw) offsets) per real 3x3 branch."""
    HW = H * W
    K1 = n_br * C
    n_fused = len(fused_slots)
    w_pow2 = (W & (W - 1)) == 0
    log2w = W.bit_length() - 1
    f32 = jnp.float32

    def kernel(*refs):
        it = iter(refs)
        x_ref = next(it)
        fused = (next(it), next(it), next(it)) if n_fused else None
        reals = [(next(it), next(it), next(it)) for _ in real_meta]
        wb_ref, sb_ref, bb_ref = next(it), next(it), next(it)
        o_ref = next(it)
        cat_ref = next(it)                                   # VMEM scratch

        x_mm = x_ref[...]                                    # (Cin, HW), mm dtype

        # Row/col index vectors built once; tap masks cached per (dh, dw).
        pos = jax.lax.broadcasted_iota(jnp.int32, (1, HW), 1)
        if w_pow2:
            row, col = jnp.right_shift(pos, log2w), jnp.bitwise_and(pos, W - 1)
        else:
            row, col = pos // W, pos % W   # TODO(synk): slower non-pow2 W path
        mask_cache = {}

        def tap_mask(dh, dw):
            if (dh, dw) not in mask_cache:
                mask_cache[(dh, dw)] = ((row >= -dh) & (row < H - dh) &
                                        (col >= -dw) & (col < W - dw))
            return mask_cache[(dh, dw)]

        def shift(a, dh, dw):
            # a shifted by (dh, dw) in (H, W) space with zero fill, flat layout.
            if dh == 0 and dw == 0:
                return a
            rolled = pltpu.roll(a, shift=(-(dh * W + dw)) % HW, axis=1)
            return jnp.where(tap_mask(dh, dw), rolled, 0.0)

        # ---- fused 1x1-equivalent branches: ONE stacked matmul over x ------
        if n_fused:
            wf_ref, sf_ref, bf_ref = fused
            yf = jnp.dot(wf_ref[...], x_mm, preferred_element_type=f32)
            yf = yf * sf_ref[...] + bf_ref[...]              # stacked BN affine
            for g, slot in enumerate(fused_slots):
                rows = yf[g * C:(g + 1) * C, :]
                if pool and g == 0:
                    # pool branch: BN(conv(mean(x))) == lane-mean of BN(conv(x));
                    # ReLU after the mean; 1x1 -> HxW bilinear resize = broadcast.
                    pm = jnp.mean(rows, axis=1, keepdims=True)
                    rows = jnp.broadcast_to(jnp.maximum(pm, 0.0), (C, HW))
                else:
                    rows = jnp.maximum(rows, 0.0)
                cat_ref[slot * C:(slot + 1) * C, :] = rows.astype(cat_ref.dtype)

        # ---- real dilated 3x3 branches: im2col of live taps only -----------
        for (w_ref, s_ref, b_ref), (slot, offsets) in zip(reals, real_meta):
            taps = [shift(x_mm, dh, dw) for dh, dw in offsets]
            patches = jnp.concatenate(taps, axis=0) if len(taps) > 1 else taps[0]
            y = jnp.dot(w_ref[...], patches, preferred_element_type=f32)
            y = jnp.maximum(y * s_ref[...] + b_ref[...], 0.0)
            cat_ref[slot * C:(slot + 1) * C, :] = y.astype(cat_ref.dtype)

        # ---- bottleneck 3x3 conv: per-tap accumulation (no 9*K1 concat) ----
        cat = cat_ref[...]                                   # (n_br*C, HW)
        acc = jnp.zeros((C, HW), f32)
        for t in range(9):
            dh, dw = t // 3 - 1, t % 3 - 1
            acc = acc + jnp.dot(wb_ref[t], shift(cat, dh, dw),
                                preferred_element_type=f32)
        y = jnp.maximum(acc * sb_ref[...] + bb_ref[...], 0.0)
        o_ref[...] = y.astype(o_ref.dtype)

    return kernel


def aspp_wrapper_forward(x_nchw, params, *, dilations, pool,
                         matmul_dtype=jnp.float32):
    """NCHW in / NCHW out, like the PyTorch ASPPWrapper."""
    N, Cin, H, W = x_nchw.shape
    C = params["bottleneck"]["scale"].shape[0]
    HW = H * W
    n_br = len(dilations) + int(pool)
    K1 = n_br * C
    mm = matmul_dtype

    x2 = x_nchw.reshape(N, Cin, HW).astype(mm)   # free reshape, no transpose

    # -- compile-time branch analysis: prune dead taps, collect 1x1-equivalents
    fused_w, fused_s, fused_b, fused_slots = [], [], [], []
    real = []                                    # (slot, offsets, w, s, b)
    if pool:
        p = params["pool"]
        fused_w.append(p["w"].astype(mm))
        fused_s.append(p["scale"]); fused_b.append(p["bias"])
        fused_slots.append(0)
    for bi, (br, d) in enumerate(zip(params["branches"], dilations)):
        slot = bi + int(pool)
        if d == 1:                               # genuine 1x1 conv branch
            fused_w.append(br["w"].astype(mm))
            fused_s.append(br["scale"]); fused_b.append(br["bias"])
            fused_slots.append(slot)
            continue
        live = []
        for kh in range(3):
            for kw in range(3):
                dh, dw = (kh - 1) * d, (kw - 1) * d
                if abs(dh) < H and abs(dw) < W:  # tap can hit the image
                    live.append((kh * 3 + kw, dh, dw))
        w = br["w"]                              # (C, 9*Cin), cols (kh, kw, cin)
        if len(live) == 1:                       # only centre tap -> 1x1 conv
            t = live[0][0]
            fused_w.append(w[:, t * Cin:(t + 1) * Cin].astype(mm))
            fused_s.append(br["scale"]); fused_b.append(br["bias"])
            fused_slots.append(slot)
        else:
            if len(live) < 9:                    # prune dead weight columns too
                w = jnp.concatenate([w[:, t * Cin:(t + 1) * Cin]
                                     for t, _, _ in live], axis=1)
            real.append((slot, tuple((dh, dw) for _, dh, dw in live),
                         w.astype(mm), br["scale"], br["bias"]))

    # -- build pallas inputs / specs
    inputs = [x2]
    in_specs = [pl.BlockSpec((None, Cin, HW), lambda n: (n, 0, 0))]

    def add(a):
        inputs.append(a)
        in_specs.append(pl.BlockSpec(a.shape, lambda n, nd=a.ndim: (0,) * nd))

    if fused_slots:
        add(jnp.concatenate(fused_w, axis=0))    # (n_fused*C, Cin)
        add(jnp.concatenate(fused_s, axis=0))
        add(jnp.concatenate(fused_b, axis=0))
    real_meta = []
    for slot, offs, w, s, b in real:
        add(w); add(s); add(b)
        real_meta.append((slot, offs))
    bt = params["bottleneck"]
    wb3 = bt["w"].reshape(C, 9, K1).transpose(1, 0, 2).astype(mm)  # (9, C, K1)
    add(wb3); add(bt["scale"]); add(bt["bias"])

    # -- advisory cost estimate for the XLA scheduler
    flops = 2 * len(fused_slots) * C * Cin * HW
    for _, offs in real_meta:
        flops += 2 * C * len(offs) * Cin * HW
    flops += 2 * C * 9 * K1 * HW
    flops *= N
    bytes_accessed = sum(int(a.size) * a.dtype.itemsize for a in inputs)
    bytes_accessed += N * C * HW * jnp.dtype(x_nchw.dtype).itemsize

    kernel = _make_aspp_kernel(H, W, Cin, C, n_br, bool(pool),
                               tuple(fused_slots), tuple(real_meta))
    out = pl.pallas_call(
        kernel,
        out_shape=jax.ShapeDtypeStruct((N, C, HW), x_nchw.dtype),
        grid=(N,),
        in_specs=in_specs,
        out_specs=pl.BlockSpec((None, C, HW), lambda n: (n, 0, 0)),
        scratch_shapes=[pltpu.VMEM((K1, HW), mm)],     # branch-concat buffer
        compiler_params=pltpu.CompilerParams(
            dimension_semantics=("parallel",)),
        cost_estimate=pl.CostEstimate(flops=int(flops), transcendentals=0,
                                      bytes_accessed=int(bytes_accessed)),
    )(*inputs)
    return out.reshape(N, C, H, W)


# ----------------------------------------------------------------------------
# Parameter init (ConvModule with norm -> conv bias=False; BN folded for eval)
# ----------------------------------------------------------------------------

def _bn_fold(key, c, eps=1e-5):
    k1, k2, k3, k4 = jax.random.split(key, 4)
    gamma = 1.0 + 0.1 * jax.random.normal(k1, (c,), jnp.float32)
    beta = 0.1 * jax.random.normal(k2, (c,), jnp.float32)
    mean = 0.1 * jax.random.normal(k3, (c,), jnp.float32)
    var = 1.0 + 0.1 * jnp.abs(jax.random.normal(k4, (c,), jnp.float32))
    scale = gamma / jnp.sqrt(var + eps)
    bias = beta - mean * scale
    return scale.reshape(c, 1), bias.reshape(c, 1)


def _conv_w(key, cin, cout, k):
    # PyTorch layout (Cout, Cin, kh, kw); kernel layout:
    #   k == 1 -> (Cout, Cin);  k == 3 -> (Cout, 9*Cin) with columns ordered
    #   (kh, kw, cin), matching the in-kernel im2col tap ordering.
    w_pt = 0.1 * jax.random.normal(key, (cout, cin, k, k), jnp.float32)
    if k == 1:
        w_k = w_pt.reshape(cout, cin)
    else:
        w_k = jnp.transpose(w_pt, (0, 2, 3, 1)).reshape(cout, k * k * cin)
    return w_pt, w_k


def init_aspp_params(key, in_channels, channels, dilations, pool=True):
    keys = jax.random.split(key, 2 * (len(dilations) + int(pool) + 1))
    ki = 0
    params = {}
    if pool:
        w_pt, w_k = _conv_w(keys[ki], in_channels, channels, 1)
        s, b = _bn_fold(keys[ki + 1], channels)
        params["pool"] = dict(w=w_k, w_pt=w_pt, scale=s, bias=b)
        ki += 2
    branches = []
    for d in dilations:
        k = 1 if d == 1 else 3
        w_pt, w_k = _conv_w(keys[ki], in_channels, channels, k)
        s, b = _bn_fold(keys[ki + 1], channels)
        branches.append(dict(w=w_k, w_pt=w_pt, scale=s, bias=b))
        ki += 2
    params["branches"] = branches
    cin_b = (len(dilations) + int(pool)) * channels
    w_pt, w_k = _conv_w(keys[ki], cin_b, channels, 3)
    s, b = _bn_fold(keys[ki + 1], channels)
    params["bottleneck"] = dict(w=w_k, w_pt=w_pt, scale=s, bias=b)
    return params


# ----------------------------------------------------------------------------
# Pure-JAX reference (uses the PyTorch-layout weights) for a correctness check
# ----------------------------------------------------------------------------

def aspp_reference(x, params, dilations, pool):
    N, Cin, H, W = x.shape

    def conv_bn_relu(inp, w_pt, scale, bias, d):
        k = w_pt.shape[-1]
        pad = 0 if k == 1 else d
        y = jax.lax.conv_general_dilated(
            inp, w_pt, window_strides=(1, 1),
            padding=[(pad, pad), (pad, pad)], rhs_dilation=(d, d),
            dimension_numbers=("NCHW", "OIHW", "NCHW"),
            precision=jax.lax.Precision.HIGHEST)
        y = y * scale.reshape(1, -1, 1, 1) + bias.reshape(1, -1, 1, 1)
        return jnp.maximum(y, 0.0)

    outs = []
    if pool:
        p = params["pool"]
        pooled = jnp.mean(x, axis=(2, 3), keepdims=True)
        y = conv_bn_relu(pooled, p["w_pt"], p["scale"], p["bias"], 1)
        outs.append(jnp.broadcast_to(y, (N, y.shape[1], H, W)))
    for br, d in zip(params["branches"], dilations):
        outs.append(conv_bn_relu(x, br["w_pt"], br["scale"], br["bias"], d))
    cat = jnp.concatenate(outs, axis=1)
    bt = params["bottleneck"]
    return conv_bn_relu(cat, bt["w_pt"], bt["scale"], bt["bias"], 1)


# ----------------------------------------------------------------------------

if __name__ == "__main__":
    N, Cin, H, W = 2, 8, 16, 16
    channels = 8
    dilations = (1, 6, 12, 18)     # static config
    pool = True

    key = jax.random.PRNGKey(0)
    kx, kp = jax.random.split(key)
    x = jax.random.normal(kx, (N, Cin, H, W), jnp.float32)
    params = init_aspp_params(kp, Cin, channels, dilations, pool)

    ref = jax.block_until_ready(aspp_reference(x, params, dilations, pool))

    # f32 path: tolerance tightened 50x from 5e-2 per review (headroom kept for
    # MXU f32 pass decomposition / accumulation-order differences).
    fwd = jax.jit(functools.partial(aspp_wrapper_forward,
                                    dilations=dilations, pool=pool))
    out = jax.block_until_ready(fwd(x, params))
    assert out.shape == (N, channels, H, W), out.shape
    assert bool(jnp.all(jnp.isfinite(out)))
    max_err = float(jnp.max(jnp.abs(out - ref)))
    assert max_err < 1e-3, f"f32 kernel/reference mismatch: {max_err}"

    # bf16-MXU-input path (f32 accumulation + f32 epilogue): loose sanity only.
    fwd_bf16 = jax.jit(functools.partial(aspp_wrapper_forward,
                                         dilations=dilations, pool=pool,
                                         matmul_dtype=jnp.bfloat16))
    out_bf16 = jax.block_until_ready(fwd_bf16(x, params))
    max_err_bf16 = float(jnp.max(jnp.abs(out_bf16 - ref)))
    assert max_err_bf16 < 1e-1, f"bf16 kernel/reference mismatch: {max_err_bf16}"

    print("KERNEL_OK")
</pallas_src>

<mosaic_0001>
module attributes {stable_mosaic.version = 11 : i64} {
  func.func @kernel(%arg0: i32, %arg1: memref<1x8x256xf32, #tpu.memory_space<vmem>>, %arg2: memref<24x8xf32, #tpu.memory_space<vmem>>, %arg3: memref<24x1xf32, #tpu.memory_space<vmem>>, %arg4: memref<24x1xf32, #tpu.memory_space<vmem>>, %arg5: memref<8x72xf32, #tpu.memory_space<vmem>>, %arg6: memref<8x1xf32, #tpu.memory_space<vmem>>, %arg7: memref<8x1xf32, #tpu.memory_space<vmem>>, %arg8: memref<8x72xf32, #tpu.memory_space<vmem>>, %arg9: memref<8x1xf32, #tpu.memory_space<vmem>>, %arg10: memref<8x1xf32, #tpu.memory_space<vmem>>, %arg11: memref<9x8x40xf32, #tpu.memory_space<vmem>>, %arg12: memref<8x1xf32, #tpu.memory_space<vmem>>, %arg13: memref<8x1xf32, #tpu.memory_space<vmem>>, %arg14: memref<1x8x256xf32, #tpu.memory_space<vmem>>, %arg15: memref<40x256xf32, #tpu.memory_space<vmem>>) attributes {dimension_semantics = [#tpu.dimension_semantics<parallel>], iteration_bounds = array<i64: 2>, scalar_prefetch = 0 : i64, scratch_operands = 1 : i64, tpu.core_type = #tpu.core_type<tc>, window_params = [{transform_indices = @transform_0, window_bounds = array<i64: 1, 8, 256>}, {pipeline_mode = #tpu.pipeline_mode<synchronous>, transform_indices = @transform_1, window_bounds = array<i64: 24, 8>}, {pipeline_mode = #tpu.pipeline_mode<synchronous>, transform_indices = @transform_2, window_bounds = array<i64: 24, 1>}, {pipeline_mode = #tpu.pipeline_mode<synchronous>, transform_indices = @transform_3, window_bounds = array<i64: 24, 1>}, {pipeline_mode = #tpu.pipeline_mode<synchronous>, transform_indices = @transform_4, window_bounds = array<i64: 8, 72>}, {pipeline_mode = #tpu.pipeline_mode<synchronous>, transform_indices = @transform_5, window_bounds = array<i64: 8, 1>}, {pipeline_mode = #tpu.pipeline_mode<synchronous>, transform_indices = @transform_6, window_bounds = array<i64: 8, 1>}, {pipeline_mode = #tpu.pipeline_mode<synchronous>, transform_indices = @transform_7, window_bounds = array<i64: 8, 72>}, {pipeline_mode = #tpu.pipeline_mode<synchronous>, transform_indices = @transform_8, window_bounds = array<i64: 8, 1>}, {pipeline_mode = #tpu.pipeline_mode<synchronous>, transform_indices = @transform_9, window_bounds = array<i64: 8, 1>}, {pipeline_mode = #tpu.pipeline_mode<synchronous>, transform_indices = @transform_10, window_bounds = array<i64: 9, 8, 40>}, {pipeline_mode = #tpu.pipeline_mode<synchronous>, transform_indices = @transform_11, window_bounds = array<i64: 8, 1>}, {pipeline_mode = #tpu.pipeline_mode<synchronous>, transform_indices = @transform_12, window_bounds = array<i64: 8, 1>}, {transform_indices = @transform_13, window_bounds = array<i64: 1, 8, 256>}]} {
    %c0 = arith.constant 0 : index
    %c0_0 = arith.constant 0 : index
    %c0_1 = arith.constant 0 : index
    %0 = vector.load %arg1[%c0, %c0_0, %c0_1] : memref<1x8x256xf32, #tpu.memory_space<vmem>>, vector<1x8x256xf32>
    %1 = vector.shape_cast %0 : vector<1x8x256xf32> to vector<8x256xf32>
    %2 = tpu.iota {dimensions = array<i32: 1>} : vector<1x256xi32>
    %c4_i32 = arith.constant 4 : i32
    %3 = vector.broadcast %c4_i32 : i32 to vector<1x256xi32>
    %4 = arith.shrsi %2, %3 : vector<1x256xi32>
    %c15_i32 = arith.constant 15 : i32
    %5 = vector.broadcast %c15_i32 : i32 to vector<1x256xi32>
    %6 = arith.andi %2, %5 : vector<1x256xi32>
    %c0_2 = arith.constant 0 : index
    %c0_3 = arith.constant 0 : index
    %7 = vector.load %arg2[%c0_2, %c0_3] : memref<24x8xf32, #tpu.memory_space<vmem>>, vector<24x8xf32>
    %cst = arith.constant dense<0.000000e+00> : vector<24x256xf32>
    %8 = tpu.matmul %7, %1, %cst {dimension_numbers = #tpu.dot_dimension_numbers<[1], [0], [0], [1], [0, 0, 1, 1], [], []>} : vector<24x8xf32>, vector<8x256xf32>, vector<24x256xf32> -> vector<24x256xf32>
    %c0_4 = arith.constant 0 : index
    %c0_5 = arith.constant 0 : index
    %9 = vector.load %arg3[%c0_4, %c0_5] : memref<24x1xf32, #tpu.memory_space<vmem>>, vector<24x1xf32>
    %10 = vector.broadcast %9 : vector<24x1xf32> to vector<24x256xf32>
    %11 = arith.mulf %8, %10 : vector<24x256xf32>
    %c0_6 = arith.constant 0 : index
    %c0_7 = arith.constant 0 : index
    %12 = vector.load %arg4[%c0_6, %c0_7] : memref<24x1xf32, #tpu.memory_space<vmem>>, vector<24x1xf32>
    %13 = vector.broadcast %12 : vector<24x1xf32> to vector<24x256xf32>
    %14 = arith.addf %11, %13 : vector<24x256xf32>
    %15 = vector.extract_strided_slice %14 {offsets = [0, 0], sizes = [8, 256], strides = [1, 1]} : vector<24x256xf32> to vector<8x256xf32>
    %cst_8 = arith.constant dense<0.000000e+00> : vector<8xf32>
    %16 = vector.multi_reduction <add>, %15, %cst_8 [1] : vector<8x256xf32> to vector<8xf32>
    %17 = vector.shape_cast %16 : vector<8xf32> to vector<8x1xf32>
    %cst_9 = arith.constant 2.560000e+02 : f32
    %18 = vector.broadcast %cst_9 : f32 to vector<8x1xf32>
    %19 = arith.divf %17, %18 : vector<8x1xf32>
    %cst_10 = arith.constant 0.000000e+00 : f32
    %20 = vector.broadcast %cst_10 : f32 to vector<8x1xf32>
    %21 = arith.maximumf %19, %20 : vector<8x1xf32>
    %22 = vector.shape_cast %21 : vector<8x1xf32> to vector<8x1xf32>
    %23 = vector.broadcast %22 : vector<8x1xf32> to vector<8x256xf32>
    %c0_11 = arith.constant 0 : index
    %c0_12 = arith.constant 0 : index
    %24 = vector.load %arg15[%c0_11, %c0_12] : memref<40x256xf32, #tpu.memory_space<vmem>>, vector<8x256xf32>
    tpu.vector_store %arg15[%c0_11, %c0_12], %23 {strides = array<i32>} : memref<40x256xf32, #tpu.memory_space<vmem>>, vector<8x256xf32>,
    %25 = vector.extract_strided_slice %14 {offsets = [8, 0], sizes = [8, 256], strides = [1, 1]} : vector<24x256xf32> to vector<8x256xf32>
    %cst_13 = arith.constant 0.000000e+00 : f32
    %26 = vector.broadcast %cst_13 : f32 to vector<8x256xf32>
    %27 = arith.maximumf %25, %26 : vector<8x256xf32>
    %c8 = arith.constant 8 : index
    %c0_14 = arith.constant 0 : index
    %28 = vector.load %arg15[%c8, %c0_14] : memref<40x256xf32, #tpu.memory_space<vmem>>, vector<8x256xf32>
    tpu.vector_store %arg15[%c8, %c0_14], %27 {strides = array<i32>} : memref<40x256xf32, #tpu.memory_space<vmem>>, vector<8x256xf32>,
    %29 = vector.extract_strided_slice %14 {offsets = [16, 0], sizes = [8, 256], strides = [1, 1]} : vector<24x256xf32> to vector<8x256xf32>
    %cst_15 = arith.constant 0.000000e+00 : f32
    %30 = vector.broadcast %cst_15 : f32 to vector<8x256xf32>
    %31 = arith.maximumf %29, %30 : vector<8x256xf32>
    %c32 = arith.constant 32 : index
    %c0_16 = arith.constant 0 : index
    %32 = vector.load %arg15[%c32, %c0_16] : memref<40x256xf32, #tpu.memory_space<vmem>>, vector<8x256xf32>
    tpu.vector_store %arg15[%c32, %c0_16], %31 {strides = array<i32>} : memref<40x256xf32, #tpu.memory_space<vmem>>, vector<8x256xf32>,
    %c102_i32 = arith.constant 102 : i32
    %33 = tpu.dynamic_rotate %1 by %c102_i32 dim 1 : vector<8x256xf32>, i32 -> vector<8x256xf32>
    %c6_i32 = arith.constant 6 : i32
    %34 = vector.broadcast %c6_i32 : i32 to vector<1x256xi32>
    %35 = arith.cmpi sge, %4, %34 : vector<1x256xi32>
    %c22_i32 = arith.constant 22 : i32
    %36 = vector.broadcast %c22_i32 : i32 to vector<1x256xi32>
    %37 = arith.cmpi slt, %4, %36 : vector<1x256xi32>
    %38 = arith.andi %35, %37 : vector<1x256xi1>
    %c6_i32_17 = arith.constant 6 : i32
    %39 = vector.broadcast %c6_i32_17 : i32 to vector<1x256xi32>
    %40 = arith.cmpi sge, %6, %39 : vector<1x256xi32>
    %41 = arith.andi %38, %40 : vector<1x256xi1>
    %c22_i32_18 = arith.constant 22 : i32
    %42 = vector.broadcast %c22_i32_18 : i32 to vector<1x256xi32>
    %43 = arith.cmpi slt, %6, %42 : vector<1x256xi32>
    %44 = arith.andi %41, %43 : vector<1x256xi1>
    %cst_19 = arith.constant 0.000000e+00 : f32
    %45 = vector.shape_cast %44 : vector<1x256xi1> to vector<1x256xi1>
    %46 = vector.broadcast %45 : vector<1x256xi1> to vector<8x256xi1>
    %47 = vector.broadcast %cst_19 : f32 to vector<8x256xf32>
    %48 = arith.select %46, %33, %47 : vector<8x256xi1>, vector<8x256xf32>
    %c96_i32 = arith.constant 96 : i32
    %49 = tpu.dynamic_rotate %1 by %c96_i32 dim 1 : vector<8x256xf32>, i32 -> vector<8x256xf32>
    %c6_i32_20 = arith.constant 6 : i32
    %50 = vector.broadcast %c6_i32_20 : i32 to vector<1x256xi32>
    %51 = arith.cmpi sge, %4, %50 : vector<1x256xi32>
    %c22_i32_21 = arith.constant 22 : i32
    %52 = vector.broadcast %c22_i32_21 : i32 to vector<1x256xi32>
    %53 = arith.cmpi slt, %4, %52 : vector<1x256xi32>
    %54 = arith.andi %51, %53 : vector<1x256xi1>
    %c0_i32 = arith.constant 0 : i32
    %55 = vector.broadcast %c0_i32 : i32 to vector<1x256xi32>
    %56 = arith.cmpi sge, %6, %55 : vector<1x256xi32>
    %57 = arith.andi %54, %56 : vector<1x256xi1>
    %c16_i32 = arith.constant 16 : i32
    %58 = vector.broadcast %c16_i32 : i32 to vector<1x256xi32>
    %59 = arith.cmpi slt, %6, %58 : vector<1x256xi32>
    %60 = arith.andi %57, %59 : vector<1x256xi1>
    %cst_22 = arith.constant 0.000000e+00 : f32
    %61 = vector.shape_cast %60 : vector<1x256xi1> to vector<1x256xi1>
    %62 = vector.broadcast %61 : vector<1x256xi1> to vector<8x256xi1>
    %63 = vector.broadcast %cst_22 : f32 to vector<8x256xf32>
    %64 = arith.select %62, %49, %63 : vector<8x256xi1>, vector<8x256xf32>
    %c90_i32 = arith.constant 90 : i32
    %65 = tpu.dynamic_rotate %1 by %c90_i32 dim 1 : vector<8x256xf32>, i32 -> vector<8x256xf32>
    %c6_i32_23 = arith.constant 6 : i32
    %66 = vector.broadcast %c6_i32_23 : i32 to vector<1x256xi32>
    %67 = arith.cmpi sge, %4, %66 : vector<1x256xi32>
    %c22_i32_24 = arith.constant 22 : i32
    %68 = vector.broadcast %c22_i32_24 : i32 to vector<1x256xi32>
    %69 = arith.cmpi slt, %4, %68 : vector<1x256xi32>
    %70 = arith.andi %67, %69 : vector<1x256xi1>
    %c-6_i32 = arith.constant -6 : i32
    %71 = vector.broadcast %c-6_i32 : i32 to vector<1x256xi32>
    %72 = arith.cmpi sge, %6, %71 : vector<1x256xi32>
    %73 = arith.andi %70, %72 : vector<1x256xi1>
    %c10_i32 = arith.constant 10 : i32
    %74 = vector.broadcast %c10_i32 : i32 to vector<1x256xi32>
    %75 = arith.cmpi slt, %6, %74 : vector<1x256xi32>
    %76 = arith.andi %73, %75 : vector<1x256xi1>
    %cst_25 = arith.constant 0.000000e+00 : f32
    %77 = vector.shape_cast %76 : vector<1x256xi1> to vector<1x256xi1>
    %78 = vector.broadcast %77 : vector<1x256xi1> to vector<8x256xi1>
    %79 = vector.broadcast %cst_25 : f32 to vector<8x256xf32>
    %80 = arith.select %78, %65, %79 : vector<8x256xi1>, vector<8x256xf32>
    %c6_i32_26 = arith.constant 6 : i32
    %81 = tpu.dynamic_rotate %1 by %c6_i32_26 dim 1 : vector<8x256xf32>, i32 -> vector<8x256xf32>
    %c0_i32_27 = arith.constant 0 : i32
    %82 = vector.broadcast %c0_i32_27 : i32 to vector<1x256xi32>
    %83 = arith.cmpi sge, %4, %82 : vector<1x256xi32>
    %c16_i32_28 = arith.constant 16 : i32
    %84 = vector.broadcast %c16_i32_28 : i32 to vector<1x256xi32>
    %85 = arith.cmpi slt, %4, %84 : vector<1x256xi32>
    %86 = arith.andi %83, %85 : vector<1x256xi1>
    %c6_i32_29 = arith.constant 6 : i32
    %87 = vector.broadcast %c6_i32_29 : i32 to vector<1x256xi32>
    %88 = arith.cmpi sge, %6, %87 : vector<1x256xi32>
    %89 = arith.andi %86, %88 : vector<1x256xi1>
    %c22_i32_30 = arith.constant 22 : i32
    %90 = vector.broadcast %c22_i32_30 : i32 to vector<1x256xi32>
    %91 = arith.cmpi slt, %6, %90 : vector<1x256xi32>
    %92 = arith.andi %89, %91 : vector<1x256xi1>
    %cst_31 = arith.constant 0.000000e+00 : f32
    %93 = vector.shape_cast %92 : vector<1x256xi1> to vector<1x256xi1>
    %94 = vector.broadcast %93 : vector<1x256xi1> to vector<8x256xi1>
    %95 = vector.broadcast %cst_31 : f32 to vector<8x256xf32>
    %96 = arith.select %94, %81, %95 : vector<8x256xi1>, vector<8x256xf32>
    %c250_i32 = arith.constant 250 : i32
    %97 = tpu.dynamic_rotate %1 by %c250_i32 dim 1 : vector<8x256xf32>, i32 -> vector<8x256xf32>
    %c0_i32_32 = arith.constant 0 : i32
    %98 = vector.broadcast %c0_i32_32 : i32 to vector<1x256xi32>
    %99 = arith.cmpi sge, %4, %98 : vector<1x256xi32>
    %c16_i32_33 = arith.constant 16 : i32
    %100 = vector.broadcast %c16_i32_33 : i32 to vector<1x256xi32>
    %101 = arith.cmpi slt, %4, %100 : vector<1x256xi32>
    %102 = arith.andi %99, %101 : vector<1x256xi1>
    %c-6_i32_34 = arith.constant -6 : i32
    %103 = vector.broadcast %c-6_i32_34 : i32 to vector<1x256xi32>
    %104 = arith.cmpi sge, %6, %103 : vector<1x256xi32>
    %105 = arith.andi %102, %104 : vector<1x256xi1>
    %c10_i32_35 = arith.constant 10 : i32
    %106 = vector.broadcast %c10_i32_35 : i32 to vector<1x256xi32>
    %107 = arith.cmpi slt, %6, %106 : vector<1x256xi32>
    %108 = arith.andi %105, %107 : vector<1x256xi1>
    %cst_36 = arith.constant 0.000000e+00 : f32
    %109 = vector.shape_cast %108 : vector<1x256xi1> to vector<1x256xi1>
    %110 = vector.broadcast %109 : vector<1x256xi1> to vector<8x256xi1>
    %111 = vector.broadcast %cst_36 : f32 to vector<8x256xf32>
    %112 = arith.select %110, %97, %111 : vector<8x256xi1>, vector<8x256xf32>
    %c166_i32 = arith.constant 166 : i32
    %113 = tpu.dynamic_rotate %1 by %c166_i32 dim 1 : vector<8x256xf32>, i32 -> vector<8x256xf32>
    %c-6_i32_37 = arith.constant -6 : i32
    %114 = vector.broadcast %c-6_i32_37 : i32 to vector<1x256xi32>
    %115 = arith.cmpi sge, %4, %114 : vector<1x256xi32>
    %c10_i32_38 = arith.constant 10 : i32
    %116 = vector.broadcast %c10_i32_38 : i32 to vector<1x256xi32>
    %117 = arith.cmpi slt, %4, %116 : vector<1x256xi32>
    %118 = arith.andi %115, %117 : vector<1x256xi1>
    %c6_i32_39 = arith.constant 6 : i32
    %119 = vector.broadcast %c6_i32_39 : i32 to vector<1x256xi32>
    %120 = arith.cmpi sge, %6, %119 : vector<1x256xi32>
    %121 = arith.andi %118, %120 : vector<1x256xi1>
    %c22_i32_40 = arith.constant 22 : i32
    %122 = vector.broadcast %c22_i32_40 : i32 to vector<1x256xi32>
    %123 = arith.cmpi slt, %6, %122 : vector<1x256xi32>
    %124 = arith.andi %121, %123 : vector<1x256xi1>
    %cst_41 = arith.constant 0.000000e+00 : f32
    %125 = vector.shape_cast %124 : vector<1x256xi1> to vector<1x256xi1>
    %126 = vector.broadcast %125 : vector<1x256xi1> to vector<8x256xi1>
    %127 = vector.broadcast %cst_41 : f32 to vector<8x256xf32>
    %128 = arith.select %126, %113, %127 : vector<8x256xi1>, vector<8x256xf32>
    %c160_i32 = arith.constant 160 : i32
    %129 = tpu.dynamic_rotate %1 by %c160_i32 dim 1 : vector<8x256xf32>, i32 -> vector<8x256xf32>
    %c-6_i32_42 = arith.constant -6 : i32
    %130 = vector.broadcast %c-6_i32_42 : i32 to vector<1x256xi32>
    %131 = arith.cmpi sge, %4, %130 : vector<1x256xi32>
    %c10_i32_43 = arith.constant 10 : i32
    %132 = vector.broadcast %c10_i32_43 : i32 to vector<1x256xi32>
    %133 = arith.cmpi slt, %4, %132 : vector<1x256xi32>
    %134 = arith.andi %131, %133 : vector<1x256xi1>
    %c0_i32_44 = arith.constant 0 : i32
    %135 = vector.broadcast %c0_i32_44 : i32 to vector<1x256xi32>
    %136 = arith.cmpi sge, %6, %135 : vector<1x256xi32>
    %137 = arith.andi %134, %136 : vector<1x256xi1>
    %c16_i32_45 = arith.constant 16 : i32
    %138 = vector.broadcast %c16_i32_45 : i32 to vector<1x256xi32>
    %139 = arith.cmpi slt, %6, %138 : vector<1x256xi32>
    %140 = arith.andi %137, %139 : vector<1x256xi1>
    %cst_46 = arith.constant 0.000000e+00 : f32
    %141 = vector.shape_cast %140 : vector<1x256xi1> to vector<1x256xi1>
    %142 = vector.broadcast %141 : vector<1x256xi1> to vector<8x256xi1>
    %143 = vector.broadcast %cst_46 : f32 to vector<8x256xf32>
    %144 = arith.select %142, %129, %143 : vector<8x256xi1>, vector<8x256xf32>
    %c154_i32 = arith.constant 154 : i32
    %145 = tpu.dynamic_rotate %1 by %c154_i32 dim 1 : vector<8x256xf32>, i32 -> vector<8x256xf32>
    %c-6_i32_47 = arith.constant -6 : i32
    %146 = vector.broadcast %c-6_i32_47 : i32 to vector<1x256xi32>
    %147 = arith.cmpi sge, %4, %146 : vector<1x256xi32>
    %c10_i32_48 = arith.constant 10 : i32
    %148 = vector.broadcast %c10_i32_48 : i32 to vector<1x256xi32>
    %149 = arith.cmpi slt, %4, %148 : vector<1x256xi32>
    %150 = arith.andi %147, %149 : vector<1x256xi1>
    %c-6_i32_49 = arith.constant -6 : i32
    %151 = vector.broadcast %c-6_i32_49 : i32 to vector<1x256xi32>
    %152 = arith.cmpi sge, %6, %151 : vector<1x256xi32>
    %153 = arith.andi %150, %152 : vector<1x256xi1>
    %c10_i32_50 = arith.constant 10 : i32
    %154 = vector.broadcast %c10_i32_50 : i32 to vector<1x256xi32>
    %155 = arith.cmpi slt, %6, %154 : vector<1x256xi32>
    %156 = arith.andi %153, %155 : vector<1x256xi1>
    %cst_51 = arith.constant 0.000000e+00 : f32
    %157 = vector.shape_cast %156 : vector<1x256xi1> to vector<1x256xi1>
    %158 = vector.broadcast %157 : vector<1x256xi1> to vector<8x256xi1>
    %159 = vector.broadcast %cst_51 : f32 to vector<8x256xf32>
    %160 = arith.select %158, %145, %159 : vector<8x256xi1>, vector<8x256xf32>
    %161 = tpu.concatenate %48, %64, %80, %96, %1, %112, %128, %144, %160 in 0 : vector<8x256xf32>, vector<8x256xf32>, vector<8x256xf32>, vector<8x256xf32>, vector<8x256xf32>, vector<8x256xf32>, vector<8x256xf32>, vector<8x256xf32>, vector<8x256xf32> -> vector<72x256xf32>
    %c0_52 = arith.constant 0 : index
    %c0_53 = arith.constant 0 : index
    %162 = vector.load %arg5[%c0_52, %c0_53] : memref<8x72xf32, #tpu.memory_space<vmem>>, vector<8x72xf32>
    %cst_54 = arith.constant dense<0.000000e+00> : vector<8x256xf32>
    %163 = tpu.matmul %162, %161, %cst_54 {dimension_numbers = #tpu.dot_dimension_numbers<[1], [0], [0], [1], [0, 0, 1, 1], [], []>} : vector<8x72xf32>, vector<72x256xf32>, vector<8x256xf32> -> vector<8x256xf32>
    %c0_55 = arith.constant 0 : index
    %c0_56 = arith.constant 0 : index
    %164 = vector.load %arg6[%c0_55, %c0_56] : memref<8x1xf32, #tpu.memory_space<vmem>>, vector<8x1xf32>
    %165 = vector.broadcast %164 : vector<8x1xf32> to vector<8x256xf32>
    %166 = arith.mulf %163, %165 : vector<8x256xf32>
    %c0_57 = arith.constant 0 : index
    %c0_58 = arith.constant 0 : index
    %167 = vector.load %arg7[%c0_57, %c0_58] : memref<8x1xf32, #tpu.memory_space<vmem>>, vector<8x1xf32>
    %168 = vector.broadcast %167 : vector<8x1xf32> to vector<8x256xf32>
    %169 = arith.addf %166, %168 : vector<8x256xf32>
    %cst_59 = arith.constant 0.000000e+00 : f32
    %170 = vector.broadcast %cst_59 : f32 to vector<8x256xf32>
    %171 = arith.maximumf %169, %170 : vector<8x256xf32>
    %c16 = arith.constant 16 : index
    %c0_60 = arith.constant 0 : index
    %172 = vector.load %arg15[%c16, %c0_60] : memref<40x256xf32, #tpu.memory_space<vmem>>, vector<8x256xf32>
    tpu.vector_store %arg15[%c16, %c0_60], %171 {strides = array<i32>} : memref<40x256xf32, #tpu.memory_space<vmem>>, vector<8x256xf32>,
    %c204_i32 = arith.constant 204 : i32
    %173 = tpu.dynamic_rotate %1 by %c204_i32 dim 1 : vector<8x256xf32>, i32 -> vector<8x256xf32>
    %c12_i32 = arith.constant 12 : i32
    %174 = vector.broadcast %c12_i32 : i32 to vector<1x256xi32>
    %175 = arith.cmpi sge, %4, %174 : vector<1x256xi32>
    %c28_i32 = arith.constant 28 : i32
    %176 = vector.broadcast %c28_i32 : i32 to vector<1x256xi32>
    %177 = arith.cmpi slt, %4, %176 : vector<1x256xi32>
    %178 = arith.andi %175, %177 : vector<1x256xi1>
    %c12_i32_61 = arith.constant 12 : i32
    %179 = vector.broadcast %c12_i32_61 : i32 to vector<1x256xi32>
    %180 = arith.cmpi sge, %6, %179 : vector<1x256xi32>
    %181 = arith.andi %178, %180 : vector<1x256xi1>
    %c28_i32_62 = arith.constant 28 : i32
    %182 = vector.broadcast %c28_i32_62 : i32 to vector<1x256xi32>
    %183 = arith.cmpi slt, %6, %182 : vector<1x256xi32>
    %184 = arith.andi %181, %183 : vector<1x256xi1>
    %cst_63 = arith.constant 0.000000e+00 : f32
    %185 = vector.shape_cast %184 : vector<1x256xi1> to vector<1x256xi1>
    %186 = vector.broadcast %185 : vector<1x256xi1> to vector<8x256xi1>
    %187 = vector.broadcast %cst_63 : f32 to vector<8x256xf32>
    %188 = arith.select %186, %173, %187 : vector<8x256xi1>, vector<8x256xf32>
    %c192_i32 = arith.constant 192 : i32
    %189 = tpu.dynamic_rotate %1 by %c192_i32 dim 1 : vector<8x256xf32>, i32 -> vector<8x256xf32>
    %c12_i32_64 = arith.constant 12 : i32
    %190 = vector.broadcast %c12_i32_64 : i32 to vector<1x256xi32>
    %191 = arith.cmpi sge, %4, %190 : vector<1x256xi32>
    %c28_i32_65 = arith.constant 28 : i32
    %192 = vector.broadcast %c28_i32_65 : i32 to vector<1x256xi32>
    %193 = arith.cmpi slt, %4, %192 : vector<1x256xi32>
    %194 = arith.andi %191, %193 : vector<1x256xi1>
    %c0_i32_66 = arith.constant 0 : i32
    %195 = vector.broadcast %c0_i32_66 : i32 to vector<1x256xi32>
    %196 = arith.cmpi sge, %6, %195 : vector<1x256xi32>
    %197 = arith.andi %194, %196 : vector<1x256xi1>
    %c16_i32_67 = arith.constant 16 : i32
    %198 = vector.broadcast %c16_i32_67 : i32 to vector<1x256xi32>
    %199 = arith.cmpi slt, %6, %198 : vector<1x256xi32>
    %200 = arith.andi %197, %199 : vector<1x256xi1>
    %cst_68 = arith.constant 0.000000e+00 : f32
    %201 = vector.shape_cast %200 : vector<1x256xi1> to vector<1x256xi1>
    %202 = vector.broadcast %201 : vector<1x256xi1> to vector<8x256xi1>
    %203 = vector.broadcast %cst_68 : f32 to vector<8x256xf32>
    %204 = arith.select %202, %189, %203 : vector<8x256xi1>, vector<8x256xf32>
    %c180_i32 = arith.constant 180 : i32
    %205 = tpu.dynamic_rotate %1 by %c180_i32 dim 1 : vector<8x256xf32>, i32 -> vector<8x256xf32>
    %c12_i32_69 = arith.constant 12 : i32
    %206 = vector.broadcast %c12_i32_69 : i32 to vector<1x256xi32>
    %207 = arith.cmpi sge, %4, %206 : vector<1x256xi32>
    %c28_i32_70 = arith.constant 28 : i32
    %208 = vector.broadcast %c28_i32_70 : i32 to vector<1x256xi32>
    %209 = arith.cmpi slt, %4, %208 : vector<1x256xi32>
    %210 = arith.andi %207, %209 : vector<1x256xi1>
    %c-12_i32 = arith.constant -12 : i32
    %211 = vector.broadcast %c-12_i32 : i32 to vector<1x256xi32>
    %212 = arith.cmpi sge, %6, %211 : vector<1x256xi32>
    %213 = arith.andi %210, %212 : vector<1x256xi1>
    %c4_i32_71 = arith.constant 4 : i32
    %214 = vector.broadcast %c4_i32_71 : i32 to vector<1x256xi32>
    %215 = arith.cmpi slt, %6, %214 : vector<1x256xi32>
    %216 = arith.andi %213, %215 : vector<1x256xi1>
    %cst_72 = arith.constant 0.000000e+00 : f32
    %217 = vector.shape_cast %216 : vector<1x256xi1> to vector<1x256xi1>
    %218 = vector.broadcast %217 : vector<1x256xi1> to vector<8x256xi1>
    %219 = vector.broadcast %cst_72 : f32 to vector<8x256xf32>
    %220 = arith.select %218, %205, %219 : vector<8x256xi1>, vector<8x256xf32>
    %c12_i32_73 = arith.constant 12 : i32
    %221 = tpu.dynamic_rotate %1 by %c12_i32_73 dim 1 : vector<8x256xf32>, i32 -> vector<8x256xf32>
    %c0_i32_74 = arith.constant 0 : i32
    %222 = vector.broadcast %c0_i32_74 : i32 to vector<1x256xi32>
    %223 = arith.cmpi sge, %4, %222 : vector<1x256xi32>
    %c16_i32_75 = arith.constant 16 : i32
    %224 = vector.broadcast %c16_i32_75 : i32 to vector<1x256xi32>
    %225 = arith.cmpi slt, %4, %224 : vector<1x256xi32>
    %226 = arith.andi %223, %225 : vector<1x256xi1>
    %c12_i32_76 = arith.constant 12 : i32
    %227 = vector.broadcast %c12_i32_76 : i32 to vector<1x256xi32>
    %228 = arith.cmpi sge, %6, %227 : vector<1x256xi32>
    %229 = arith.andi %226, %228 : vector<1x256xi1>
    %c28_i32_77 = arith.constant 28 : i32
    %230 = vector.broadcast %c28_i32_77 : i32 to vector<1x256xi32>
    %231 = arith.cmpi slt, %6, %230 : vector<1x256xi32>
    %232 = arith.andi %229, %231 : vector<1x256xi1>
    %cst_78 = arith.constant 0.000000e+00 : f32
    %233 = vector.shape_cast %232 : vector<1x256xi1> to vector<1x256xi1>
    %234 = vector.broadcast %233 : vector<1x256xi1> to vector<8x256xi1>
    %235 = vector.broadcast %cst_78 : f32 to vector<8x256xf32>
    %236 = arith.select %234, %221, %235 : vector<8x256xi1>, vector<8x256xf32>
    %c244_i32 = arith.constant 244 : i32
    %237 = tpu.dynamic_rotate %1 by %c244_i32 dim 1 : vector<8x256xf32>, i32 -> vector<8x256xf32>
    %c0_i32_79 = arith.constant 0 : i32
    %238 = vector.broadcast %c0_i32_79 : i32 to vector<1x256xi32>
    %239 = arith.cmpi sge, %4, %238 : vector<1x256xi32>
    %c16_i32_80 = arith.constant 16 : i32
    %240 = vector.broadcast %c16_i32_80 : i32 to vector<1x256xi32>
    %241 = arith.cmpi slt, %4, %240 : vector<1x256xi32>
    %242 = arith.andi %239, %241 : vector<1x256xi1>
    %c-12_i32_81 = arith.constant -12 : i32
    %243 = vector.broadcast %c-12_i32_81 : i32 to vector<1x256xi32>
    %244 = arith.cmpi sge, %6, %243 : vector<1x256xi32>
    %245 = arith.andi %242, %244 : vector<1x256xi1>
    %c4_i32_82 = arith.constant 4 : i32
    %246 = vector.broadcast %c4_i32_82 : i32 to vector<1x256xi32>
    %247 = arith.cmpi slt, %6, %246 : vector<1x256xi32>
    %248 = arith.andi %245, %247 : vector<1x256xi1>
    %cst_83 = arith.constant 0.000000e+00 : f32
    %249 = vector.shape_cast %248 : vector<1x256xi1> to vector<1x256xi1>
    %250 = vector.broadcast %249 : vector<1x256xi1> to vector<8x256xi1>
    %251 = vector.broadcast %cst_83 : f32 to vector<8x256xf32>
    %252 = arith.select %250, %237, %251 : vector<8x256xi1>, vector<8x256xf32>
    %c76_i32 = arith.constant 76 : i32
    %253 = tpu.dynamic_rotate %1 by %c76_i32 dim 1 : vector<8x256xf32>, i32 -> vector<8x256xf32>
    %c-12_i32_84 = arith.constant -12 : i32
    %254 = vector.broadcast %c-12_i32_84 : i32 to vector<1x256xi32>
    %255 = arith.cmpi sge, %4, %254 : vector<1x256xi32>
    %c4_i32_85 = arith.constant 4 : i32
    %256 = vector.broadcast %c4_i32_85 : i32 to vector<1x256xi32>
    %257 = arith.cmpi slt, %4, %256 : vector<1x256xi32>
    %258 = arith.andi %255, %257 : vector<1x256xi1>
    %c12_i32_86 = arith.constant 12 : i32
    %259 = vector.broadcast %c12_i32_86 : i32 to vector<1x256xi32>
    %260 = arith.cmpi sge, %6, %259 : vector<1x256xi32>
    %261 = arith.andi %258, %260 : vector<1x256xi1>
    %c28_i32_87 = arith.constant 28 : i32
    %262 = vector.broadcast %c28_i32_87 : i32 to vector<1x256xi32>
    %263 = arith.cmpi slt, %6, %262 : vector<1x256xi32>
    %264 = arith.andi %261, %263 : vector<1x256xi1>
    %cst_88 = arith.constant 0.000000e+00 : f32
    %265 = vector.shape_cast %264 : vector<1x256xi1> to vector<1x256xi1>
    %266 = vector.broadcast %265 : vector<1x256xi1> to vector<8x256xi1>
    %267 = vector.broadcast %cst_88 : f32 to vector<8x256xf32>
    %268 = arith.select %266, %253, %267 : vector<8x256xi1>, vector<8x256xf32>
    %c64_i32 = arith.constant 64 : i32
    %269 = tpu.dynamic_rotate %1 by %c64_i32 dim 1 : vector<8x256xf32>, i32 -> vector<8x256xf32>
    %c-12_i32_89 = arith.constant -12 : i32
    %270 = vector.broadcast %c-12_i32_89 : i32 to vector<1x256xi32>
    %271 = arith.cmpi sge, %4, %270 : vector<1x256xi32>
    %c4_i32_90 = arith.constant 4 : i32
    %272 = vector.broadcast %c4_i32_90 : i32 to vector<1x256xi32>
    %273 = arith.cmpi slt, %4, %272 : vector<1x256xi32>
    %274 = arith.andi %271, %273 : vector<1x256xi1>
    %c0_i32_91 = arith.constant 0 : i32
    %275 = vector.broadcast %c0_i32_91 : i32 to vector<1x256xi32>
    %276 = arith.cmpi sge, %6, %275 : vector<1x256xi32>
    %277 = arith.andi %274, %276 : vector<1x256xi1>
    %c16_i32_92 = arith.constant 16 : i32
    %278 = vector.broadcast %c16_i32_92 : i32 to vector<1x256xi32>
    %279 = arith.cmpi slt, %6, %278 : vector<1x256xi32>
    %280 = arith.andi %277, %279 : vector<1x256xi1>
    %cst_93 = arith.constant 0.000000e+00 : f32
    %281 = vector.shape_cast %280 : vector<1x256xi1> to vector<1x256xi1>
    %282 = vector.broadcast %281 : vector<1x256xi1> to vector<8x256xi1>
    %283 = vector.broadcast %cst_93 : f32 to vector<8x256xf32>
    %284 = arith.select %282, %269, %283 : vector<8x256xi1>, vector<8x256xf32>
    %c52_i32 = arith.constant 52 : i32
    %285 = tpu.dynamic_rotate %1 by %c52_i32 dim 1 : vector<8x256xf32>, i32 -> vector<8x256xf32>
    %c-12_i32_94 = arith.constant -12 : i32
    %286 = vector.broadcast %c-12_i32_94 : i32 to vector<1x256xi32>
    %287 = arith.cmpi sge, %4, %286 : vector<1x256xi32>
    %c4_i32_95 = arith.constant 4 : i32
    %288 = vector.broadcast %c4_i32_95 : i32 to vector<1x256xi32>
    %289 = arith.cmpi slt, %4, %288 : vector<1x256xi32>
    %290 = arith.andi %287, %289 : vector<1x256xi1>
    %c-12_i32_96 = arith.constant -12 : i32
    %291 = vector.broadcast %c-12_i32_96 : i32 to vector<1x256xi32>
    %292 = arith.cmpi sge, %6, %291 : vector<1x256xi32>
    %293 = arith.andi %290, %292 : vector<1x256xi1>
    %c4_i32_97 = arith.constant 4 : i32
    %294 = vector.broadcast %c4_i32_97 : i32 to vector<1x256xi32>
    %295 = arith.cmpi slt, %6, %294 : vector<1x256xi32>
    %296 = arith.andi %293, %295 : vector<1x256xi1>
    %cst_98 = arith.constant 0.000000e+00 : f32
    %297 = vector.shape_cast %296 : vector<1x256xi1> to vector<1x256xi1>
    %298 = vector.broadcast %297 : vector<1x256xi1> to vector<8x256xi1>
    %299 = vector.broadcast %cst_98 : f32 to vector<8x256xf32>
    %300 = arith.select %298, %285, %299 : vector<8x256xi1>, vector<8x256xf32>
    %301 = tpu.concatenate %188, %204, %220, %236, %1, %252, %268, %284, %300 in 0 : vector<8x256xf32>, vector<8x256xf32>, vector<8x256xf32>, vector<8x256xf32>, vector<8x256xf32>, vector<8x256xf32>, vector<8x256xf32>, vector<8x256xf32>, vector<8x256xf32> -> vector<72x256xf32>
    %c0_99 = arith.constant 0 : index
    %c0_100 = arith.constant 0 : index
    %302 = vector.load %arg8[%c0_99, %c0_100] : memref<8x72xf32, #tpu.memory_space<vmem>>, vector<8x72xf32>
    %cst_101 = arith.constant dense<0.000000e+00> : vector<8x256xf32>
    %303 = tpu.matmul %302, %301, %cst_101 {dimension_numbers = #tpu.dot_dimension_numbers<[1], [0], [0], [1], [0, 0, 1, 1], [], []>} : vector<8x72xf32>, vector<72x256xf32>, vector<8x256xf32> -> vector<8x256xf32>
    %c0_102 = arith.constant 0 : index
    %c0_103 = arith.constant 0 : index
    %304 = vector.load %arg9[%c0_102, %c0_103] : memref<8x1xf32, #tpu.memory_space<vmem>>, vector<8x1xf32>
    %305 = vector.broadcast %304 : vector<8x1xf32> to vector<8x256xf32>
    %306 = arith.mulf %303, %305 : vector<8x256xf32>
    %c0_104 = arith.constant 0 : index
    %c0_105 = arith.constant 0 : index
    %307 = vector.load %arg10[%c0_104, %c0_105] : memref<8x1xf32, #tpu.memory_space<vmem>>, vector<8x1xf32>
    %308 = vector.broadcast %307 : vector<8x1xf32> to vector<8x256xf32>
    %309 = arith.addf %306, %308 : vector<8x256xf32>
    %cst_106 = arith.constant 0.000000e+00 : f32
    %310 = vector.broadcast %cst_106 : f32 to vector<8x256xf32>
    %311 = arith.maximumf %309, %310 : vector<8x256xf32>
    %c24 = arith.constant 24 : index
    %c0_107 = arith.constant 0 : index
    %312 = vector.load %arg15[%c24, %c0_107] : memref<40x256xf32, #tpu.memory_space<vmem>>, vector<8x256xf32>
    tpu.vector_store %arg15[%c24, %c0_107], %311 {strides = array<i32>} : memref<40x256xf32, #tpu.memory_space<vmem>>, vector<8x256xf32>,
    %c0_108 = arith.constant 0 : index
    %c0_109 = arith.constant 0 : index
    %313 = vector.load %arg15[%c0_108, %c0_109] : memref<40x256xf32, #tpu.memory_space<vmem>>, vector<40x256xf32>
    %cst_110 = arith.constant 0.000000e+00 : f32
    %314 = vector.broadcast %cst_110 : f32 to vector<8x256xf32>
    %c0_111 = arith.constant 0 : index
    %c0_112 = arith.constant 0 : index
    %c0_113 = arith.constant 0 : index
    %315 = vector.load %arg11[%c0_111, %c0_112, %c0_113] : memref<9x8x40xf32, #tpu.memory_space<vmem>>, vector<1x8x40xf32>
    %316 = vector.shape_cast %315 : vector<1x8x40xf32> to vector<8x40xf32>
    %c17_i32 = arith.constant 17 : i32
    %317 = tpu.dynamic_rotate %313 by %c17_i32 dim 1 : vector<40x256xf32>, i32 -> vector<40x256xf32>
    %c1_i32 = arith.constant 1 : i32
    %318 = vector.broadcast %c1_i32 : i32 to vector<1x256xi32>
    %319 = arith.cmpi sge, %4, %318 : vector<1x256xi32>
    %c17_i32_114 = arith.constant 17 : i32
    %320 = vector.broadcast %c17_i32_114 : i32 to vector<1x256xi32>
    %321 = arith.cmpi slt, %4, %320 : vector<1x256xi32>
    %322 = arith.andi %319, %321 : vector<1x256xi1>
    %c1_i32_115 = arith.constant 1 : i32
    %323 = vector.broadcast %c1_i32_115 : i32 to vector<1x256xi32>
    %324 = arith.cmpi sge, %6, %323 : vector<1x256xi32>
    %325 = arith.andi %322, %324 : vector<1x256xi1>
    %c17_i32_116 = arith.constant 17 : i32
    %326 = vector.broadcast %c17_i32_116 : i32 to vector<1x256xi32>
    %327 = arith.cmpi slt, %6, %326 : vector<1x256xi32>
    %328 = arith.andi %325, %327 : vector<1x256xi1>
    %cst_117 = arith.constant 0.000000e+00 : f32
    %329 = vector.shape_cast %328 : vector<1x256xi1> to vector<1x256xi1>
    %330 = vector.broadcast %329 : vector<1x256xi1> to vector<40x256xi1>
    %331 = vector.broadcast %cst_117 : f32 to vector<40x256xf32>
    %332 = arith.select %330, %317, %331 : vector<40x256xi1>, vector<40x256xf32>
    %cst_118 = arith.constant dense<0.000000e+00> : vector<8x256xf32>
    %333 = tpu.matmul %316, %332, %cst_118 {dimension_numbers = #tpu.dot_dimension_numbers<[1], [0], [0], [1], [0, 0, 1, 1], [], []>} : vector<8x40xf32>, vector<40x256xf32>, vector<8x256xf32> -> vector<8x256xf32>
    %334 = arith.addf %314, %333 : vector<8x256xf32>
    %c1 = arith.constant 1 : index
    %c0_119 = arith.constant 0 : index
    %c0_120 = arith.constant 0 : index
    %335 = vector.load %arg11[%c1, %c0_119, %c0_120] : memref<9x8x40xf32, #tpu.memory_space<vmem>>, vector<1x8x40xf32>
    %336 = vector.shape_cast %335 : vector<1x8x40xf32> to vector<8x40xf32>
    %c16_i32_121 = arith.constant 16 : i32
    %337 = tpu.dynamic_rotate %313 by %c16_i32_121 dim 1 : vector<40x256xf32>, i32 -> vector<40x256xf32>
    %c1_i32_122 = arith.constant 1 : i32
    %338 = vector.broadcast %c1_i32_122 : i32 to vector<1x256xi32>
    %339 = arith.cmpi sge, %4, %338 : vector<1x256xi32>
    %c17_i32_123 = arith.constant 17 : i32
    %340 = vector.broadcast %c17_i32_123 : i32 to vector<1x256xi32>
    %341 = arith.cmpi slt, %4, %340 : vector<1x256xi32>
    %342 = arith.andi %339, %341 : vector<1x256xi1>
    %c0_i32_124 = arith.constant 0 : i32
    %343 = vector.broadcast %c0_i32_124 : i32 to vector<1x256xi32>
    %344 = arith.cmpi sge, %6, %343 : vector<1x256xi32>
    %345 = arith.andi %342, %344 : vector<1x256xi1>
    %c16_i32_125 = arith.constant 16 : i32
    %346 = vector.broadcast %c16_i32_125 : i32 to vector<1x256xi32>
    %347 = arith.cmpi slt, %6, %346 : vector<1x256xi32>
    %348 = arith.andi %345, %347 : vector<1x256xi1>
    %cst_126 = arith.constant 0.000000e+00 : f32
    %349 = vector.shape_cast %348 : vector<1x256xi1> to vector<1x256xi1>
    %350 = vector.broadcast %349 : vector<1x256xi1> to vector<40x256xi1>
    %351 = vector.broadcast %cst_126 : f32 to vector<40x256xf32>
    %352 = arith.select %350, %337, %351 : vector<40x256xi1>, vector<40x256xf32>
    %cst_127 = arith.constant dense<0.000000e+00> : vector<8x256xf32>
    %353 = tpu.matmul %336, %352, %cst_127 {dimension_numbers = #tpu.dot_dimension_numbers<[1], [0], [0], [1], [0, 0, 1, 1], [], []>} : vector<8x40xf32>, vector<40x256xf32>, vector<8x256xf32> -> vector<8x256xf32>
    %354 = arith.addf %334, %353 : vector<8x256xf32>
    %c2 = arith.constant 2 : index
    %c0_128 = arith.constant 0 : index
    %c0_129 = arith.constant 0 : index
    %355 = vector.load %arg11[%c2, %c0_128, %c0_129] : memref<9x8x40xf32, #tpu.memory_space<vmem>>, vector<1x8x40xf32>
    %356 = vector.shape_cast %355 : vector<1x8x40xf32> to vector<8x40xf32>
    %c15_i32_130 = arith.constant 15 : i32
    %357 = tpu.dynamic_rotate %313 by %c15_i32_130 dim 1 : vector<40x256xf32>, i32 -> vector<40x256xf32>
    %c1_i32_131 = arith.constant 1 : i32
    %358 = vector.broadcast %c1_i32_131 : i32 to vector<1x256xi32>
    %359 = arith.cmpi sge, %4, %358 : vector<1x256xi32>
    %c17_i32_132 = arith.constant 17 : i32
    %360 = vector.broadcast %c17_i32_132 : i32 to vector<1x256xi32>
    %361 = arith.cmpi slt, %4, %360 : vector<1x256xi32>
    %362 = arith.andi %359, %361 : vector<1x256xi1>
    %c-1_i32 = arith.constant -1 : i32
    %363 = vector.broadcast %c-1_i32 : i32 to vector<1x256xi32>
    %364 = arith.cmpi sge, %6, %363 : vector<1x256xi32>
    %365 = arith.andi %362, %364 : vector<1x256xi1>
    %c15_i32_133 = arith.constant 15 : i32
    %366 = vector.broadcast %c15_i32_133 : i32 to vector<1x256xi32>
    %367 = arith.cmpi slt, %6, %366 : vector<1x256xi32>
    %368 = arith.andi %365, %367 : vector<1x256xi1>
    %cst_134 = arith.constant 0.000000e+00 : f32
    %369 = vector.shape_cast %368 : vector<1x256xi1> to vector<1x256xi1>
    %370 = vector.broadcast %369 : vector<1x256xi1> to vector<40x256xi1>
    %371 = vector.broadcast %cst_134 : f32 to vector<40x256xf32>
    %372 = arith.select %370, %357, %371 : vector<40x256xi1>, vector<40x256xf32>
    %cst_135 = arith.constant dense<0.000000e+00> : vector<8x256xf32>
    %373 = tpu.matmul %356, %372, %cst_135 {dimension_numbers = #tpu.dot_dimension_numbers<[1], [0], [0], [1], [0, 0, 1, 1], [], []>} : vector<8x40xf32>, vector<40x256xf32>, vector<8x256xf32> -> vector<8x256xf32>
    %374 = arith.addf %354, %373 : vector<8x256xf32>
    %c3 = arith.constant 3 : index
    %c0_136 = arith.constant 0 : index
    %c0_137 = arith.constant 0 : index
    %375 = vector.load %arg11[%c3, %c0_136, %c0_137] : memref<9x8x40xf32, #tpu.memory_space<vmem>>, vector<1x8x40xf32>
    %376 = vector.shape_cast %375 : vector<1x8x40xf32> to vector<8x40xf32>
    %c1_i32_138 = arith.constant 1 : i32
    %377 = tpu.dynamic_rotate %313 by %c1_i32_138 dim 1 : vector<40x256xf32>, i32 -> vector<40x256xf32>
    %c0_i32_139 = arith.constant 0 : i32
    %378 = vector.broadcast %c0_i32_139 : i32 to vector<1x256xi32>
    %379 = arith.cmpi sge, %4, %378 : vector<1x256xi32>
    %c16_i32_140 = arith.constant 16 : i32
    %380 = vector.broadcast %c16_i32_140 : i32 to vector<1x256xi32>
    %381 = arith.cmpi slt, %4, %380 : vector<1x256xi32>
    %382 = arith.andi %379, %381 : vector<1x256xi1>
    %c1_i32_141 = arith.constant 1 : i32
    %383 = vector.broadcast %c1_i32_141 : i32 to vector<1x256xi32>
    %384 = arith.cmpi sge, %6, %383 : vector<1x256xi32>
    %385 = arith.andi %382, %384 : vector<1x256xi1>
    %c17_i32_142 = arith.constant 17 : i32
    %386 = vector.broadcast %c17_i32_142 : i32 to vector<1x256xi32>
    %387 = arith.cmpi slt, %6, %386 : vector<1x256xi32>
    %388 = arith.andi %385, %387 : vector<1x256xi1>
    %cst_143 = arith.constant 0.000000e+00 : f32
    %389 = vector.shape_cast %388 : vector<1x256xi1> to vector<1x256xi1>
    %390 = vector.broadcast %389 : vector<1x256xi1> to vector<40x256xi1>
    %391 = vector.broadcast %cst_143 : f32 to vector<40x256xf32>
    %392 = arith.select %390, %377, %391 : vector<40x256xi1>, vector<40x256xf32>
    %cst_144 = arith.constant dense<0.000000e+00> : vector<8x256xf32>
    %393 = tpu.matmul %376, %392, %cst_144 {dimension_numbers = #tpu.dot_dimension_numbers<[1], [0], [0], [1], [0, 0, 1, 1], [], []>} : vector<8x40xf32>, vector<40x256xf32>, vector<8x256xf32> -> vector<8x256xf32>
    %394 = arith.addf %374, %393 : vector<8x256xf32>
    %c4 = arith.constant 4 : index
    %c0_145 = arith.constant 0 : index
    %c0_146 = arith.constant 0 : index
    %395 = vector.load %arg11[%c4, %c0_145, %c0_146] : memref<9x8x40xf32, #tpu.memory_space<vmem>>, vector<1x8x40xf32>
    %396 = vector.shape_cast %395 : vector<1x8x40xf32> to vector<8x40xf32>
    %cst_147 = arith.constant dense<0.000000e+00> : vector<8x256xf32>
    %397 = tpu.matmul %396, %313, %cst_147 {dimension_numbers = #tpu.dot_dimension_numbers<[1], [0], [0], [1], [0, 0, 1, 1], [], []>} : vector<8x40xf32>, vector<40x256xf32>, vector<8x256xf32> -> vector<8x256xf32>
    %398 = arith.addf %394, %397 : vector<8x256xf32>
    %c5 = arith.constant 5 : index
    %c0_148 = arith.constant 0 : index
    %c0_149 = arith.constant 0 : index
    %399 = vector.load %arg11[%c5, %c0_148, %c0_149] : memref<9x8x40xf32, #tpu.memory_space<vmem>>, vector<1x8x40xf32>
    %400 = vector.shape_cast %399 : vector<1x8x40xf32> to vector<8x40xf32>
    %c255_i32 = arith.constant 255 : i32
    %401 = tpu.dynamic_rotate %313 by %c255_i32 dim 1 : vector<40x256xf32>, i32 -> vector<40x256xf32>
    %c0_i32_150 = arith.constant 0 : i32
    %402 = vector.broadcast %c0_i32_150 : i32 to vector<1x256xi32>
    %403 = arith.cmpi sge, %4, %402 : vector<1x256xi32>
    %c16_i32_151 = arith.constant 16 : i32
    %404 = vector.broadcast %c16_i32_151 : i32 to vector<1x256xi32>
    %405 = arith.cmpi slt, %4, %404 : vector<1x256xi32>
    %406 = arith.andi %403, %405 : vector<1x256xi1>
    %c-1_i32_152 = arith.constant -1 : i32
    %407 = vector.broadcast %c-1_i32_152 : i32 to vector<1x256xi32>
    %408 = arith.cmpi sge, %6, %407 : vector<1x256xi32>
    %409 = arith.andi %406, %408 : vector<1x256xi1>
    %c15_i32_153 = arith.constant 15 : i32
    %410 = vector.broadcast %c15_i32_153 : i32 to vector<1x256xi32>
    %411 = arith.cmpi slt, %6, %410 : vector<1x256xi32>
    %412 = arith.andi %409, %411 : vector<1x256xi1>
    %cst_154 = arith.constant 0.000000e+00 : f32
    %413 = vector.shape_cast %412 : vector<1x256xi1> to vector<1x256xi1>
    %414 = vector.broadcast %413 : vector<1x256xi1> to vector<40x256xi1>
    %415 = vector.broadcast %cst_154 : f32 to vector<40x256xf32>
    %416 = arith.select %414, %401, %415 : vector<40x256xi1>, vector<40x256xf32>
    %cst_155 = arith.constant dense<0.000000e+00> : vector<8x256xf32>
    %417 = tpu.matmul %400, %416, %cst_155 {dimension_numbers = #tpu.dot_dimension_numbers<[1], [0], [0], [1], [0, 0, 1, 1], [], []>} : vector<8x40xf32>, vector<40x256xf32>, vector<8x256xf32> -> vector<8x256xf32>
    %418 = arith.addf %398, %417 : vector<8x256xf32>
    %c6 = arith.constant 6 : index
    %c0_156 = arith.constant 0 : index
    %c0_157 = arith.constant 0 : index
    %419 = vector.load %arg11[%c6, %c0_156, %c0_157] : memref<9x8x40xf32, #tpu.memory_space<vmem>>, vector<1x8x40xf32>
    %420 = vector.shape_cast %419 : vector<1x8x40xf32> to vector<8x40xf32>
    %c241_i32 = arith.constant 241 : i32
    %421 = tpu.dynamic_rotate %313 by %c241_i32 dim 1 : vector<40x256xf32>, i32 -> vector<40x256xf32>
    %c-1_i32_158 = arith.constant -1 : i32
    %422 = vector.broadcast %c-1_i32_158 : i32 to vector<1x256xi32>
    %423 = arith.cmpi sge, %4, %422 : vector<1x256xi32>
    %c15_i32_159 = arith.constant 15 : i32
    %424 = vector.broadcast %c15_i32_159 : i32 to vector<1x256xi32>
    %425 = arith.cmpi slt, %4, %424 : vector<1x256xi32>
    %426 = arith.andi %423, %425 : vector<1x256xi1>
    %c1_i32_160 = arith.constant 1 : i32
    %427 = vector.broadcast %c1_i32_160 : i32 to vector<1x256xi32>
    %428 = arith.cmpi sge, %6, %427 : vector<1x256xi32>
    %429 = arith.andi %426, %428 : vector<1x256xi1>
    %c17_i32_161 = arith.constant 17 : i32
    %430 = vector.broadcast %c17_i32_161 : i32 to vector<1x256xi32>
    %431 = arith.cmpi slt, %6, %430 : vector<1x256xi32>
    %432 = arith.andi %429, %431 : vector<1x256xi1>
    %cst_162 = arith.constant 0.000000e+00 : f32
    %433 = vector.shape_cast %432 : vector<1x256xi1> to vector<1x256xi1>
    %434 = vector.broadcast %433 : vector<1x256xi1> to vector<40x256xi1>
    %435 = vector.broadcast %cst_162 : f32 to vector<40x256xf32>
    %436 = arith.select %434, %421, %435 : vector<40x256xi1>, vector<40x256xf32>
    %cst_163 = arith.constant dense<0.000000e+00> : vector<8x256xf32>
    %437 = tpu.matmul %420, %436, %cst_163 {dimension_numbers = #tpu.dot_dimension_numbers<[1], [0], [0], [1], [0, 0, 1, 1], [], []>} : vector<8x40xf32>, vector<40x256xf32>, vector<8x256xf32> -> vector<8x256xf32>
    %438 = arith.addf %418, %437 : vector<8x256xf32>
    %c7 = arith.constant 7 : index
    %c0_164 = arith.constant 0 : index
    %c0_165 = arith.constant 0 : index
    %439 = vector.load %arg11[%c7, %c0_164, %c0_165] : memref<9x8x40xf32, #tpu.memory_space<vmem>>, vector<1x8x40xf32>
    %440 = vector.shape_cast %439 : vector<1x8x40xf32> to vector<8x40xf32>
    %c240_i32 = arith.constant 240 : i32
    %441 = tpu.dynamic_rotate %313 by %c240_i32 dim 1 : vector<40x256xf32>, i32 -> vector<40x256xf32>
    %c-1_i32_166 = arith.constant -1 : i32
    %442 = vector.broadcast %c-1_i32_166 : i32 to vector<1x256xi32>
    %443 = arith.cmpi sge, %4, %442 : vector<1x256xi32>
    %c15_i32_167 = arith.constant 15 : i32
    %444 = vector.broadcast %c15_i32_167 : i32 to vector<1x256xi32>
    %445 = arith.cmpi slt, %4, %444 : vector<1x256xi32>
    %446 = arith.andi %443, %445 : vector<1x256xi1>
    %c0_i32_168 = arith.constant 0 : i32
    %447 = vector.broadcast %c0_i32_168 : i32 to vector<1x256xi32>
    %448 = arith.cmpi sge, %6, %447 : vector<1x256xi32>
    %449 = arith.andi %446, %448 : vector<1x256xi1>
    %c16_i32_169 = arith.constant 16 : i32
    %450 = vector.broadcast %c16_i32_169 : i32 to vector<1x256xi32>
    %451 = arith.cmpi slt, %6, %450 : vector<1x256xi32>
    %452 = arith.andi %449, %451 : vector<1x256xi1>
    %cst_170 = arith.constant 0.000000e+00 : f32
    %453 = vector.shape_cast %452 : vector<1x256xi1> to vector<1x256xi1>
    %454 = vector.broadcast %453 : vector<1x256xi1> to vector<40x256xi1>
    %455 = vector.broadcast %cst_170 : f32 to vector<40x256xf32>
    %456 = arith.select %454, %441, %455 : vector<40x256xi1>, vector<40x256xf32>
    %cst_171 = arith.constant dense<0.000000e+00> : vector<8x256xf32>
    %457 = tpu.matmul %440, %456, %cst_171 {dimension_numbers = #tpu.dot_dimension_numbers<[1], [0], [0], [1], [0, 0, 1, 1], [], []>} : vector<8x40xf32>, vector<40x256xf32>, vector<8x256xf32> -> vector<8x256xf32>
    %458 = arith.addf %438, %457 : vector<8x256xf32>
    %c8_172 = arith.constant 8 : index
    %c0_173 = arith.constant 0 : index
    %c0_174 = arith.constant 0 : index
    %459 = vector.load %arg11[%c8_172, %c0_173, %c0_174] : memref<9x8x40xf32, #tpu.memory_space<vmem>>, vector<1x8x40xf32>
    %460 = vector.shape_cast %459 : vector<1x8x40xf32> to vector<8x40xf32>
    %c239_i32 = arith.constant 239 : i32
    %461 = tpu.dynamic_rotate %313 by %c239_i32 dim 1 : vector<40x256xf32>, i32 -> vector<40x256xf32>
    %c-1_i32_175 = arith.constant -1 : i32
    %462 = vector.broadcast %c-1_i32_175 : i32 to vector<1x256xi32>
    %463 = arith.cmpi sge, %4, %462 : vector<1x256xi32>
    %c15_i32_176 = arith.constant 15 : i32
    %464 = vector.broadcast %c15_i32_176 : i32 to vector<1x256xi32>
    %465 = arith.cmpi slt, %4, %464 : vector<1x256xi32>
    %466 = arith.andi %463, %465 : vector<1x256xi1>
    %c-1_i32_177 = arith.constant -1 : i32
    %467 = vector.broadcast %c-1_i32_177 : i32 to vector<1x256xi32>
    %468 = arith.cmpi sge, %6, %467 : vector<1x256xi32>
    %469 = arith.andi %466, %468 : vector<1x256xi1>
    %c15_i32_178 = arith.constant 15 : i32
    %470 = vector.broadcast %c15_i32_178 : i32 to vector<1x256xi32>
    %471 = arith.cmpi slt, %6, %470 : vector<1x256xi32>
    %472 = arith.andi %469, %471 : vector<1x256xi1>
    %cst_179 = arith.constant 0.000000e+00 : f32
    %473 = vector.shape_cast %472 : vector<1x256xi1> to vector<1x256xi1>
    %474 = vector.broadcast %473 : vector<1x256xi1> to vector<40x256xi1>
    %475 = vector.broadcast %cst_179 : f32 to vector<40x256xf32>
    %476 = arith.select %474, %461, %475 : vector<40x256xi1>, vector<40x256xf32>
    %cst_180 = arith.constant dense<0.000000e+00> : vector<8x256xf32>
    %477 = tpu.matmul %460, %476, %cst_180 {dimension_numbers = #tpu.dot_dimension_numbers<[1], [0], [0], [1], [0, 0, 1, 1], [], []>} : vector<8x40xf32>, vector<40x256xf32>, vector<8x256xf32> -> vector<8x256xf32>
    %478 = arith.addf %458, %477 : vector<8x256xf32>
    %c0_181 = arith.constant 0 : index
    %c0_182 = arith.constant 0 : index
    %479 = vector.load %arg12[%c0_181, %c0_182] : memref<8x1xf32, #tpu.memory_space<vmem>>, vector<8x1xf32>
    %480 = vector.broadcast %479 : vector<8x1xf32> to vector<8x256xf32>
    %481 = arith.mulf %478, %480 : vector<8x256xf32>
    %c0_183 = arith.constant 0 : index
    %c0_184 = arith.constant 0 : index
    %482 = vector.load %arg13[%c0_183, %c0_184] : memref<8x1xf32, #tpu.memory_space<vmem>>, vector<8x1xf32>
    %483 = vector.broadcast %482 : vector<8x1xf32> to vector<8x256xf32>
    %484 = arith.addf %481, %483 : vector<8x256xf32>
    %cst_185 = arith.constant 0.000000e+00 : f32
    %485 = vector.broadcast %cst_185 : f32 to vector<8x256xf32>
    %486 = arith.maximumf %484, %485 : vector<8x256xf32>
    %c0_186 = arith.constant 0 : index
    %c0_187 = arith.constant 0 : index
    %c0_188 = arith.constant 0 : index
    %487 = vector.load %arg14[%c0_186, %c0_187, %c0_188] : memref<1x8x256xf32, #tpu.memory_space<vmem>>, vector<1x8x256xf32>
    %488 = vector.shape_cast %487 : vector<1x8x256xf32> to vector<8x256xf32>
    %489 = vector.shape_cast %486 : vector<8x256xf32> to vector<1x8x256xf32>
    tpu.vector_store %arg14[%c0_186, %c0_187, %c0_188], %489 {strides = array<i32>} : memref<1x8x256xf32, #tpu.memory_space<vmem>>, vector<1x8x256xf32>,
    return
  }
  func.func @transform_0(%arg0: i32) -> (i32, i32, i32) {
    %c0_i32 = arith.constant 0 : i32
    %c0_i32_0 = arith.constant 0 : i32
    %c0_i32_1 = arith.constant 0 : i32
    return %arg0, %c0_i32, %c0_i32_0 : i32, i32, i32
  }
  func.func @transform_1(%arg0: i32) -> (i32, i32) {
    %c0_i32 = arith.constant 0 : i32
    %c0_i32_0 = arith.constant 0 : i32
    %c0_i32_1 = arith.constant 0 : i32
    return %c0_i32, %c0_i32_0 : i32, i32
  }
  func.func @transform_2(%arg0: i32) -> (i32, i32) {
    %c0_i32 = arith.constant 0 : i32
    %c0_i32_0 = arith.constant 0 : i32
    %c0_i32_1 = arith.constant 0 : i32
    return %c0_i32, %c0_i32_0 : i32, i32
  }
  func.func @transform_3(%arg0: i32) -> (i32, i32) {
    %c0_i32 = arith.constant 0 : i32
    %c0_i32_0 = arith.constant 0 : i32
    %c0_i32_1 = arith.constant 0 : i32
    return %c0_i32, %c0_i32_0 : i32, i32
  }
  func.func @transform_4(%arg0: i32) -> (i32, i32) {
    %c0_i32 = arith.constant 0 : i32
    %c0_i32_0 = arith.constant 0 : i32
    %c0_i32_1 = arith.constant 0 : i32
    return %c0_i32, %c0_i32_0 : i32, i32
  }
  func.func @transform_5(%arg0: i32) -> (i32, i32) {
    %c0_i32 = arith.constant 0 : i32
    %c0_i32_0 = arith.constant 0 : i32
    %c0_i32_1 = arith.constant 0 : i32
    return %c0_i32, %c0_i32_0 : i32, i32
  }
  func.func @transform_6(%arg0: i32) -> (i32, i32) {
    %c0_i32 = arith.constant 0 : i32
    %c0_i32_0 = arith.constant 0 : i32
    %c0_i32_1 = arith.constant 0 : i32
    return %c0_i32, %c0_i32_0 : i32, i32
  }
  func.func @transform_7(%arg0: i32) -> (i32, i32) {
    %c0_i32 = arith.constant 0 : i32
    %c0_i32_0 = arith.constant 0 : i32
    %c0_i32_1 = arith.constant 0 : i32
    return %c0_i32, %c0_i32_0 : i32, i32
  }
  func.func @transform_8(%arg0: i32) -> (i32, i32) {
    %c0_i32 = arith.constant 0 : i32
    %c0_i32_0 = arith.constant 0 : i32
    %c0_i32_1 = arith.constant 0 : i32
    return %c0_i32, %c0_i32_0 : i32, i32
  }
  func.func @transform_9(%arg0: i32) -> (i32, i32) {
    %c0_i32 = arith.constant 0 : i32
    %c0_i32_0 = arith.constant 0 : i32
    %c0_i32_1 = arith.constant 0 : i32
    return %c0_i32, %c0_i32_0 : i32, i32
  }
  func.func @transform_10(%arg0: i32) -> (i32, i32, i32) {
    %c0_i32 = arith.constant 0 : i32
    %c0_i32_0 = arith.constant 0 : i32
    %c0_i32_1 = arith.constant 0 : i32
    %c0_i32_2 = arith.constant 0 : i32
    return %c0_i32, %c0_i32_0, %c0_i32_1 : i32, i32, i32
  }
  func.func @transform_11(%arg0: i32) -> (i32, i32) {
    %c0_i32 = arith.constant 0 : i32
    %c0_i32_0 = arith.constant 0 : i32
    %c0_i32_1 = arith.constant 0 : i32
    return %c0_i32, %c0_i32_0 : i32, i32
  }
  func.func @transform_12(%arg0: i32) -> (i32, i32) {
    %c0_i32 = arith.constant 0 : i32
    %c0_i32_0 = arith.constant 0 : i32
    %c0_i32_1 = arith.constant 0 : i32
    return %c0_i32, %c0_i32_0 : i32, i32
  }
  func.func @transform_13(%arg0: i32) -> (i32, i32, i32) {
    %c0_i32 = arith.constant 0 : i32
    %c0_i32_0 = arith.constant 0 : i32
    %c0_i32_1 = arith.constant 0 : i32
    return %arg0, %c0_i32, %c0_i32_0 : i32, i32, i32
  }
}

</mosaic_0001>

<llo_original>
// kernel: aspp_wrapper_forward.1
$region0: #{aspp_wrapper_forward.1}
  #allocation0 [shape = 'u32[]', space=smem, size = 0x4, offset = 0x4, fixed_abs, tag = 'smem constant byte address 0x4 - core index']
  #allocation1 [shape = 'u32[144,128]{1,0:T(1,128)}', space=vmem, size = 0x12000, scoped, tag = 'internal scratch']
  #allocation2 [shape = 'f32[40,256]{1,0:T(8,128)}', space=vmem, size = 0xa000, scoped, tag = 'scratch operand']
  %s0 = inlined_call_operand.vmem [shape: f32[2,8,256], index: 0, kind: input, shape index: {}]
  %s1 = inlined_call_operand.vmem [shape: f32[24,8], index: 1, kind: input, shape index: {}]
  %s2 = inlined_call_operand.vmem [shape: f32[24,1], index: 2, kind: input, shape index: {}]
  %s3 = inlined_call_operand.vmem [shape: f32[24,1], index: 3, kind: input, shape index: {}]
  %s4 = inlined_call_operand.vmem [shape: f32[8,72], index: 4, kind: input, shape index: {}]
  %s5 = inlined_call_operand.vmem [shape: f32[8,1], index: 5, kind: input, shape index: {}]
  %s6 = inlined_call_operand.vmem [shape: f32[8,1], index: 6, kind: input, shape index: {}]
  %s7 = inlined_call_operand.vmem [shape: f32[8,72], index: 7, kind: input, shape index: {}]
  %s8 = inlined_call_operand.vmem [shape: f32[8,1], index: 8, kind: input, shape index: {}]
  %s9 = inlined_call_operand.vmem [shape: f32[8,1], index: 9, kind: input, shape index: {}]
  %s10 = inlined_call_operand.vmem [shape: f32[9,8,40], index: 10, kind: input, shape index: {}]
  %s11 = inlined_call_operand.vmem [shape: f32[8,1], index: 11, kind: input, shape index: {}]
  %s12 = inlined_call_operand.vmem [shape: f32[8,1], index: 12, kind: input, shape index: {}]
  %s13 = inlined_call_operand.vmem [shape: f32[2,8,256], index: 13, kind: output, shape index: {}]
  %s14 = sld [smem:[#allocation0]]
  $region85: #{aspp_wrapper_forward.1} parent=0
    _
  %s16 = ssub.s32 1, %s14
  %s17 = scalar_select 0, %s16, %s14
  loop: start=0, step=1, limit=4
  $region2: #{aspp_wrapper_forward.1} parent=0 // loop_pre_header
    _
  $region3: #{aspp_wrapper_forward.1} parent=0 // loop_header
    %s19 = sphi 0, %s23
    %p20 = scmp.ge.s32.totalorder %s19, 4
    %s29 = sphi 0, %s31
    %s32 = sphi 0, %s29
    %s33 = sphi 0, %s32
    %s49 = sphi 0, %s33
    %s53 = sphi 0, %s53
    %s55 = sphi 0, %s53
    %s56 = sphi 0, %s55
    %s70 = sphi 0, %s56
    %s74 = sphi 0, %s74
    %s76 = sphi 0, %s74
    %s77 = sphi 0, %s76
    %s91 = sphi 0, %s77
    %s95 = sphi 0, %s95
    %s97 = sphi 0, %s95
    %s98 = sphi 0, %s97
    %s112 = sphi 0, %s98
    %s116 = sphi 0, %s116
    %s118 = sphi 0, %s116
    %s119 = sphi 0, %s118
    %s133 = sphi 0, %s119
    %s137 = sphi 0, %s137
    %s139 = sphi 0, %s137
    %s140 = sphi 0, %s139
    %s154 = sphi 0, %s140
    %s158 = sphi 0, %s158
    %s160 = sphi 0, %s158
    %s161 = sphi 0, %s160
    %s175 = sphi 0, %s161
    %s179 = sphi 0, %s179
    %s181 = sphi 0, %s179
    %s182 = sphi 0, %s181
    %s196 = sphi 0, %s182
    %s200 = sphi 0, %s200
    %s202 = sphi 0, %s200
    %s203 = sphi 0, %s202
    %s217 = sphi 0, %s203
    %s221 = sphi 0, %s221
    %s223 = sphi 0, %s221
    %s224 = sphi 0, %s223
    %s238 = sphi 0, %s224
    %s242 = sphi 0, %s242
    %s244 = sphi 0, %s242
    %s245 = sphi 0, %s244
    %s259 = sphi 0, %s245
    %s263 = sphi 0, %s263
    %s265 = sphi 0, %s263
    %s266 = sphi 0, %s265
    %s280 = sphi 0, %s266
    %s284 = sphi 0, %s284
    %s286 = sphi 0, %s284
    %s287 = sphi 0, %s286
    %s301 = sphi 0, %s287
    %s307 = sphi 0, %s309
    %s310 = sphi 0, %s307
    %s311 = sphi 0, %s310
    %s327 = sphi 0, %s311
  $region4: #{aspp_wrapper_forward.1} parent=0 // loop_header_branch
    %22 = sbr.rel (%p20) target = $region8
  $region5: #{aspp_wrapper_forward.1} parent=0 // loop_body
    %s24 = ssub.s32 %s19, 1
    %s25 = ssub.s32 %s19, 2
    %s26 = sadd.s32 %s19, 1
    %s27 = ssub.s32 %s19, %s26
    %p28 = scmp.eq.s32.totalorder %s27, 0
    %s30 = sadd.s32 %s29, 1
    %s31 = scalar_select %p28, %s29, %s30
    %p34 = pneg %p28
    %p35 = scmp.eq.s32.totalorder %s19, 1
    %p36 = por %p34, %p35
    %p37 = scmp.ne.s32.totalorder %s29, %s32
    %p38 = scmp.eq.s32.totalorder %s19, 0
    %p39 = por %p37, %p38
    %p40 = scmp.ne.s32.totalorder %s29, %s32
    %p41 = scmp.eq.s32.totalorder %s24, 1
    %p42 = por %p40, %p41
    %p43 = scmp.ne.s32.totalorder %s32, %s33
    %p44 = scmp.eq.s32.totalorder %s24, 0
    %p45 = por %p43, %p44
    %p46 = scmp.ne.s32.totalorder %s32, %s33
    %p47 = scmp.eq.s32.totalorder %s25, 1
    %p48 = por %p46, %p47
    %p50 = scmp.ne.s32.totalorder %s33, %s49
    %p51 = scmp.eq.s32.totalorder %s25, 0
    %p52 = por %p50, %p51
    %s54 = sadd.s32 %s53, 1
    %p57 = scmp.eq.s32.totalorder %s19, 1
    %p58 = scmp.ne.s32.totalorder %s53, %s55
    %p59 = scmp.eq.s32.totalorder %s19, 0
    %p60 = por %p58, %p59
    %p61 = scmp.ne.s32.totalorder %s53, %s55
    %p62 = scmp.eq.s32.totalorder %s24, 1
    %p63 = por %p61, %p62
    %p64 = scmp.ne.s32.totalorder %s55, %s56
    %p65 = scmp.eq.s32.totalorder %s24, 0
    %p66 = por %p64, %p65
    %p67 = scmp.ne.s32.totalorder %s55, %s56
    %p68 = scmp.eq.s32.totalorder %s25, 1
    %p69 = por %p67, %p68
    %p71 = scmp.ne.s32.totalorder %s56, %s70
    %p72 = scmp.eq.s32.totalorder %s25, 0
    %p73 = por %p71, %p72
    %s75 = sadd.s32 %s74, 1
    %p78 = scmp.eq.s32.totalorder %s19, 1
    %p79 = scmp.ne.s32.totalorder %s74, %s76
    %p80 = scmp.eq.s32.totalorder %s19, 0
    %p81 = por %p79, %p80
    %p82 = scmp.ne.s32.totalorder %s74, %s76
    %p83 = scmp.eq.s32.totalorder %s24, 1
    %p84 = por %p82, %p83
    %p85 = scmp.ne.s32.totalorder %s76, %s77
    %p86 = scmp.eq.s32.totalorder %s24, 0
    %p87 = por %p85, %p86
    %p88 = scmp.ne.s32.totalorder %s76, %s77
    %p89 = scmp.eq.s32.totalorder %s25, 1
    %p90 = por %p88, %p89
    %p92 = scmp.ne.s32.totalorder %s77, %s91
    %p93 = scmp.eq.s32.totalorder %s25, 0
    %p94 = por %p92, %p93
    %s96 = sadd.s32 %s95, 1
    %p99 = scmp.eq.s32.totalorder %s19, 1
    %p100 = scmp.ne.s32.totalorder %s95, %s97
    %p101 = scmp.eq.s32.totalorder %s19, 0
    %p102 = por %p100, %p101
    %p103 = scmp.ne.s32.totalorder %s95, %s97
    %p104 = scmp.eq.s32.totalorder %s24, 1
    %p105 = por %p103, %p104
    %p106 = scmp.ne.s32.totalorder %s97, %s98
    %p107 = scmp.eq.s32.totalorder %s24, 0
    %p108 = por %p106, %p107
    %p109 = scmp.ne.s32.totalorder %s97, %s98
    %p110 = scmp.eq.s32.totalorder %s25, 1
    %p111 = por %p109, %p110
    %p113 = scmp.ne.s32.totalorder %s98, %s112
    %p114 = scmp.eq.s32.totalorder %s25, 0
    %p115 = por %p113, %p114
    %s117 = sadd.s32 %s116, 1
    %p120 = scmp.eq.s32.totalorder %s19, 1
    %p121 = scmp.ne.s32.totalorder %s116, %s118
    %p122 = scmp.eq.s32.totalorder %s19, 0
    %p123 = por %p121, %p122
    %p124 = scmp.ne.s32.totalorder %s116, %s118
    %p125 = scmp.eq.s32.totalorder %s24, 1
    %p126 = por %p124, %p125
    %p127 = scmp.ne.s32.totalorder %s118, %s119
    %p128 = scmp.eq.s32.totalorder %s24, 0
    %p129 = por %p127, %p128
    %p130 = scmp.ne.s32.totalorder %s118, %s119
    %p131 = scmp.eq.s32.totalorder %s25, 1
    %p132 = por %p130, %p131
    %p134 = scmp.ne.s32.totalorder %s119, %s133
    %p135 = scmp.eq.s32.totalorder %s25, 0
    %p136 = por %p134, %p135
    %s138 = sadd.s32 %s137, 1
    %p141 = scmp.eq.s32.totalorder %s19, 1
    %p142 = scmp.ne.s32.totalorder %s137, %s139
    %p143 = scmp.eq.s32.totalorder %s19, 0
    %p144 = por %p142, %p143
    %p145 = scmp.ne.s32.totalorder %s137, %s139
    %p146 = scmp.eq.s32.totalorder %s24, 1
    %p147 = por %p145, %p146
    %p148 = scmp.ne.s32.totalorder %s139, %s140
    %p149 = scmp.eq.s32.totalorder %s24, 0
    %p150 = por %p148, %p149
    %p151 = scmp.ne.s32.totalorder %s139, %s140
    %p152 = scmp.eq.s32.totalorder %s25, 1
    %p153 = por %p151, %p152
    %p155 = scmp.ne.s32.totalorder %s140, %s154
    %p156 = scmp.eq.s32.totalorder %s25, 0
    %p157 = por %p155, %p156
    %s159 = sadd.s32 %s158, 1
    %p162 = scmp.eq.s32.totalorder %s19, 1
    %p163 = scmp.ne.s32.totalorder %s158, %s160
    %p164 = scmp.eq.s32.totalorder %s19, 0
    %p165 = por %p163, %p164
    %p166 = scmp.ne.s32.totalorder %s158, %s160
    %p167 = scmp.eq.s32.totalorder %s24, 1
    %p168 = por %p166, %p167
    %p169 = scmp.ne.s32.totalorder %s160, %s161
    %p170 = scmp.eq.s32.totalorder %s24, 0
    %p171 = por %p169, %p170
    %p172 = scmp.ne.s32.totalorder %s160, %s161
    %p173 = scmp.eq.s32.totalorder %s25, 1
    %p174 = por %p172, %p173
    %p176 = scmp.ne.s32.totalorder %s161, %s175
    %p177 = scmp.eq.s32.totalorder %s25, 0
    %p178 = por %p176, %p177
    %s180 = sadd.s32 %s179, 1
    %p183 = scmp.eq.s32.totalorder %s19, 1
    %p184 = scmp.ne.s32.totalorder %s179, %s181
    %p185 = scmp.eq.s32.totalorder %s19, 0
    %p186 = por %p184, %p185
    %p187 = scmp.ne.s32.totalorder %s179, %s181
    %p188 = scmp.eq.s32.totalorder %s24, 1
    %p189 = por %p187, %p188
    %p190 = scmp.ne.s32.totalorder %s181, %s182
    %p191 = scmp.eq.s32.totalorder %s24, 0
    %p192 = por %p190, %p191
    %p193 = scmp.ne.s32.totalorder %s181, %s182
    %p194 = scmp.eq.s32.totalorder %s25, 1
    %p195 = por %p193, %p194
    %p197 = scmp.ne.s32.totalorder %s182, %s196
    %p198 = scmp.eq.s32.totalorder %s25, 0
    %p199 = por %p197, %p198
    %s201 = sadd.s32 %s200, 1
    %p204 = scmp.eq.s32.totalorder %s19, 1
    %p205 = scmp.ne.s32.totalorder %s200, %s202
    %p206 = scmp.eq.s32.totalorder %s19, 0
    %p207 = por %p205, %p206
    %p208 = scmp.ne.s32.totalorder %s200, %s202
    %p209 = scmp.eq.s32.totalorder %s24, 1
    %p210 = por %p208, %p209
    %p211 = scmp.ne.s32.totalorder %s202, %s203
    %p212 = scmp.eq.s32.totalorder %s24, 0
    %p213 = por %p211, %p212
    %p214 = scmp.ne.s32.totalorder %s202, %s203
    %p215 = scmp.eq.s32.totalorder %s25, 1
    %p216 = por %p214, %p215
    %p218 = scmp.ne.s32.totalorder %s203, %s217
    %p219 = scmp.eq.s32.totalorder %s25, 0
    %p220 = por %p218, %p219
    %s222 = sadd.s32 %s221, 1
    %p225 = scmp.eq.s32.totalorder %s19, 1
    %p226 = scmp.ne.s32.totalorder %s221, %s223
    %p227 = scmp.eq.s32.totalorder %s19, 0
    %p228 = por %p226, %p227
    %p229 = scmp.ne.s32.totalorder %s221, %s223
    %p230 = scmp.eq.s32.totalorder %s24, 1
    %p231 = por %p229, %p230
    %p232 = scmp.ne.s32.totalorder %s223, %s224
    %p233 = scmp.eq.s32.totalorder %s24, 0
    %p234 = por %p232, %p233
    %p235 = scmp.ne.s32.totalorder %s223, %s224
    %p236 = scmp.eq.s32.totalorder %s25, 1
    %p237 = por %p235, %p236
    %p239 = scmp.ne.s32.totalorder %s224, %s238
    %p240 = scmp.eq.s32.totalorder %s25, 0
    %p241 = por %p239, %p240
    %s243 = sadd.s32 %s242, 1
    %p246 = scmp.eq.s32.totalorder %s19, 1
    %p247 = scmp.ne.s32.totalorder %s242, %s244
    %p248 = scmp.eq.s32.totalorder %s19, 0
    %p249 = por %p247, %p248
    %p250 = scmp.ne.s32.totalorder %s242, %s244
    %p251 = scmp.eq.s32.totalorder %s24, 1
    %p252 = por %p250, %p251
    %p253 = scmp.ne.s32.totalorder %s244, %s245
    %p254 = scmp.eq.s32.totalorder %s24, 0
    %p255 = por %p253, %p254
    %p256 = scmp.ne.s32.totalorder %s244, %s245
    %p257 = scmp.eq.s32.totalorder %s25, 1
    %p258 = por %p256, %p257
    %p260 = scmp.ne.s32.totalorder %s245, %s259
    %p261 = scmp.eq.s32.totalorder %s25, 0
    %p262 = por %p260, %p261
    %s264 = sadd.s32 %s263, 1
    %p267 = scmp.eq.s32.totalorder %s19, 1
    %p268 = scmp.ne.s32.totalorder %s263, %s265
    %p269 = scmp.eq.s32.totalorder %s19, 0
    %p270 = por %p268, %p269
    %p271 = scmp.ne.s32.totalorder %s263, %s265
    %p272 = scmp.eq.s32.totalorder %s24, 1
    %p273 = por %p271, %p272
    %p274 = scmp.ne.s32.totalorder %s265, %s266
    %p275 = scmp.eq.s32.totalorder %s24, 0
    %p276 = por %p274, %p275
    %p277 = scmp.ne.s32.totalorder %s265, %s266
    %p278 = scmp.eq.s32.totalorder %s25, 1
    %p279 = por %p277, %p278
    %p281 = scmp.ne.s32.totalorder %s266, %s280
    %p282 = scmp.eq.s32.totalorder %s25, 0
    %p283 = por %p281, %p282
    %s285 = sadd.s32 %s284, 1
    %p288 = scmp.eq.s32.totalorder %s19, 1
    %p289 = scmp.ne.s32.totalorder %s284, %s286
    %p290 = scmp.eq.s32.totalorder %s19, 0
    %p291 = por %p289, %p290
    %p292 = scmp.ne.s32.totalorder %s284, %s286
    %p293 = scmp.eq.s32.totalorder %s24, 1
    %p294 = por %p292, %p293
    %p295 = scmp.ne.s32.totalorder %s286, %s287
    %p296 = scmp.eq.s32.totalorder %s24, 0
    %p297 = por %p295, %p296
    %p298 = scmp.ne.s32.totalorder %s286, %s287
    %p299 = scmp.eq.s32.totalorder %s25, 1
    %p300 = por %p298, %p299
    %p302 = scmp.ne.s32.totalorder %s287, %s301
    %p303 = scmp.eq.s32.totalorder %s25, 0
    %p304 = por %p302, %p303
    %s305 = ssub.s32 %s19, %s26
    %p306 = scmp.eq.s32.totalorder %s305, 0
    %s308 = sadd.s32 %s307, 1
    %s309 = scalar_select %p306, %s307, %s308
    %p312 = pneg %p306
    %p313 = scmp.eq.s32.totalorder %s19, 1
    %p314 = por %p312, %p313
    %p315 = scmp.ne.s32.totalorder %s307, %s310
    %p316 = scmp.eq.s32.totalorder %s19, 0
    %p317 = por %p315, %p316
    %p318 = scmp.ne.s32.totalorder %s307, %s310
    %p319 = scmp.eq.s32.totalorder %s24, 1
    %p320 = por %p318, %p319
    %p321 = scmp.ne.s32.totalorder %s310, %s311
    %p322 = scmp.eq.s32.totalorder %s24, 0
    %p323 = por %p321, %p322
    %p324 = scmp.ne.s32.totalorder %s310, %s311
    %p325 = scmp.eq.s32.totalorder %s25, 1
    %p326 = por %p324, %p325
    %p328 = scmp.ne.s32.totalorder %s311, %s327
    %p329 = scmp.eq.s32.totalorder %s25, 0
    %p330 = por %p328, %p329
    %p331 = scmp.le.s32.totalorder 1, %s19
    %p332 = scmp.lt.s32.totalorder %s19, 3
    %p333 = pnand %p331, %p332
    %p334 = pneg %p333
    // Predicated region
    $region9: #{aspp_wrapper_forward.1} parent=5 // pred_check
      _
    $region10: #{aspp_wrapper_forward.1} parent=5 // pred_check_branch
      %336 = sbr.rel (%p333) target = $region12
    $region11: #{aspp_wrapper_forward.1} parent=5 // pred_region
      %s337 = ssub.s32 %s19, 1
      // Predicated region
      $region13: #{aspp_wrapper_forward.1} parent=11 // pred_check
        %p338 = pneg %p66
      $region14: #{aspp_wrapper_forward.1} parent=11 // pred_check_branch
        %340 = sbr.rel (%p338) target = $region16
      $region15: #{aspp_wrapper_forward.1} parent=11 // pred_region
        _
      $region16: #{aspp_wrapper_forward.1} parent=11 // pred_fallthru
        _
      // Predicated region
      $region17: #{aspp_wrapper_forward.1} parent=11 // pred_check
        %p341 = pneg %p87
      $region18: #{aspp_wrapper_forward.1} parent=11 // pred_check_branch
        %343 = sbr.rel (%p341) target = $region20
      $region19: #{aspp_wrapper_forward.1} parent=11 // pred_region
        _
      $region20: #{aspp_wrapper_forward.1} parent=11 // pred_fallthru
        _
      // Predicated region
      $region21: #{aspp_wrapper_forward.1} parent=11 // pred_check
        %p344 = pneg %p108
      $region22: #{aspp_wrapper_forward.1} parent=11 // pred_check_branch
        %346 = sbr.rel (%p344) target = $region24
      $region23: #{aspp_wrapper_forward.1} parent=11 // pred_region
        _
      $region24: #{aspp_wrapper_forward.1} parent=11 // pred_fallthru
        _
      // Predicated region
      $region25: #{aspp_wrapper_forward.1} parent=11 // pred_check
        %p347 = pneg %p129
      $region26: #{aspp_wrapper_forward.1} parent=11 // pred_check_branch
        %349 = sbr.rel (%p347) target = $region28
      $region27: #{aspp_wrapper_forward.1} parent=11 // pred_region
        _
      $region28: #{aspp_wrapper_forward.1} parent=11 // pred_fallthru
        _
      // Predicated region
      $region29: #{aspp_wrapper_forward.1} parent=11 // pred_check
        %p350 = pneg %p150
      $region30: #{aspp_wrapper_forward.1} parent=11 // pred_check_branch
        %352 = sbr.rel (%p350) target = $region32
      $region31: #{aspp_wrapper_forward.1} parent=11 // pred_region
        _
      $region32: #{aspp_wrapper_forward.1} parent=11 // pred_fallthru
        _
      // Predicated region
      $region33: #{aspp_wrapper_forward.1} parent=11 // pred_check
        %p353 = pneg %p171
      $region34: #{aspp_wrapper_forward.1} parent=11 // pred_check_branch
        %355 = sbr.rel (%p353) target = $region36
      $region35: #{aspp_wrapper_forward.1} parent=11 // pred_region
        _
      $region36: #{aspp_wrapper_forward.1} parent=11 // pred_fallthru
        _
      // Predicated region
      $region37: #{aspp_wrapper_forward.1} parent=11 // pred_check
        %p356 = pneg %p192
      $region38: #{aspp_wrapper_forward.1} parent=11 // pred_check_branch
        %358 = sbr.rel (%p356) target = $region40
      $region39: #{aspp_wrapper_forward.1} parent=11 // pred_region
        _
      $region40: #{aspp_wrapper_forward.1} parent=11 // pred_fallthru
        _
      // Predicated region
      $region41: #{aspp_wrapper_forward.1} parent=11 // pred_check
        %p359 = pneg %p213
      $region42: #{aspp_wrapper_forward.1} parent=11 // pred_check_branch
        %361 = sbr.rel (%p359) target = $region44
      $region43: #{aspp_wrapper_forward.1} parent=11 // pred_region
        _
      $region44: #{aspp_wrapper_forward.1} parent=11 // pred_fallthru
        _
      // Predicated region
      $region45: #{aspp_wrapper_forward.1} parent=11 // pred_check
        %p362 = pneg %p234
      $region46: #{aspp_wrapper_forward.1} parent=11 // pred_check_branch
        %364 = sbr.rel (%p362) target = $region48
      $region47: #{aspp_wrapper_forward.1} parent=11 // pred_region
        _
      $region48: #{aspp_wrapper_forward.1} parent=11 // pred_fallthru
        _
      // Predicated region
      $region49: #{aspp_wrapper_forward.1} parent=11 // pred_check
        %p365 = pneg %p255
      $region50: #{aspp_wrapper_forward.1} parent=11 // pred_check_branch
        %367 = sbr.rel (%p365) target = $region52
      $region51: #{aspp_wrapper_forward.1} parent=11 // pred_region
        _
      $region52: #{aspp_wrapper_forward.1} parent=11 // pred_fallthru
        _
      // Predicated region
      $region53: #{aspp_wrapper_forward.1} parent=11 // pred_check
        %p368 = pneg %p276
      $region54: #{aspp_wrapper_forward.1} parent=11 // pred_check_branch
        %370 = sbr.rel (%p368) target = $region56
      $region55: #{aspp_wrapper_forward.1} parent=11 // pred_region
        _
      $region56: #{aspp_wrapper_forward.1} parent=11 // pred_fallthru
        _
      // Predicated region
      $region57: #{aspp_wrapper_forward.1} parent=11 // pred_check
        %p371 = pneg %p297
      $region58: #{aspp_wrapper_forward.1} parent=11 // pred_check_branch
        %373 = sbr.rel (%p371) target = $region60
      $region59: #{aspp_wrapper_forward.1} parent=11 // pred_region
        _
      $region60: #{aspp_wrapper_forward.1} parent=11 // pred_fallthru
        _
    $region12: #{aspp_wrapper_forward.1} parent=5 // pred_fallthru
      _
    %p374 = scmp.lt.s32.totalorder %s19, 2
    // Predicated region
    $region61: #{aspp_wrapper_forward.1} parent=5 // pred_check
      %p375 = pneg %p374
    $region62: #{aspp_wrapper_forward.1} parent=5 // pred_check_branch
      %377 = sbr.rel (%p375) target = $region64
    $region63: #{aspp_wrapper_forward.1} parent=5 // pred_region
      // Predicated region
      $region65: #{aspp_wrapper_forward.1} parent=63 // pred_check
        %p378 = pneg %p39
      $region66: #{aspp_wrapper_forward.1} parent=63 // pred_check_branch
        %380 = sbr.rel (%p378) target = $region68
      $region67: #{aspp_wrapper_forward.1} parent=63 // pred_region
        %p381 = scmp.lt.s32.totalorder %s19, 1
        %s382 = scalar_select %p381, %s19, 1
        %s383 = smul.addr %s382, 2
        %s384 = smul.addr %s383, 8
        %s385 = scalar_lea.vmem %s0, %s384
      $region68: #{aspp_wrapper_forward.1} parent=63 // pred_fallthru
        _
    $region64: #{aspp_wrapper_forward.1} parent=5 // pred_fallthru
      _
    %p386 = scmp.le.s32.totalorder 1, %s19
    %p387 = scmp.lt.s32.totalorder %s19, 3
    %p388 = pnand %p386, %p387
    %p389 = pneg %p388
    // Predicated region
    $region69: #{aspp_wrapper_forward.1} parent=5 // pred_check
      _
    $region70: #{aspp_wrapper_forward.1} parent=5 // pred_check_branch
      %391 = sbr.rel (%p388) target = $region72
    $region71: #{aspp_wrapper_forward.1} parent=5 // pred_region
      %s392 = ssub.s32 %s19, 1
      %p393 = scmp.lt.s32.totalorder %s24, 1
      %s394 = scalar_select %p393, %s24, 1
      %s395 = smul.addr %s394, 2
      %s396 = smul.addr %s395, 8
      %s397 = scalar_lea.vmem %s0, %s396
      %p398 = pneg %p45
      %p399 = pneg %p42
      %p400 = pneg %p66
      %p401 = pneg %p63
      %p402 = pneg %p87
      %p403 = pneg %p84
      %p404 = pneg %p108
      %p405 = pneg %p105
      %p406 = pneg %p129
      %p407 = pneg %p126
      %p408 = pneg %p150
      %p409 = pneg %p147
      %p410 = pneg %p171
      %p411 = pneg %p168
      %p412 = pneg %p192
      %p413 = pneg %p189
      %p414 = pneg %p213
      %p415 = pneg %p210
      %p416 = pneg %p234
      %p417 = pneg %p231
      %p418 = pneg %p255
      %p419 = pneg %p252
      %p420 = pneg %p276
      %p421 = pneg %p273
      %p422 = pneg %p297
      %p423 = pneg %p294
      %p424 = pneg %p323
      %p425 = pneg %p320
      %p426 = scmp.lt.s32.totalorder %s24, 1
      %s427 = scalar_select %p426, %s24, 1
      %s428 = smul.addr %s427, 2
      %s429 = smul.addr %s428, 8
      %s430 = scalar_lea.vmem %s13, %s429
      %p431 = scmp.lt.s32.totalorder %s24, 1
      %s432 = scalar_select %p431, %s24, 1
      %s433 = smul.addr %s432, 2
      %s434 = smul.addr %s433, 8
      %s435 = scalar_lea.vmem %s0, %s434
      %p436 = scmp.lt.s32.totalorder %s24, 1
      %s437 = scalar_select %p436, %s24, 1
      %s438 = smul.addr %s437, 2
      %s439 = smul.addr %s438, 8
      %s440 = scalar_lea.vmem %s13, %s439
      %v441 = vld [vmem:[%s435] sm:$0xff]
      %v442 = vld [vmem:[%s435 + $0x8] sm:$0xff]
      %v443 = vlaneseq
      %v444 = vand.u32 %v443, 127
      %v445 = vadd.s32 %v444, 128
      %v446 = vshra.s32 %v444, 4
      %v447 = vshra.s32 %v445, 4
      %v448 = vand.u32 %v444, 15
      %v449 = vand.u32 %v445, 15
      %v450 = vld [vmem:[%s1] sm:$0xff]
      %v451 = vld [vmem:[%s1 + $0x8] sm:$0xff]
      %v452 = vld [vmem:[%s1 + $0x10] sm:$0xff]
      %vm453 = vcmask 64512
      %v455 = vsel %vm453, %v450, 0
      %v458 = vsel %vm453, %v451, 0
      %v461 = vsel %vm453, %v452, 0
      %463 = vmatprep.subr.mxu0 %v442
      %464 = vmatpush1.msra.mxu0 %v441
      %465 = vmatprep.subr.mxu0 0.0
      %466 = vmatpush1.msra.mxu0 0.0
      %467 = vmatprep.subr.mxu0 0.0
      %468 = vmatpush1.msra.mxu0 0.0
      %469 = vmatprep.subr.mxu0 0.0
      %470 = vmatpush1.msra.mxu0 0.0
      %471 = vmatprep.subr.mxu0 0.0
      %472 = vmatpush1.msra.mxu0 0.0
      %473 = vmatprep.subr.mxu0 0.0
      %474 = vmatpush1.msra.mxu0 0.0
      %475 = vmatprep.subr.mxu0 0.0
      %476 = vmatpush1.msra.mxu0 0.0
      %477 = vmatprep.subr.mxu0 0.0
      %478 = vmatpush1.msra.mxu0 0.0
      %479 = vmatprep.subr.mxu0 0.0
      %480 = vmatpush1.msra.mxu0 0.0
      %481 = vmatprep.subr.mxu0 0.0
      %482 = vmatpush1.msra.mxu0 0.0
      %483 = vmatprep.subr.mxu0 0.0
      %484 = vmatpush1.msra.mxu0 0.0
      %485 = vmatprep.subr.mxu0 0.0
      %486 = vmatpush1.msra.mxu0 0.0
      %487 = vmatprep.subr.mxu0 0.0
      %488 = vmatpush1.msra.mxu0 0.0
      %489 = vmatprep.subr.mxu0 0.0
      %490 = vmatpush1.msra.mxu0 0.0
      %491 = vmatprep.subr.mxu0 0.0
      %492 = vmatpush1.msra.mxu0 0.0
      %493 = vmatprep.subr.mxu0 0.0
      %494 = vmatpush1.msra.mxu0 0.0
      %495 = vmatprep.subr.mxu0 0.0
      %496 = vmatpush1.msra.mxu0 0.0
      %497 = vmatprep.subr.mxu0 0.0
      %498 = vmatpush1.msra.mxu0 0.0
      %499 = vmatprep.subr.mxu0 0.0
      %500 = vmatpush1.msra.mxu0 0.0
      %501 = vmatprep.subr.mxu0 0.0
      %502 = vmatpush1.msra.mxu0 0.0
      %503 = vmatprep.subr.mxu0 0.0
      %504 = vmatpush1.msra.mxu0 0.0
      %505 = vmatprep.subr.mxu0 0.0
      %506 = vmatpush1.msra.mxu0 0.0
      %507 = vmatprep.subr.mxu0 0.0
      %508 = vmatpush1.msra.mxu0 0.0
      %509 = vmatprep.subr.mxu0 0.0
      %510 = vmatpush1.msra.mxu0 0.0
      %511 = vmatprep.subr.mxu0 0.0
      %512 = vmatpush1.msra.mxu0 0.0
      %513 = vmatprep.subr.mxu0 0.0
      %514 = vmatpush1.msra.mxu0 0.0
      %515 = vmatprep.subr.mxu0 0.0
      %516 = vmatpush1.msra.mxu0 0.0
      %517 = vmatprep.subr.mxu0 0.0
      %518 = vmatpush1.msra.mxu0 0.0
      %519 = vmatprep.subr.mxu0 0.0
      %520 = vmatpush1.msra.mxu0 0.0
      %521 = vmatprep.subr.mxu0 0.0
      %522 = vmatpush1.msra.mxu0 0.0
      %523 = vmatprep.subr.mxu0 0.0
      %524 = vmatpush1.msra.mxu0 0.0
      %525 = vmatprep.subr.mxu0 0.0
      %526 = vmatpush1.msra.mxu0 0.0
      %527 = vmatprep.mubr.f32.mxu0 0.0
      %528 = vmatmul.mubr.f32.gmra.mrb[0].mxu0 %v455
      %v529 = vpop.f32.mrb[0].mxu0
      %v530 = vadd.f32 0.0, %v529
      %v531 = vpop.f32.mrb[0].mxu0
      %v532 = vadd.f32 0.0, %v531
      %533 = vmatprep.mubr.f32.mxu0 0.0
      %534 = vmatmul.mubr.f32.gmra.mrb[0].mxu0 %v458
      %v535 = vpop.f32.mrb[0].mxu0
      %v536 = vadd.f32 0.0, %v535
      %v537 = vpop.f32.mrb[0].mxu0
      %v538 = vadd.f32 0.0, %v537
      %539 = vmatprep.mubr.f32.mxu0 0.0
      %540 = vmatmul.mubr.f32.gmra.mrb[0].mxu0 %v461
      %v541 = vpop.f32.mrb[0].mxu0
      %v542 = vadd.f32 0.0, %v541
      %v543 = vpop.f32.mrb[0].mxu0
      %v544 = vadd.f32 0.0, %v543
      %545 = vdwg.mxu0
      %v546 = vld [vmem:[%s2] sm:$0xff]
      %v547 = vld [vmem:[%s2 + $0x8] sm:$0xff]
      %v548 = vld [vmem:[%s2 + $0x10] sm:$0xff]
      %550 = vset.pattern.permute.xlu0 0
      %551 = vperm.xlu0 %550, %v546
      %v552 = vpop.permute.xlu0 %551
      %555 = vset.pattern.permute.xlu0 0
      %556 = vperm.xlu0 %555, %v547
      %v557 = vpop.permute.xlu0 %556
      %560 = vset.pattern.permute.xlu0 0
      %561 = vperm.xlu0 %560, %v548
      %v562 = vpop.permute.xlu0 %561
      %v564 = vmul.f32 %v530, %v552
      %v565 = vmul.f32 %v532, %v552
      %v566 = vmul.f32 %v536, %v557
      %v567 = vmul.f32 %v538, %v557
      %v568 = vmul.f32 %v542, %v562
      %v569 = vmul.f32 %v544, %v562
      %v570 = vld [vmem:[%s3] sm:$0xff]
      %v571 = vld [vmem:[%s3 + $0x8] sm:$0xff]
      %v572 = vld [vmem:[%s3 + $0x10] sm:$0xff]
      %574 = vset.pattern.permute.xlu0 0
      %575 = vperm.xlu0 %574, %v570
      %v576 = vpop.permute.xlu0 %575
      %579 = vset.pattern.permute.xlu0 0
      %580 = vperm.xlu0 %579, %v571
      %v581 = vpop.permute.xlu0 %580
      %584 = vset.pattern.permute.xlu0 0
      %585 = vperm.xlu0 %584, %v572
      %v586 = vpop.permute.xlu0 %585
      %v588 = vadd.f32 %v564, %v576
      %v589 = vadd.f32 %v565, %v576
      %v590 = vadd.f32 %v566, %v581
      %v591 = vadd.f32 %v567, %v581
      %v592 = vadd.f32 %v568, %v586
      %v593 = vadd.f32 %v569, %v586
      %v594 = vadd.f32 %v588, %v589
      %595 = vadd.xlane.f32.xlu0 %v594
      %v596 = vpop.xlane.xlu0 %595
      %v597 = vrcp.pop 256.0
      %v598 = vmul.f32 %v596, %v597
      %v599 = vmax.f32 %v598, 0.0
      %600 = vst [vmem:[#allocation2] sm:$0xff] %v599
      %601 = vst [vmem:[#allocation2 + $0x8] sm:$0xff] %v599
      %v602 = vmax.f32 %v590, 0.0
      %v603 = vmax.f32 %v591, 0.0
      %604 = vst [vmem:[#allocation2 + $0x10] sm:$0xff] %v602
      %605 = vst [vmem:[#allocation2 + $0x18] sm:$0xff] %v603
      %v606 = vmax.f32 %v592, 0.0
      %v607 = vmax.f32 %v593, 0.0
      %608 = vst [vmem:[#allocation2 + $0x40] sm:$0xff] %v606
      %609 = vst [vmem:[#allocation2 + $0x48] sm:$0xff] %v607
      %610 = vrot.lane.b32.xlu0 %v441, 102
      %v611 = vpop.permute.xlu0 %610
      %612 = vrot.lane.b32.xlu0 %v442, 102
      %v613 = vpop.permute.xlu0 %612
      %vm614 = vcmp.lt.s32.totalorder %v444, 102
      %v615 = vsel %vm614, %v611, %v613
      %v616 = vsel %vm614, %v613, %v611
      %vm617 = vcmp.ge.s32.totalorder %v446, 6
      %vm618 = vcmp.ge.s32.totalorder %v447, 6
      %vm619 = vcmp.lt.s32.totalorder %v446, 22
      %vm620 = vcmp.lt.s32.totalorder %v447, 22
      %vm621 = vmand %vm617, %vm619
      %vm622 = vmand %vm618, %vm620
      %vm623 = vcmp.ge.s32.totalorder %v448, 6
      %vm624 = vcmp.ge.s32.totalorder %v449, 6
      %vm625 = vmand %vm621, %vm623
      %vm626 = vmand %vm622, %vm624
      %vm627 = vcmp.lt.s32.totalorder %v448, 22
      %vm628 = vcmp.lt.s32.totalorder %v449, 22
      %vm629 = vmand %vm625, %vm627
      %vm630 = vmand %vm626, %vm628
      %v631 = vsel %vm629, 1, 0
      %v632 = vsel %vm630, 1, 0
      %vm633 = vcmp.eq.s32.totalorder %v631, 1
      %vm634 = vcmp.eq.s32.totalorder %v632, 1
      %v635 = vsel %vm633, %v616, 0.0
      %v636 = vsel %vm634, %v615, 0.0
      %637 = vrot.lane.b32.xlu0 %v441, 96
      %v638 = vpop.permute.xlu0 %637
      %639 = vrot.lane.b32.xlu0 %v442, 96
      %v640 = vpop.permute.xlu0 %639
      %vm641 = vcmp.lt.s32.totalorder %v444, 96
      %v642 = vsel %vm641, %v638, %v640
      %v643 = vsel %vm641, %v640, %v638
      %vm644 = vcmp.ge.s32.totalorder %v448, 0
      %vm645 = vcmp.ge.s32.totalorder %v449, 0
      %vm646 = vmand %vm621, %vm644
      %vm647 = vmand %vm622, %vm645
      %vm648 = vcmp.lt.s32.totalorder %v448, 16
      %vm649 = vcmp.lt.s32.totalorder %v449, 16
      %vm650 = vmand %vm646, %vm648
      %vm651 = vmand %vm647, %vm649
      %v652 = vsel %vm650, 1, 0
      %v653 = vsel %vm651, 1, 0
      %vm654 = vcmp.eq.s32.totalorder %v652, 1
      %vm655 = vcmp.eq.s32.totalorder %v653, 1
      %v656 = vsel %vm654, %v643, 0.0
      %v657 = vsel %vm655, %v642, 0.0
      %658 = vrot.lane.b32.xlu0 %v441, 90
      %v659 = vpop.permute.xlu0 %658
      %660 = vrot.lane.b32.xlu0 %v442, 90
      %v661 = vpop.permute.xlu0 %660
      %vm662 = vcmp.lt.s32.totalorder %v444, 90
      %v663 = vsel %vm662, %v659, %v661
      %v664 = vsel %vm662, %v661, %v659
      %vm665 = vcmp.ge.s32.totalorder %v448, 4294967290
      %vm666 = vcmp.ge.s32.totalorder %v449, 4294967290
      %vm667 = vmand %vm621, %vm665
      %vm668 = vmand %vm622, %vm666
      %vm669 = vcmp.lt.s32.totalorder %v448, 10
      %vm670 = vcmp.lt.s32.totalorder %v449, 10
      %vm671 = vmand %vm667, %vm669
      %vm672 = vmand %vm668, %vm670
      %v673 = vsel %vm671, 1, 0
      %v674 = vsel %vm672, 1, 0
      %vm675 = vcmp.eq.s32.totalorder %v673, 1
      %vm676 = vcmp.eq.s32.totalorder %v674, 1
      %v677 = vsel %vm675, %v664, 0.0
      %v678 = vsel %vm676, %v663, 0.0
      %679 = vrot.lane.b32.xlu0 %v441, 6
      %v680 = vpop.permute.xlu0 %679
      %681 = vrot.lane.b32.xlu0 %v442, 6
      %v682 = vpop.permute.xlu0 %681
      %vm683 = vcmp.lt.s32.totalorder %v444, 6
      %v684 = vsel %vm683, %v680, %v682
      %v685 = vsel %vm683, %v682, %v680
      %vm686 = vcmp.ge.s32.totalorder %v446, 0
      %vm687 = vcmp.ge.s32.totalorder %v447, 0
      %vm688 = vcmp.lt.s32.totalorder %v446, 16
      %vm689 = vcmp.lt.s32.totalorder %v447, 16
      %vm690 = vmand %vm686, %vm688
      %vm691 = vmand %vm687, %vm689
      %vm692 = vmand %vm690, %vm623
      %vm693 = vmand %vm691, %vm624
      %vm694 = vmand %vm692, %vm627
      %vm695 = vmand %vm693, %vm628
      %v696 = vsel %vm694, 1, 0
      %v697 = vsel %vm695, 1, 0
      %vm698 = vcmp.eq.s32.totalorder %v696, 1
      %vm699 = vcmp.eq.s32.totalorder %v697, 1
      %v700 = vsel %vm698, %v685, 0.0
      %v701 = vsel %vm699, %v684, 0.0
      %702 = vrot.lane.b32.xlu0 %v441, 122
      %v703 = vpop.permute.xlu0 %702
      %704 = vrot.lane.b32.xlu0 %v442, 122
      %v705 = vpop.permute.xlu0 %704
      %vm706 = vcmp.lt.s32.totalorder %v444, 122
      %v707 = vsel %vm706, %v703, %v705
      %v708 = vsel %vm706, %v705, %v703
      %vm709 = vmand %vm690, %vm665
      %vm710 = vmand %vm691, %vm666
      %vm711 = vmand %vm709, %vm669
      %vm712 = vmand %vm710, %vm670
      %v713 = vsel %vm711, 1, 0
      %v714 = vsel %vm712, 1, 0
      %vm715 = vcmp.eq.s32.totalorder %v713, 1
      %vm716 = vcmp.eq.s32.totalorder %v714, 1
      %v717 = vsel %vm715, %v707, 0.0
      %v718 = vsel %vm716, %v708, 0.0
      %719 = vrot.lane.b32.xlu0 %v441, 38
      %v720 = vpop.permute.xlu0 %719
      %721 = vrot.lane.b32.xlu0 %v442, 38
      %v722 = vpop.permute.xlu0 %721
      %vm723 = vcmp.lt.s32.totalorder %v444, 38
      %v724 = vsel %vm723, %v720, %v722
      %v725 = vsel %vm723, %v722, %v720
      %vm726 = vcmp.ge.s32.totalorder %v446, 4294967290
      %vm727 = vcmp.ge.s32.totalorder %v447, 4294967290
      %vm728 = vcmp.lt.s32.totalorder %v446, 10
      %vm729 = vcmp.lt.s32.totalorder %v447, 10
      %vm730 = vmand %vm726, %vm728
      %vm731 = vmand %vm727, %vm729
      %vm732 = vmand %vm730, %vm623
      %vm733 = vmand %vm731, %vm624
      %vm734 = vmand %vm732, %vm627
      %vm735 = vmand %vm733, %vm628
      %v736 = vsel %vm734, 1, 0
      %v737 = vsel %vm735, 1, 0
      %vm738 = vcmp.eq.s32.totalorder %v736, 1
      %vm739 = vcmp.eq.s32.totalorder %v737, 1
      %v740 = vsel %vm738, %v724, 0.0
      %v741 = vsel %vm739, %v725, 0.0
      %742 = vrot.lane.b32.xlu0 %v441, 32
      %v743 = vpop.permute.xlu0 %742
      %744 = vrot.lane.b32.xlu0 %v442, 32
      %v745 = vpop.permute.xlu0 %744
      %vm746 = vcmp.lt.s32.totalorder %v444, 32
      %v747 = vsel %vm746, %v743, %v745
      %v748 = vsel %vm746, %v745, %v743
      %vm749 = vmand %vm730, %vm644
      %vm750 = vmand %vm731, %vm645
      %vm751 = vmand %vm749, %vm648
      %vm752 = vmand %vm750, %vm649
      %v753 = vsel %vm751, 1, 0
      %v754 = vsel %vm752, 1, 0
      %vm755 = vcmp.eq.s32.totalorder %v753, 1
      %vm756 = vcmp.eq.s32.totalorder %v754, 1
      %v757 = vsel %vm755, %v747, 0.0
      %v758 = vsel %vm756, %v748, 0.0
      %759 = vrot.lane.b32.xlu0 %v441, 26
      %v760 = vpop.permute.xlu0 %759
      %761 = vrot.lane.b32.xlu0 %v442, 26
      %v762 = vpop.permute.xlu0 %761
      %vm763 = vcmp.lt.s32.totalorder %v444, 26
      %v764 = vsel %vm763, %v760, %v762
      %v765 = vsel %vm763, %v762, %v760
      %vm766 = vmand %vm730, %vm665
      %vm767 = vmand %vm731, %vm666
      %vm768 = vmand %vm766, %vm669
      %vm769 = vmand %vm767, %vm670
      %v770 = vsel %vm768, 1, 0
      %v771 = vsel %vm769, 1, 0
      %vm772 = vcmp.eq.s32.totalorder %v770, 1
      %vm773 = vcmp.eq.s32.totalorder %v771, 1
      %v774 = vsel %vm772, %v764, 0.0
      %v775 = vsel %vm773, %v765, 0.0
      %v776 = vld [vmem:[%s4] sm:$0xff]
      %vm777 = vcmask 588800
      %v779 = vsel %vm777, %v776, 0
      %781 = vmatprep.subr.mxu0 %v636
      %782 = vmatpush1.msra.mxu0 %v635
      %783 = vmatprep.subr.mxu0 %v657
      %784 = vmatpush1.msra.mxu0 %v656
      %785 = vmatprep.subr.mxu0 %v678
      %786 = vmatpush1.msra.mxu0 %v677
      %787 = vmatprep.subr.mxu0 %v701
      %788 = vmatpush1.msra.mxu0 %v700
      %789 = vmatprep.subr.mxu0 %v442
      %790 = vmatpush1.msra.mxu0 %v441
      %791 = vmatprep.subr.mxu0 %v718
      %792 = vmatpush1.msra.mxu0 %v717
      %793 = vmatprep.subr.mxu0 %v741
      %794 = vmatpush1.msra.mxu0 %v740
      %795 = vmatprep.subr.mxu0 %v758
      %796 = vmatpush1.msra.mxu0 %v757
      %797 = vmatprep.subr.mxu0 %v775
      %798 = vmatpush1.msra.mxu0 %v774
      %799 = vmatprep.subr.mxu0 0.0
      %800 = vmatpush1.msra.mxu0 0.0
      %801 = vmatprep.subr.mxu0 0.0
      %802 = vmatpush1.msra.mxu0 0.0
      %803 = vmatprep.subr.mxu0 0.0
      %804 = vmatpush1.msra.mxu0 0.0
      %805 = vmatprep.subr.mxu0 0.0
      %806 = vmatpush1.msra.mxu0 0.0
      %807 = vmatprep.subr.mxu0 0.0
      %808 = vmatpush1.msra.mxu0 0.0
      %809 = vmatprep.subr.mxu0 0.0
      %810 = vmatpush1.msra.mxu0 0.0
      %811 = vmatprep.subr.mxu0 0.0
      %812 = vmatpush1.msra.mxu0 0.0
      %813 = vmatprep.subr.mxu0 0.0
      %814 = vmatpush1.msra.mxu0 0.0
      %815 = vmatprep.subr.mxu0 0.0
      %816 = vmatpush1.msra.mxu0 0.0
      %817 = vmatprep.subr.mxu0 0.0
      %818 = vmatpush1.msra.mxu0 0.0
      %819 = vmatprep.subr.mxu0 0.0
      %820 = vmatpush1.msra.mxu0 0.0
      %821 = vmatprep.subr.mxu0 0.0
      %822 = vmatpush1.msra.mxu0 0.0
      %823 = vmatprep.subr.mxu0 0.0
      %824 = vmatpush1.msra.mxu0 0.0
      %825 = vmatprep.subr.mxu0 0.0
      %826 = vmatpush1.msra.mxu0 0.0
      %827 = vmatprep.subr.mxu0 0.0
      %828 = vmatpush1.msra.mxu0 0.0
      %829 = vmatprep.subr.mxu0 0.0
      %830 = vmatpush1.msra.mxu0 0.0
      %831 = vmatprep.subr.mxu0 0.0
      %832 = vmatpush1.msra.mxu0 0.0
      %833 = vmatprep.subr.mxu0 0.0
      %834 = vmatpush1.msra.mxu0 0.0
      %835 = vmatprep.subr.mxu0 0.0
      %836 = vmatpush1.msra.mxu0 0.0
      %837 = vmatprep.subr.mxu0 0.0
      %838 = vmatpush1.msra.mxu0 0.0
      %839 = vmatprep.subr.mxu0 0.0
      %840 = vmatpush1.msra.mxu0 0.0
      %841 = vmatprep.subr.mxu0 0.0
      %842 = vmatpush1.msra.mxu0 0.0
      %843 = vmatprep.subr.mxu0 0.0
      %844 = vmatpush1.msra.mxu0 0.0
      %845 = vmatprep.mubr.f32.mxu0 0.0
      %846 = vmatmul.mubr.f32.gmra.mrb[0].mxu0 %v779
      %v847 = vpop.f32.mrb[0].mxu0
      %v848 = vadd.f32 0.0, %v847
      %v849 = vpop.f32.mrb[0].mxu0
      %v850 = vadd.f32 0.0, %v849
      %851 = vdwg.mxu0
      %v852 = vld [vmem:[%s5] sm:$0xff]
      %854 = vset.pattern.permute.xlu0 0
      %855 = vperm.xlu0 %854, %v852
      %v856 = vpop.permute.xlu0 %855
      %v858 = vmul.f32 %v848, %v856
      %v859 = vmul.f32 %v850, %v856
      %v860 = vld [vmem:[%s6] sm:$0xff]
      %862 = vset.pattern.permute.xlu0 0
      %863 = vperm.xlu0 %862, %v860
      %v864 = vpop.permute.xlu0 %863
      %v866 = vadd.f32 %v858, %v864
      %v867 = vadd.f32 %v859, %v864
      %v868 = vmax.f32 %v866, 0.0
      %v869 = vmax.f32 %v867, 0.0
      %870 = vst [vmem:[#allocation2 + $0x20] sm:$0xff] %v868
      %871 = vst [vmem:[#allocation2 + $0x28] sm:$0xff] %v869
      %872 = vrot.lane.b32.xlu0 %v441, 76
      %v873 = vpop.permute.xlu0 %872
      %874 = vrot.lane.b32.xlu0 %v442, 76
      %v875 = vpop.permute.xlu0 %874
      %vm876 = vcmp.lt.s32.totalorder %v444, 76
      %v877 = vsel %vm876, %v873, %v875
      %v878 = vsel %vm876, %v875, %v873
      %vm879 = vcmp.ge.s32.totalorder %v446, 12
      %vm880 = vcmp.ge.s32.totalorder %v447, 12
      %vm881 = vcmp.lt.s32.totalorder %v446, 28
      %vm882 = vcmp.lt.s32.totalorder %v447, 28
      %vm883 = vmand %vm879, %vm881
      %vm884 = vmand %vm880, %vm882
      %vm885 = vcmp.ge.s32.totalorder %v448, 12
      %vm886 = vcmp.ge.s32.totalorder %v449, 12
      %vm887 = vmand %vm883, %vm885
      %vm888 = vmand %vm884, %vm886
      %vm889 = vcmp.lt.s32.totalorder %v448, 28
      %vm890 = vcmp.lt.s32.totalorder %v449, 28
      %vm891 = vmand %vm887, %vm889
      %vm892 = vmand %vm888, %vm890
      %v893 = vsel %vm891, 1, 0
      %v894 = vsel %vm892, 1, 0
      %vm895 = vcmp.eq.s32.totalorder %v893, 1
      %vm896 = vcmp.eq.s32.totalorder %v894, 1
      %v897 = vsel %vm895, %v877, 0.0
      %v898 = vsel %vm896, %v878, 0.0
      %899 = vrot.lane.b32.xlu0 %v441, 64
      %v900 = vpop.permute.xlu0 %899
      %901 = vrot.lane.b32.xlu0 %v442, 64
      %v902 = vpop.permute.xlu0 %901
      %vm903 = vcmp.lt.s32.totalorder %v444, 64
      %v904 = vsel %vm903, %v900, %v902
      %v905 = vsel %vm903, %v902, %v900
      %vm906 = vmand %vm883, %vm644
      %vm907 = vmand %vm884, %vm645
      %vm908 = vmand %vm906, %vm648
      %vm909 = vmand %vm907, %vm649
      %v910 = vsel %vm908, 1, 0
      %v911 = vsel %vm909, 1, 0
      %vm912 = vcmp.eq.s32.totalorder %v910, 1
      %vm913 = vcmp.eq.s32.totalorder %v911, 1
      %v914 = vsel %vm912, %v904, 0.0
      %v915 = vsel %vm913, %v905, 0.0
      %916 = vrot.lane.b32.xlu0 %v441, 52
      %v917 = vpop.permute.xlu0 %916
      %918 = vrot.lane.b32.xlu0 %v442, 52
      %v919 = vpop.permute.xlu0 %918
      %vm920 = vcmp.lt.s32.totalorder %v444, 52
      %v921 = vsel %vm920, %v917, %v919
      %v922 = vsel %vm920, %v919, %v917
      %vm923 = vcmp.ge.s32.totalorder %v448, 4294967284
      %vm924 = vcmp.ge.s32.totalorder %v449, 4294967284
      %vm925 = vmand %vm883, %vm923
      %vm926 = vmand %vm884, %vm924
      %vm927 = vcmp.lt.s32.totalorder %v448, 4
      %vm928 = vcmp.lt.s32.totalorder %v449, 4
      %vm929 = vmand %vm925, %vm927
      %vm930 = vmand %vm926, %vm928
      %v931 = vsel %vm929, 1, 0
      %v932 = vsel %vm930, 1, 0
      %vm933 = vcmp.eq.s32.totalorder %v931, 1
      %vm934 = vcmp.eq.s32.totalorder %v932, 1
      %v935 = vsel %vm933, %v921, 0.0
      %v936 = vsel %vm934, %v922, 0.0
      %937 = vrot.lane.b32.xlu0 %v441, 12
      %v938 = vpop.permute.xlu0 %937
      %939 = vrot.lane.b32.xlu0 %v442, 12
      %v940 = vpop.permute.xlu0 %939
      %vm941 = vcmp.lt.s32.totalorder %v444, 12
      %v942 = vsel %vm941, %v938, %v940
      %v943 = vsel %vm941, %v940, %v938
      %vm944 = vmand %vm690, %vm885
      %vm945 = vmand %vm691, %vm886
      %vm946 = vmand %vm944, %vm889
      %vm947 = vmand %vm945, %vm890
      %v948 = vsel %vm946, 1, 0
      %v949 = vsel %vm947, 1, 0
      %vm950 = vcmp.eq.s32.totalorder %v948, 1
      %vm951 = vcmp.eq.s32.totalorder %v949, 1
      %v952 = vsel %vm950, %v943, 0.0
      %v953 = vsel %vm951, %v942, 0.0
      %954 = vrot.lane.b32.xlu0 %v441, 116
      %v955 = vpop.permute.xlu0 %954
      %956 = vrot.lane.b32.xlu0 %v442, 116
      %v957 = vpop.permute.xlu0 %956
      %vm958 = vcmp.lt.s32.totalorder %v444, 116
      %v959 = vsel %vm958, %v955, %v957
      %v960 = vsel %vm958, %v957, %v955
      %vm961 = vmand %vm690, %vm923
      %vm962 = vmand %vm691, %vm924
      %vm963 = vmand %vm961, %vm927
      %vm964 = vmand %vm962, %vm928
      %v965 = vsel %vm963, 1, 0
      %v966 = vsel %vm964, 1, 0
      %vm967 = vcmp.eq.s32.totalorder %v965, 1
      %vm968 = vcmp.eq.s32.totalorder %v966, 1
      %v969 = vsel %vm967, %v959, 0.0
      %v970 = vsel %vm968, %v960, 0.0
      %vm971 = vcmp.ge.s32.totalorder %v446, 4294967284
      %vm972 = vcmp.ge.s32.totalorder %v447, 4294967284
      %vm973 = vcmp.lt.s32.totalorder %v446, 4
      %vm974 = vcmp.lt.s32.totalorder %v447, 4
      %vm975 = vmand %vm971, %vm973
      %vm976 = vmand %vm972, %vm974
      %vm977 = vmand %vm975, %vm885
      %vm978 = vmand %vm976, %vm886
      %vm979 = vmand %vm977, %vm889
      %vm980 = vmand %vm978, %vm890
      %v981 = vsel %vm979, 1, 0
      %v982 = vsel %vm980, 1, 0
      %vm983 = vcmp.eq.s32.totalorder %v981, 1
      %vm984 = vcmp.eq.s32.totalorder %v982, 1
      %v985 = vsel %vm983, %v878, 0.0
      %v986 = vsel %vm984, %v877, 0.0
      %vm987 = vmand %vm975, %vm644
      %vm988 = vmand %vm976, %vm645
      %vm989 = vmand %vm987, %vm648
      %vm990 = vmand %vm988, %vm649
      %v991 = vsel %vm989, 1, 0
      %v992 = vsel %vm990, 1, 0
      %vm993 = vcmp.eq.s32.totalorder %v991, 1
      %vm994 = vcmp.eq.s32.totalorder %v992, 1
      %v995 = vsel %vm993, %v905, 0.0
      %v996 = vsel %vm994, %v904, 0.0
      %vm997 = vmand %vm975, %vm923
      %vm998 = vmand %vm976, %vm924
      %vm999 = vmand %vm997, %vm927
      %vm1000 = vmand %vm998, %vm928
      %v1001 = vsel %vm999, 1, 0
      %v1002 = vsel %vm1000, 1, 0
      %vm1003 = vcmp.eq.s32.totalorder %v1001, 1
      %vm1004 = vcmp.eq.s32.totalorder %v1002, 1
      %v1005 = vsel %vm1003, %v922, 0.0
      %v1006 = vsel %vm1004, %v921, 0.0
      %v1007 = vld [vmem:[%s7] sm:$0xff]
      %v1009 = vsel %vm777, %v1007, 0
      %1011 = vmatprep.subr.mxu0 %v898
      %1012 = vmatpush1.msra.mxu0 %v897
      %1013 = vmatprep.subr.mxu0 %v915
      %1014 = vmatpush1.msra.mxu0 %v914
      %1015 = vmatprep.subr.mxu0 %v936
      %1016 = vmatpush1.msra.mxu0 %v935
      %1017 = vmatprep.subr.mxu0 %v953
      %1018 = vmatpush1.msra.mxu0 %v952
      %1019 = vmatprep.subr.mxu0 %v442
      %1020 = vmatpush1.msra.mxu0 %v441
      %1021 = vmatprep.subr.mxu0 %v970
      %1022 = vmatpush1.msra.mxu0 %v969
      %1023 = vmatprep.subr.mxu0 %v986
      %1024 = vmatpush1.msra.mxu0 %v985
      %1025 = vmatprep.subr.mxu0 %v996
      %1026 = vmatpush1.msra.mxu0 %v995
      %1027 = vmatprep.subr.mxu0 %v1006
      %1028 = vmatpush1.msra.mxu0 %v1005
      %1029 = vmatprep.subr.mxu0 0.0
      %1030 = vmatpush1.msra.mxu0 0.0
      %1031 = vmatprep.subr.mxu0 0.0
      %1032 = vmatpush1.msra.mxu0 0.0
      %1033 = vmatprep.subr.mxu0 0.0
      %1034 = vmatpush1.msra.mxu0 0.0
      %1035 = vmatprep.subr.mxu0 0.0
      %1036 = vmatpush1.msra.mxu0 0.0
      %1037 = vmatprep.subr.mxu0 0.0
      %1038 = vmatpush1.msra.mxu0 0.0
      %1039 = vmatprep.subr.mxu0 0.0
      %1040 = vmatpush1.msra.mxu0 0.0
      %1041 = vmatprep.subr.mxu0 0.0
      %1042 = vmatpush1.msra.mxu0 0.0
      %1043 = vmatprep.subr.mxu0 0.0
      %1044 = vmatpush1.msra.mxu0 0.0
      %1045 = vmatprep.subr.mxu0 0.0
      %1046 = vmatpush1.msra.mxu0 0.0
      %1047 = vmatprep.subr.mxu0 0.0
      %1048 = vmatpush1.msra.mxu0 0.0
      %1049 = vmatprep.subr.mxu0 0.0
      %1050 = vmatpush1.msra.mxu0 0.0
      %1051 = vmatprep.subr.mxu0 0.0
      %1052 = vmatpush1.msra.mxu0 0.0
      %1053 = vmatprep.subr.mxu0 0.0
      %1054 = vmatpush1.msra.mxu0 0.0
      %1055 = vmatprep.subr.mxu0 0.0
      %1056 = vmatpush1.msra.mxu0 0.0
      %1057 = vmatprep.subr.mxu0 0.0
      %1058 = vmatpush1.msra.mxu0 0.0
      %1059 = vmatprep.subr.mxu0 0.0
      %1060 = vmatpush1.msra.mxu0 0.0
      %1061 = vmatprep.subr.mxu0 0.0
      %1062 = vmatpush1.msra.mxu0 0.0
      %1063 = vmatprep.subr.mxu0 0.0
      %1064 = vmatpush1.msra.mxu0 0.0
      %1065 = vmatprep.subr.mxu0 0.0
      %1066 = vmatpush1.msra.mxu0 0.0
      %1067 = vmatprep.subr.mxu0 0.0
      %1068 = vmatpush1.msra.mxu0 0.0
      %1069 = vmatprep.subr.mxu0 0.0
      %1070 = vmatpush1.msra.mxu0 0.0
      %1071 = vmatprep.subr.mxu0 0.0
      %1072 = vmatpush1.msra.mxu0 0.0
      %1073 = vmatprep.subr.mxu0 0.0
      %1074 = vmatpush1.msra.mxu0 0.0
      %1075 = vmatprep.mubr.f32.mxu0 0.0
      %1076 = vmatmul.mubr.f32.gmra.mrb[0].mxu0 %v1009
      %v1077 = vpop.f32.mrb[0].mxu0
      %v1078 = vadd.f32 0.0, %v1077
      %v1079 = vpop.f32.mrb[0].mxu0
      %v1080 = vadd.f32 0.0, %v1079
      %1081 = vdwg.mxu0
      %v1082 = vld [vmem:[%s8] sm:$0xff]
      %1084 = vset.pattern.permute.xlu0 0
      %1085 = vperm.xlu0 %1084, %v1082
      %v1086 = vpop.permute.xlu0 %1085
      %v1088 = vmul.f32 %v1078, %v1086
      %v1089 = vmul.f32 %v1080, %v1086
      %v1090 = vld [vmem:[%s9] sm:$0xff]
      %1092 = vset.pattern.permute.xlu0 0
      %1093 = vperm.xlu0 %1092, %v1090
      %v1094 = vpop.permute.xlu0 %1093
      %v1096 = vadd.f32 %v1088, %v1094
      %v1097 = vadd.f32 %v1089, %v1094
      %v1098 = vmax.f32 %v1096, 0.0
      %v1099 = vmax.f32 %v1097, 0.0
      %1100 = vst [vmem:[#allocation2 + $0x30] sm:$0xff] %v1098
      %1101 = vst [vmem:[#allocation2 + $0x38] sm:$0xff] %v1099
      %v1102 = vld [vmem:[#allocation2] sm:$0xff]
      %v1103 = vld [vmem:[#allocation2 + $0x8] sm:$0xff]
      %v1104 = vld [vmem:[#allocation2 + $0x10] sm:$0xff]
      %v1105 = vld [vmem:[#allocation2 + $0x18] sm:$0xff]
      %v1106 = vld [vmem:[#allocation2 + $0x20] sm:$0xff]
      %v1107 = vld [vmem:[#allocation2 + $0x28] sm:$0xff]
      %v1108 = vld [vmem:[#allocation2 + $0x30] sm:$0xff]
      %v1109 = vld [vmem:[#allocation2 + $0x38] sm:$0xff]
      %v1110 = vld [vmem:[#allocation2 + $0x40] sm:$0xff]
      %v1111 = vld [vmem:[#allocation2 + $0x48] sm:$0xff]
      %v1112 = vld [vmem:[%s10] sm:$0xff]
      %1113 = vrot.lane.b32.xlu0 %v1102, 17
      %v1114 = vpop.permute.xlu0 %1113
      %1115 = vrot.lane.b32.xlu0 %v1104, 17
      %v1116 = vpop.permute.xlu0 %1115
      %1117 = vrot.lane.b32.xlu0 %v1106, 17
      %v1118 = vpop.permute.xlu0 %1117
      %1119 = vrot.lane.b32.xlu0 %v1108, 17
      %v1120 = vpop.permute.xlu0 %1119
      %1121 = vrot.lane.b32.xlu0 %v1110, 17
      %v1122 = vpop.permute.xlu0 %1121
      %1123 = vrot.lane.b32.xlu0 %v1103, 17
      %v1124 = vpop.permute.xlu0 %1123
      %1125 = vrot.lane.b32.xlu0 %v1105, 17
      %v1126 = vpop.permute.xlu0 %1125
      %1127 = vrot.lane.b32.xlu0 %v1107, 17
      %v1128 = vpop.permute.xlu0 %1127
      %1129 = vrot.lane.b32.xlu0 %v1109, 17
      %v1130 = vpop.permute.xlu0 %1129
      %1131 = vrot.lane.b32.xlu0 %v1111, 17
      %v1132 = vpop.permute.xlu0 %1131
      %vm1133 = vcmp.lt.s32.totalorder %v444, 17
      %v1134 = vsel %vm1133, %v1114, %v1124
      %v1135 = vsel %vm1133, %v1116, %v1126
      %v1136 = vsel %vm1133, %v1118, %v1128
      %v1137 = vsel %vm1133, %v1120, %v1130
      %v1138 = vsel %vm1133, %v1122, %v1132
      %v1139 = vsel %vm1133, %v1124, %v1114
      %v1140 = vsel %vm1133, %v1126, %v1116
      %v1141 = vsel %vm1133, %v1128, %v1118
      %v1142 = vsel %vm1133, %v1130, %v1120
      %v1143 = vsel %vm1133, %v1132, %v1122
      %vm1144 = vcmp.ge.s32.totalorder %v446, 1
      %vm1145 = vcmp.ge.s32.totalorder %v447, 1
      %vm1146 = vcmp.lt.s32.totalorder %v446, 17
      %vm1147 = vcmp.lt.s32.totalorder %v447, 17
      %vm1148 = vmand %vm1144, %vm1146
      %vm1149 = vmand %vm1145, %vm1147
      %vm1150 = vcmp.ge.s32.totalorder %v448, 1
      %vm1151 = vcmp.ge.s32.totalorder %v449, 1
      %vm1152 = vmand %vm1148, %vm1150
      %vm1153 = vmand %vm1149, %vm1151
      %vm1154 = vcmp.lt.s32.totalorder %v448, 17
      %vm1155 = vcmp.lt.s32.totalorder %v449, 17
      %vm1156 = vmand %vm1152, %vm1154
      %vm1157 = vmand %vm1153, %vm1155
      %v1158 = vsel %vm1156, 1, 0
      %v1159 = vsel %vm1157, 1, 0
      %vm1160 = vcmp.eq.s32.totalorder %v1158, 1
      %vm1161 = vcmp.eq.s32.totalorder %v1159, 1
      %v1162 = vsel %vm1160, %v1139, 0.0
      %v1163 = vsel %vm1161, %v1134, 0.0
      %v1164 = vsel %vm1160, %v1140, 0.0
      %v1165 = vsel %vm1161, %v1135, 0.0
      %v1166 = vsel %vm1160, %v1141, 0.0
      %v1167 = vsel %vm1161, %v1136, 0.0
      %v1168 = vsel %vm1160, %v1142, 0.0
      %v1169 = vsel %vm1161, %v1137, 0.0
      %v1170 = vsel %vm1160, %v1143, 0.0
      %v1171 = vsel %vm1161, %v1138, 0.0
      %s1172 = scalar_lea.vmem %s10, 8
      %v1173 = vld [vmem:[%s1172] sm:$0xff]
      %1174 = vrot.lane.b32.xlu0 %v1102, 16
      %v1175 = vpop.permute.xlu0 %1174
      %1176 = vrot.lane.b32.xlu0 %v1104, 16
      %v1177 = vpop.permute.xlu0 %1176
      %1178 = vrot.lane.b32.xlu0 %v1106, 16
      %v1179 = vpop.permute.xlu0 %1178
      %1180 = vrot.lane.b32.xlu0 %v1108, 16
      %v1181 = vpop.permute.xlu0 %1180
      %1182 = vrot.lane.b32.xlu0 %v1110, 16
      %v1183 = vpop.permute.xlu0 %1182
      %1184 = vrot.lane.b32.xlu0 %v1103, 16
      %v1185 = vpop.permute.xlu0 %1184
      %1186 = vrot.lane.b32.xlu0 %v1105, 16
      %v1187 = vpop.permute.xlu0 %1186
      %1188 = vrot.lane.b32.xlu0 %v1107, 16
      %v1189 = vpop.permute.xlu0 %1188
      %1190 = vrot.lane.b32.xlu0 %v1109, 16
      %v1191 = vpop.permute.xlu0 %1190
      %1192 = vrot.lane.b32.xlu0 %v1111, 16
      %v1193 = vpop.permute.xlu0 %1192
      %vm1194 = vcmp.lt.s32.totalorder %v444, 16
      %v1195 = vsel %vm1194, %v1175, %v1185
      %v1196 = vsel %vm1194, %v1177, %v1187
      %v1197 = vsel %vm1194, %v1179, %v1189
      %v1198 = vsel %vm1194, %v1181, %v1191
      %v1199 = vsel %vm1194, %v1183, %v1193
      %v1200 = vsel %vm1194, %v1185, %v1175
      %v1201 = vsel %vm1194, %v1187, %v1177
      %v1202 = vsel %vm1194, %v1189, %v1179
      %v1203 = vsel %vm1194, %v1191, %v1181
      %v1204 = vsel %vm1194, %v1193, %v1183
      %vm1205 = vmand %vm1148, %vm644
      %vm1206 = vmand %vm1149, %vm645
      %vm1207 = vmand %vm1205, %vm648
      %vm1208 = vmand %vm1206, %vm649
      %v1209 = vsel %vm1207, 1, 0
      %v1210 = vsel %vm1208, 1, 0
      %vm1211 = vcmp.eq.s32.totalorder %v1209, 1
      %vm1212 = vcmp.eq.s32.totalorder %v1210, 1
      %v1213 = vsel %vm1211, %v1200, 0.0
      %v1214 = vsel %vm1212, %v1195, 0.0
      %v1215 = vsel %vm1211, %v1201, 0.0
      %v1216 = vsel %vm1212, %v1196, 0.0
      %v1217 = vsel %vm1211, %v1202, 0.0
      %v1218 = vsel %vm1212, %v1197, 0.0
      %v1219 = vsel %vm1211, %v1203, 0.0
      %v1220 = vsel %vm1212, %v1198, 0.0
      %v1221 = vsel %vm1211, %v1204, 0.0
      %v1222 = vsel %vm1212, %v1199, 0.0
      %vm1223 = vcmask 326656
      %v1225 = vsel %vm1223, %v1173, 0
      %1227 = vmatprep.subr.mxu0 %v1214
      %1228 = vmatpush1.msra.mxu0 %v1213
      %1229 = vmatprep.subr.mxu0 %v1216
      %1230 = vmatpush1.msra.mxu0 %v1215
      %1231 = vmatprep.subr.mxu0 %v1218
      %1232 = vmatpush1.msra.mxu0 %v1217
      %1233 = vmatprep.subr.mxu0 %v1220
      %1234 = vmatpush1.msra.mxu0 %v1219
      %1235 = vmatprep.subr.mxu0 %v1222
      %1236 = vmatpush1.msra.mxu0 %v1221
      %1237 = vmatprep.subr.mxu0 0.0
      %1238 = vmatpush1.msra.mxu0 0.0
      %1239 = vmatprep.subr.mxu0 0.0
      %1240 = vmatpush1.msra.mxu0 0.0
      %1241 = vmatprep.subr.mxu0 0.0
      %1242 = vmatpush1.msra.mxu0 0.0
      %1243 = vmatprep.subr.mxu0 0.0
      %1244 = vmatpush1.msra.mxu0 0.0
      %1245 = vmatprep.subr.mxu0 0.0
      %1246 = vmatpush1.msra.mxu0 0.0
      %1247 = vmatprep.subr.mxu0 0.0
      %1248 = vmatpush1.msra.mxu0 0.0
      %1249 = vmatprep.subr.mxu0 0.0
      %1250 = vmatpush1.msra.mxu0 0.0
      %1251 = vmatprep.subr.mxu0 0.0
      %1252 = vmatpush1.msra.mxu0 0.0
      %1253 = vmatprep.subr.mxu0 0.0
      %1254 = vmatpush1.msra.mxu0 0.0
      %1255 = vmatprep.subr.mxu0 0.0
      %1256 = vmatpush1.msra.mxu0 0.0
      %1257 = vmatprep.subr.mxu0 0.0
      %1258 = vmatpush1.msra.mxu0 0.0
      %1259 = vmatprep.subr.mxu0 0.0
      %1260 = vmatpush1.msra.mxu0 0.0
      %1261 = vmatprep.subr.mxu0 0.0
      %1262 = vmatpush1.msra.mxu0 0.0
      %1263 = vmatprep.subr.mxu0 0.0
      %1264 = vmatpush1.msra.mxu0 0.0
      %1265 = vmatprep.subr.mxu0 0.0
      %1266 = vmatpush1.msra.mxu0 0.0
      %1267 = vmatprep.subr.mxu0 0.0
      %1268 = vmatpush1.msra.mxu0 0.0
      %1269 = vmatprep.subr.mxu0 0.0
      %1270 = vmatpush1.msra.mxu0 0.0
      %1271 = vmatprep.subr.mxu0 0.0
      %1272 = vmatpush1.msra.mxu0 0.0
      %1273 = vmatprep.subr.mxu0 0.0
      %1274 = vmatpush1.msra.mxu0 0.0
      %1275 = vmatprep.subr.mxu0 0.0
      %1276 = vmatpush1.msra.mxu0 0.0
      %1277 = vmatprep.subr.mxu0 0.0
      %1278 = vmatpush1.msra.mxu0 0.0
      %1279 = vmatprep.subr.mxu0 0.0
      %1280 = vmatpush1.msra.mxu0 0.0
      %1281 = vmatprep.subr.mxu0 0.0
      %1282 = vmatpush1.msra.mxu0 0.0
      %1283 = vmatprep.subr.mxu0 0.0
      %1284 = vmatpush1.msra.mxu0 0.0
      %1285 = vmatprep.subr.mxu0 0.0
      %1286 = vmatpush1.msra.mxu0 0.0
      %1287 = vmatprep.subr.mxu0 0.0
      %1288 = vmatpush1.msra.mxu0 0.0
      %1289 = vmatprep.subr.mxu0 0.0
      %1290 = vmatpush1.msra.mxu0 0.0
      %1291 = vmatprep.mubr.f32.mxu0 0.0
      %1292 = vmatmul.mubr.f32.gmra.mrb[0].mxu0 %v1225
      %v1293 = vpop.f32.mrb[0].mxu0
      %v1294 = vadd.f32 0.0, %v1293
      %v1295 = vpop.f32.mrb[0].mxu0
      %v1296 = vadd.f32 0.0, %v1295
      %1297 = vdwg.mxu0
      %v1299 = vsel %vm1223, %v1112, 0
      %1301 = vmatprep.subr.mxu0 %v1163
      %1302 = vmatpush1.msra.mxu0 %v1162
      %1303 = vmatprep.subr.mxu0 %v1165
      %1304 = vmatpush1.msra.mxu0 %v1164
      %1305 = vmatprep.subr.mxu0 %v1167
      %1306 = vmatpush1.msra.mxu0 %v1166
      %1307 = vmatprep.subr.mxu0 %v1169
      %1308 = vmatpush1.msra.mxu0 %v1168
      %1309 = vmatprep.subr.mxu0 %v1171
      %1310 = vmatpush1.msra.mxu0 %v1170
      %1311 = vmatprep.subr.mxu0 0.0
      %1312 = vmatpush1.msra.mxu0 0.0
      %1313 = vmatprep.subr.mxu0 0.0
      %1314 = vmatpush1.msra.mxu0 0.0
      %1315 = vmatprep.subr.mxu0 0.0
      %1316 = vmatpush1.msra.mxu0 0.0
      %1317 = vmatprep.subr.mxu0 0.0
      %1318 = vmatpush1.msra.mxu0 0.0
      %1319 = vmatprep.subr.mxu0 0.0
      %1320 = vmatpush1.msra.mxu0 0.0
      %1321 = vmatprep.subr.mxu0 0.0
      %1322 = vmatpush1.msra.mxu0 0.0
      %1323 = vmatprep.subr.mxu0 0.0
      %1324 = vmatpush1.msra.mxu0 0.0
      %1325 = vmatprep.subr.mxu0 0.0
      %1326 = vmatpush1.msra.mxu0 0.0
      %1327 = vmatprep.subr.mxu0 0.0
      %1328 = vmatpush1.msra.mxu0 0.0
      %1329 = vmatprep.subr.mxu0 0.0
      %1330 = vmatpush1.msra.mxu0 0.0
      %1331 = vmatprep.subr.mxu0 0.0
      %1332 = vmatpush1.msra.mxu0 0.0
      %1333 = vmatprep.subr.mxu0 0.0
      %1334 = vmatpush1.msra.mxu0 0.0
      %1335 = vmatprep.subr.mxu0 0.0
      %1336 = vmatpush1.msra.mxu0 0.0
      %1337 = vmatprep.subr.mxu0 0.0
      %1338 = vmatpush1.msra.mxu0 0.0
      %1339 = vmatprep.subr.mxu0 0.0
      %1340 = vmatpush1.msra.mxu0 0.0
      %1341 = vmatprep.subr.mxu0 0.0
      %1342 = vmatpush1.msra.mxu0 0.0
      %1343 = vmatprep.subr.mxu0 0.0
      %1344 = vmatpush1.msra.mxu0 0.0
      %1345 = vmatprep.subr.mxu0 0.0
      %1346 = vmatpush1.msra.mxu0 0.0
      %1347 = vmatprep.subr.mxu0 0.0
      %1348 = vmatpush1.msra.mxu0 0.0
      %1349 = vmatprep.subr.mxu0 0.0
      %1350 = vmatpush1.msra.mxu0 0.0
      %1351 = vmatprep.subr.mxu0 0.0
      %1352 = vmatpush1.msra.mxu0 0.0
      %1353 = vmatprep.subr.mxu0 0.0
      %1354 = vmatpush1.msra.mxu0 0.0
      %1355 = vmatprep.subr.mxu0 0.0
      %1356 = vmatpush1.msra.mxu0 0.0
      %1357 = vmatprep.subr.mxu0 0.0
      %1358 = vmatpush1.msra.mxu0 0.0
      %1359 = vmatprep.subr.mxu0 0.0
      %1360 = vmatpush1.msra.mxu0 0.0
      %1361 = vmatprep.subr.mxu0 0.0
      %1362 = vmatpush1.msra.mxu0 0.0
      %1363 = vmatprep.subr.mxu0 0.0
      %1364 = vmatpush1.msra.mxu0 0.0
      %1365 = vmatprep.mubr.f32.mxu0 0.0
      %1366 = vmatmul.mubr.f32.gmra.mrb[0].mxu0 %v1299
      %v1367 = vpop.f32.mrb[0].mxu0
      %v1368 = vadd.f32 %v1294, %v1367
      %v1369 = vpop.f32.mrb[0].mxu0
      %v1370 = vadd.f32 %v1296, %v1369
      %1371 = vdwg.mxu0
      %s1372 = scalar_lea.vmem %s10, 16
      %v1373 = vld [vmem:[%s1372] sm:$0xff]
      %1374 = vrot.lane.b32.xlu0 %v1102, 15
      %v1375 = vpop.permute.xlu0 %1374
      %1376 = vrot.lane.b32.xlu0 %v1104, 15
      %v1377 = vpop.permute.xlu0 %1376
      %1378 = vrot.lane.b32.xlu0 %v1106, 15
      %v1379 = vpop.permute.xlu0 %1378
      %1380 = vrot.lane.b32.xlu0 %v1108, 15
      %v1381 = vpop.permute.xlu0 %1380
      %1382 = vrot.lane.b32.xlu0 %v1110, 15
      %v1383 = vpop.permute.xlu0 %1382
      %1384 = vrot.lane.b32.xlu0 %v1103, 15
      %v1385 = vpop.permute.xlu0 %1384
      %1386 = vrot.lane.b32.xlu0 %v1105, 15
      %v1387 = vpop.permute.xlu0 %1386
      %1388 = vrot.lane.b32.xlu0 %v1107, 15
      %v1389 = vpop.permute.xlu0 %1388
      %1390 = vrot.lane.b32.xlu0 %v1109, 15
      %v1391 = vpop.permute.xlu0 %1390
      %1392 = vrot.lane.b32.xlu0 %v1111, 15
      %v1393 = vpop.permute.xlu0 %1392
      %vm1394 = vcmp.lt.s32.totalorder %v444, 15
      %v1395 = vsel %vm1394, %v1375, %v1385
      %v1396 = vsel %vm1394, %v1377, %v1387
      %v1397 = vsel %vm1394, %v1379, %v1389
      %v1398 = vsel %vm1394, %v1381, %v1391
      %v1399 = vsel %vm1394, %v1383, %v1393
      %v1400 = vsel %vm1394, %v1385, %v1375
      %v1401 = vsel %vm1394, %v1387, %v1377
      %v1402 = vsel %vm1394, %v1389, %v1379
      %v1403 = vsel %vm1394, %v1391, %v1381
      %v1404 = vsel %vm1394, %v1393, %v1383
      %vm1405 = vcmp.ge.s32.totalorder %v448, 4294967295
      %vm1406 = vcmp.ge.s32.totalorder %v449, 4294967295
      %vm1407 = vmand %vm1148, %vm1405
      %vm1408 = vmand %vm1149, %vm1406
      %vm1409 = vcmp.lt.s32.totalorder %v448, 15
      %vm1410 = vcmp.lt.s32.totalorder %v449, 15
      %vm1411 = vmand %vm1407, %vm1409
      %vm1412 = vmand %vm1408, %vm1410
      %v1413 = vsel %vm1411, 1, 0
      %v1414 = vsel %vm1412, 1, 0
      %vm1415 = vcmp.eq.s32.totalorder %v1413, 1
      %vm1416 = vcmp.eq.s32.totalorder %v1414, 1
      %v1417 = vsel %vm1415, %v1400, 0.0
      %v1418 = vsel %vm1416, %v1395, 0.0
      %v1419 = vsel %vm1415, %v1401, 0.0
      %v1420 = vsel %vm1416, %v1396, 0.0
      %v1421 = vsel %vm1415, %v1402, 0.0
      %v1422 = vsel %vm1416, %v1397, 0.0
      %v1423 = vsel %vm1415, %v1403, 0.0
      %v1424 = vsel %vm1416, %v1398, 0.0
      %v1425 = vsel %vm1415, %v1404, 0.0
      %v1426 = vsel %vm1416, %v1399, 0.0
      %v1428 = vsel %vm1223, %v1373, 0
      %1430 = vmatprep.subr.mxu0 %v1418
      %1431 = vmatpush1.msra.mxu0 %v1417
      %1432 = vmatprep.subr.mxu0 %v1420
      %1433 = vmatpush1.msra.mxu0 %v1419
      %1434 = vmatprep.subr.mxu0 %v1422
      %1435 = vmatpush1.msra.mxu0 %v1421
      %1436 = vmatprep.subr.mxu0 %v1424
      %1437 = vmatpush1.msra.mxu0 %v1423
      %1438 = vmatprep.subr.mxu0 %v1426
      %1439 = vmatpush1.msra.mxu0 %v1425
      %1440 = vmatprep.subr.mxu0 0.0
      %1441 = vmatpush1.msra.mxu0 0.0
      %1442 = vmatprep.subr.mxu0 0.0
      %1443 = vmatpush1.msra.mxu0 0.0
      %1444 = vmatprep.subr.mxu0 0.0
      %1445 = vmatpush1.msra.mxu0 0.0
      %1446 = vmatprep.subr.mxu0 0.0
      %1447 = vmatpush1.msra.mxu0 0.0
      %1448 = vmatprep.subr.mxu0 0.0
      %1449 = vmatpush1.msra.mxu0 0.0
      %1450 = vmatprep.subr.mxu0 0.0
      %1451 = vmatpush1.msra.mxu0 0.0
      %1452 = vmatprep.subr.mxu0 0.0
      %1453 = vmatpush1.msra.mxu0 0.0
      %1454 = vmatprep.subr.mxu0 0.0
      %1455 = vmatpush1.msra.mxu0 0.0
      %1456 = vmatprep.subr.mxu0 0.0
      %1457 = vmatpush1.msra.mxu0 0.0
      %1458 = vmatprep.subr.mxu0 0.0
      %1459 = vmatpush1.msra.mxu0 0.0
      %1460 = vmatprep.subr.mxu0 0.0
      %1461 = vmatpush1.msra.mxu0 0.0
      %1462 = vmatprep.subr.mxu0 0.0
      %1463 = vmatpush1.msra.mxu0 0.0
      %1464 = vmatprep.subr.mxu0 0.0
      %1465 = vmatpush1.msra.mxu0 0.0
      %1466 = vmatprep.subr.mxu0 0.0
      %1467 = vmatpush1.msra.mxu0 0.0
      %1468 = vmatprep.subr.mxu0 0.0
      %1469 = vmatpush1.msra.mxu0 0.0
      %1470 = vmatprep.subr.mxu0 0.0
      %1471 = vmatpush1.msra.mxu0 0.0
      %1472 = vmatprep.subr.mxu0 0.0
      %1473 = vmatpush1.msra.mxu0 0.0
      %1474 = vmatprep.subr.mxu0 0.0
      %1475 = vmatpush1.msra.mxu0 0.0
      %1476 = vmatprep.subr.mxu0 0.0
      %1477 = vmatpush1.msra.mxu0 0.0
      %1478 = vmatprep.subr.mxu0 0.0
      %1479 = vmatpush1.msra.mxu0 0.0
      %1480 = vmatprep.subr.mxu0 0.0
      %1481 = vmatpush1.msra.mxu0 0.0
      %1482 = vmatprep.subr.mxu0 0.0
      %1483 = vmatpush1.msra.mxu0 0.0
      %1484 = vmatprep.subr.mxu0 0.0
      %1485 = vmatpush1.msra.mxu0 0.0
      %1486 = vmatprep.subr.mxu0 0.0
      %1487 = vmatpush1.msra.mxu0 0.0
      %1488 = vmatprep.subr.mxu0 0.0
      %1489 = vmatpush1.msra.mxu0 0.0
      %1490 = vmatprep.subr.mxu0 0.0
      %1491 = vmatpush1.msra.mxu0 0.0
      %1492 = vmatprep.subr.mxu0 0.0
      %1493 = vmatpush1.msra.mxu0 0.0
      %1494 = vmatprep.mubr.f32.mxu0 0.0
      %1495 = vmatmul.mubr.f32.gmra.mrb[0].mxu0 %v1428
      %v1496 = vpop.f32.mrb[0].mxu0
      %v1497 = vadd.f32 0.0, %v1496
      %v1498 = vpop.f32.mrb[0].mxu0
      %v1499 = vadd.f32 0.0, %v1498
      %1500 = vdwg.mxu0
      %v1501 = vadd.f32 %v1368, %v1497
      %v1502 = vadd.f32 %v1370, %v1499
      %s1503 = scalar_lea.vmem %s10, 24
      %v1504 = vld [vmem:[%s1503] sm:$0xff]
      %1505 = vrot.lane.b32.xlu0 %v1102, 1
      %v1506 = vpop.permute.xlu0 %1505
      %1507 = vrot.lane.b32.xlu0 %v1104, 1
      %v1508 = vpop.permute.xlu0 %1507
      %1509 = vrot.lane.b32.xlu0 %v1106, 1
      %v1510 = vpop.permute.xlu0 %1509
      %1511 = vrot.lane.b32.xlu0 %v1108, 1
      %v1512 = vpop.permute.xlu0 %1511
      %1513 = vrot.lane.b32.xlu0 %v1110, 1
      %v1514 = vpop.permute.xlu0 %1513
      %1515 = vrot.lane.b32.xlu0 %v1103, 1
      %v1516 = vpop.permute.xlu0 %1515
      %1517 = vrot.lane.b32.xlu0 %v1105, 1
      %v1518 = vpop.permute.xlu0 %1517
      %1519 = vrot.lane.b32.xlu0 %v1107, 1
      %v1520 = vpop.permute.xlu0 %1519
      %1521 = vrot.lane.b32.xlu0 %v1109, 1
      %v1522 = vpop.permute.xlu0 %1521
      %1523 = vrot.lane.b32.xlu0 %v1111, 1
      %v1524 = vpop.permute.xlu0 %1523
      %vm1525 = vcmp.lt.s32.totalorder %v444, 1
      %v1526 = vsel %vm1525, %v1506, %v1516
      %v1527 = vsel %vm1525, %v1508, %v1518
      %v1528 = vsel %vm1525, %v1510, %v1520
      %v1529 = vsel %vm1525, %v1512, %v1522
      %v1530 = vsel %vm1525, %v1514, %v1524
      %v1531 = vsel %vm1525, %v1516, %v1506
      %v1532 = vsel %vm1525, %v1518, %v1508
      %v1533 = vsel %vm1525, %v1520, %v1510
      %v1534 = vsel %vm1525, %v1522, %v1512
      %v1535 = vsel %vm1525, %v1524, %v1514
      %vm1536 = vmand %vm690, %vm1150
      %vm1537 = vmand %vm691, %vm1151
      %vm1538 = vmand %vm1536, %vm1154
      %vm1539 = vmand %vm1537, %vm1155
      %v1540 = vsel %vm1538, 1, 0
      %v1541 = vsel %vm1539, 1, 0
      %vm1542 = vcmp.eq.s32.totalorder %v1540, 1
      %vm1543 = vcmp.eq.s32.totalorder %v1541, 1
      %v1544 = vsel %vm1542, %v1531, 0.0
      %v1545 = vsel %vm1543, %v1526, 0.0
      %v1546 = vsel %vm1542, %v1532, 0.0
      %v1547 = vsel %vm1543, %v1527, 0.0
      %v1548 = vsel %vm1542, %v1533, 0.0
      %v1549 = vsel %vm1543, %v1528, 0.0
      %v1550 = vsel %vm1542, %v1534, 0.0
      %v1551 = vsel %vm1543, %v1529, 0.0
      %v1552 = vsel %vm1542, %v1535, 0.0
      %v1553 = vsel %vm1543, %v1530, 0.0
      %v1555 = vsel %vm1223, %v1504, 0
      %1557 = vmatprep.subr.mxu0 %v1545
      %1558 = vmatpush1.msra.mxu0 %v1544
      %1559 = vmatprep.subr.mxu0 %v1547
      %1560 = vmatpush1.msra.mxu0 %v1546
      %1561 = vmatprep.subr.mxu0 %v1549
      %1562 = vmatpush1.msra.mxu0 %v1548
      %1563 = vmatprep.subr.mxu0 %v1551
      %1564 = vmatpush1.msra.mxu0 %v1550
      %1565 = vmatprep.subr.mxu0 %v1553
      %1566 = vmatpush1.msra.mxu0 %v1552
      %1567 = vmatprep.subr.mxu0 0.0
      %1568 = vmatpush1.msra.mxu0 0.0
      %1569 = vmatprep.subr.mxu0 0.0
      %1570 = vmatpush1.msra.mxu0 0.0
      %1571 = vmatprep.subr.mxu0 0.0
      %1572 = vmatpush1.msra.mxu0 0.0
      %1573 = vmatprep.subr.mxu0 0.0
      %1574 = vmatpush1.msra.mxu0 0.0
      %1575 = vmatprep.subr.mxu0 0.0
      %1576 = vmatpush1.msra.mxu0 0.0
      %1577 = vmatprep.subr.mxu0 0.0
      %1578 = vmatpush1.msra.mxu0 0.0
      %1579 = vmatprep.subr.mxu0 0.0
      %1580 = vmatpush1.msra.mxu0 0.0
      %1581 = vmatprep.subr.mxu0 0.0
      %1582 = vmatpush1.msra.mxu0 0.0
      %1583 = vmatprep.subr.mxu0 0.0
      %1584 = vmatpush1.msra.mxu0 0.0
      %1585 = vmatprep.subr.mxu0 0.0
      %1586 = vmatpush1.msra.mxu0 0.0
      %1587 = vmatprep.subr.mxu0 0.0
      %1588 = vmatpush1.msra.mxu0 0.0
      %1589 = vmatprep.subr.mxu0 0.0
      %1590 = vmatpush1.msra.mxu0 0.0
      %1591 = vmatprep.subr.mxu0 0.0
      %1592 = vmatpush1.msra.mxu0 0.0
      %1593 = vmatprep.subr.mxu0 0.0
      %1594 = vmatpush1.msra.mxu0 0.0
      %1595 = vmatprep.subr.mxu0 0.0
      %1596 = vmatpush1.msra.mxu0 0.0
      %1597 = vmatprep.subr.mxu0 0.0
      %1598 = vmatpush1.msra.mxu0 0.0
      %1599 = vmatprep.subr.mxu0 0.0
      %1600 = vmatpush1.msra.mxu0 0.0
      %1601 = vmatprep.subr.mxu0 0.0
      %1602 = vmatpush1.msra.mxu0 0.0
      %1603 = vmatprep.subr.mxu0 0.0
      %1604 = vmatpush1.msra.mxu0 0.0
      %1605 = vmatprep.subr.mxu0 0.0
      %1606 = vmatpush1.msra.mxu0 0.0
      %1607 = vmatprep.subr.mxu0 0.0
      %1608 = vmatpush1.msra.mxu0 0.0
      %1609 = vmatprep.subr.mxu0 0.0
      %1610 = vmatpush1.msra.mxu0 0.0
      %1611 = vmatprep.subr.mxu0 0.0
      %1612 = vmatpush1.msra.mxu0 0.0
      %1613 = vmatprep.subr.mxu0 0.0
      %1614 = vmatpush1.msra.mxu0 0.0
      %1615 = vmatprep.subr.mxu0 0.0
      %1616 = vmatpush1.msra.mxu0 0.0
      %1617 = vmatprep.subr.mxu0 0.0
      %1618 = vmatpush1.msra.mxu0 0.0
      %1619 = vmatprep.subr.mxu0 0.0
      %1620 = vmatpush1.msra.mxu0 0.0
      %1621 = vmatprep.mubr.f32.mxu0 0.0
      %1622 = vmatmul.mubr.f32.gmra.mrb[0].mxu0 %v1555
      %v1623 = vpop.f32.mrb[0].mxu0
      %v1624 = vadd.f32 0.0, %v1623
      %v1625 = vpop.f32.mrb[0].mxu0
      %v1626 = vadd.f32 0.0, %v1625
      %1627 = vdwg.mxu0
      %v1628 = vadd.f32 %v1501, %v1624
      %v1629 = vadd.f32 %v1502, %v1626
      %s1630 = scalar_lea.vmem %s10, 32
      %v1631 = vld [vmem:[%s1630] sm:$0xff]
      %v1633 = vsel %vm1223, %v1631, 0
      %1635 = vmatprep.subr.mxu0 %v1103
      %1636 = vmatpush1.msra.mxu0 %v1102
      %1637 = vmatprep.subr.mxu0 %v1105
      %1638 = vmatpush1.msra.mxu0 %v1104
      %1639 = vmatprep.subr.mxu0 %v1107
      %1640 = vmatpush1.msra.mxu0 %v1106
      %1641 = vmatprep.subr.mxu0 %v1109
      %1642 = vmatpush1.msra.mxu0 %v1108
      %1643 = vmatprep.subr.mxu0 %v1111
      %1644 = vmatpush1.msra.mxu0 %v1110
      %1645 = vmatprep.subr.mxu0 0.0
      %1646 = vmatpush1.msra.mxu0 0.0
      %1647 = vmatprep.subr.mxu0 0.0
      %1648 = vmatpush1.msra.mxu0 0.0
      %1649 = vmatprep.subr.mxu0 0.0
      %1650 = vmatpush1.msra.mxu0 0.0
      %1651 = vmatprep.subr.mxu0 0.0
      %1652 = vmatpush1.msra.mxu0 0.0
      %1653 = vmatprep.subr.mxu0 0.0
      %1654 = vmatpush1.msra.mxu0 0.0
      %1655 = vmatprep.subr.mxu0 0.0
      %1656 = vmatpush1.msra.mxu0 0.0
      %1657 = vmatprep.subr.mxu0 0.0
      %1658 = vmatpush1.msra.mxu0 0.0
      %1659 = vmatprep.subr.mxu0 0.0
      %1660 = vmatpush1.msra.mxu0 0.0
      %1661 = vmatprep.subr.mxu0 0.0
      %1662 = vmatpush1.msra.mxu0 0.0
      %1663 = vmatprep.subr.mxu0 0.0
      %1664 = vmatpush1.msra.mxu0 0.0
      %1665 = vmatprep.subr.mxu0 0.0
      %1666 = vmatpush1.msra.mxu0 0.0
      %1667 = vmatprep.subr.mxu0 0.0
      %1668 = vmatpush1.msra.mxu0 0.0
      %1669 = vmatprep.subr.mxu0 0.0
      %1670 = vmatpush1.msra.mxu0 0.0
      %1671 = vmatprep.subr.mxu0 0.0
      %1672 = vmatpush1.msra.mxu0 0.0
      %1673 = vmatprep.subr.mxu0 0.0
      %1674 = vmatpush1.msra.mxu0 0.0
      %1675 = vmatprep.subr.mxu0 0.0
      %1676 = vmatpush1.msra.mxu0 0.0
      %1677 = vmatprep.subr.mxu0 0.0
      %1678 = vmatpush1.msra.mxu0 0.0
      %1679 = vmatprep.subr.mxu0 0.0
      %1680 = vmatpush1.msra.mxu0 0.0
      %1681 = vmatprep.subr.mxu0 0.0
      %1682 = vmatpush1.msra.mxu0 0.0
      %1683 = vmatprep.subr.mxu0 0.0
      %1684 = vmatpush1.msra.mxu0 0.0
      %1685 = vmatprep.subr.mxu0 0.0
      %1686 = vmatpush1.msra.mxu0 0.0
      %1687 = vmatprep.subr.mxu0 0.0
      %1688 = vmatpush1.msra.mxu0 0.0
      %1689 = vmatprep.subr.mxu0 0.0
      %1690 = vmatpush1.msra.mxu0 0.0
      %1691 = vmatprep.subr.mxu0 0.0
      %1692 = vmatpush1.msra.mxu0 0.0
      %1693 = vmatprep.subr.mxu0 0.0
      %1694 = vmatpush1.msra.mxu0 0.0
      %1695 = vmatprep.subr.mxu0 0.0
      %1696 = vmatpush1.msra.mxu0 0.0
      %1697 = vmatprep.subr.mxu0 0.0
      %1698 = vmatpush1.msra.mxu0 0.0
      %1699 = vmatprep.mubr.f32.mxu0 0.0
      %1700 = vmatmul.mubr.f32.gmra.mrb[0].mxu0 %v1633
      %v1701 = vpop.f32.mrb[0].mxu0
      %v1702 = vadd.f32 0.0, %v1701
      %v1703 = vpop.f32.mrb[0].mxu0
      %v1704 = vadd.f32 0.0, %v1703
      %1705 = vdwg.mxu0
      %v1706 = vadd.f32 %v1628, %v1702
      %v1707 = vadd.f32 %v1629, %v1704
      %s1708 = scalar_lea.vmem %s10, 40
      %v1709 = vld [vmem:[%s1708] sm:$0xff]
      %1710 = vrot.lane.b32.xlu0 %v1102, 127
      %v1711 = vpop.permute.xlu0 %1710
      %1712 = vrot.lane.b32.xlu0 %v1104, 127
      %v1713 = vpop.permute.xlu0 %1712
      %1714 = vrot.lane.b32.xlu0 %v1106, 127
      %v1715 = vpop.permute.xlu0 %1714
      %1716 = vrot.lane.b32.xlu0 %v1108, 127
      %v1717 = vpop.permute.xlu0 %1716
      %1718 = vrot.lane.b32.xlu0 %v1110, 127
      %v1719 = vpop.permute.xlu0 %1718
      %1720 = vrot.lane.b32.xlu0 %v1103, 127
      %v1721 = vpop.permute.xlu0 %1720
      %1722 = vrot.lane.b32.xlu0 %v1105, 127
      %v1723 = vpop.permute.xlu0 %1722
      %1724 = vrot.lane.b32.xlu0 %v1107, 127
      %v1725 = vpop.permute.xlu0 %1724
      %1726 = vrot.lane.b32.xlu0 %v1109, 127
      %v1727 = vpop.permute.xlu0 %1726
      %1728 = vrot.lane.b32.xlu0 %v1111, 127
      %v1729 = vpop.permute.xlu0 %1728
      %vm1730 = vcmp.lt.s32.totalorder %v444, 127
      %v1731 = vsel %vm1730, %v1711, %v1721
      %v1732 = vsel %vm1730, %v1713, %v1723
      %v1733 = vsel %vm1730, %v1715, %v1725
      %v1734 = vsel %vm1730, %v1717, %v1727
      %v1735 = vsel %vm1730, %v1719, %v1729
      %v1736 = vsel %vm1730, %v1721, %v1711
      %v1737 = vsel %vm1730, %v1723, %v1713
      %v1738 = vsel %vm1730, %v1725, %v1715
      %v1739 = vsel %vm1730, %v1727, %v1717
      %v1740 = vsel %vm1730, %v1729, %v1719
      %vm1741 = vmand %vm690, %vm1405
      %vm1742 = vmand %vm691, %vm1406
      %vm1743 = vmand %vm1741, %vm1409
      %vm1744 = vmand %vm1742, %vm1410
      %v1745 = vsel %vm1743, 1, 0
      %v1746 = vsel %vm1744, 1, 0
      %vm1747 = vcmp.eq.s32.totalorder %v1745, 1
      %vm1748 = vcmp.eq.s32.totalorder %v1746, 1
      %v1749 = vsel %vm1747, %v1731, 0.0
      %v1750 = vsel %vm1748, %v1736, 0.0
      %v1751 = vsel %vm1747, %v1732, 0.0
      %v1752 = vsel %vm1748, %v1737, 0.0
      %v1753 = vsel %vm1747, %v1733, 0.0
      %v1754 = vsel %vm1748, %v1738, 0.0
      %v1755 = vsel %vm1747, %v1734, 0.0
      %v1756 = vsel %vm1748, %v1739, 0.0
      %v1757 = vsel %vm1747, %v1735, 0.0
      %v1758 = vsel %vm1748, %v1740, 0.0
      %v1760 = vsel %vm1223, %v1709, 0
      %1762 = vmatprep.subr.mxu0 %v1750
      %1763 = vmatpush1.msra.mxu0 %v1749
      %1764 = vmatprep.subr.mxu0 %v1752
      %1765 = vmatpush1.msra.mxu0 %v1751
      %1766 = vmatprep.subr.mxu0 %v1754
      %1767 = vmatpush1.msra.mxu0 %v1753
      %1768 = vmatprep.subr.mxu0 %v1756
      %1769 = vmatpush1.msra.mxu0 %v1755
      %1770 = vmatprep.subr.mxu0 %v1758
      %1771 = vmatpush1.msra.mxu0 %v1757
      %1772 = vmatprep.subr.mxu0 0.0
      %1773 = vmatpush1.msra.mxu0 0.0
      %1774 = vmatprep.subr.mxu0 0.0
      %1775 = vmatpush1.msra.mxu0 0.0
      %1776 = vmatprep.subr.mxu0 0.0
      %1777 = vmatpush1.msra.mxu0 0.0
      %1778 = vmatprep.subr.mxu0 0.0
      %1779 = vmatpush1.msra.mxu0 0.0
      %1780 = vmatprep.subr.mxu0 0.0
      %1781 = vmatpush1.msra.mxu0 0.0
      %1782 = vmatprep.subr.mxu0 0.0
      %1783 = vmatpush1.msra.mxu0 0.0
      %1784 = vmatprep.subr.mxu0 0.0
      %1785 = vmatpush1.msra.mxu0 0.0
      %1786 = vmatprep.subr.mxu0 0.0
      %1787 = vmatpush1.msra.mxu0 0.0
      %1788 = vmatprep.subr.mxu0 0.0
      %1789 = vmatpush1.msra.mxu0 0.0
      %1790 = vmatprep.subr.mxu0 0.0
      %1791 = vmatpush1.msra.mxu0 0.0
      %1792 = vmatprep.subr.mxu0 0.0
      %1793 = vmatpush1.msra.mxu0 0.0
      %1794 = vmatprep.subr.mxu0 0.0
      %1795 = vmatpush1.msra.mxu0 0.0
      %1796 = vmatprep.subr.mxu0 0.0
      %1797 = vmatpush1.msra.mxu0 0.0
      %1798 = vmatprep.subr.mxu0 0.0
      %1799 = vmatpush1.msra.mxu0 0.0
      %1800 = vmatprep.subr.mxu0 0.0
      %1801 = vmatpush1.msra.mxu0 0.0
      %1802 = vmatprep.subr.mxu0 0.0
      %1803 = vmatpush1.msra.mxu0 0.0
      %1804 = vmatprep.subr.mxu0 0.0
      %1805 = vmatpush1.msra.mxu0 0.0
      %1806 = vmatprep.subr.mxu0 0.0
      %1807 = vmatpush1.msra.mxu0 0.0
      %1808 = vmatprep.subr.mxu0 0.0
      %1809 = vmatpush1.msra.mxu0 0.0
      %1810 = vmatprep.subr.mxu0 0.0
      %1811 = vmatpush1.msra.mxu0 0.0
      %1812 = vmatprep.subr.mxu0 0.0
      %1813 = vmatpush1.msra.mxu0 0.0
      %1814 = vmatprep.subr.mxu0 0.0
      %1815 = vmatpush1.msra.mxu0 0.0
      %1816 = vmatprep.subr.mxu0 0.0
      %1817 = vmatpush1.msra.mxu0 0.0
      %1818 = vmatprep.subr.mxu0 0.0
      %1819 = vmatpush1.msra.mxu0 0.0
      %1820 = vmatprep.subr.mxu0 0.0
      %1821 = vmatpush1.msra.mxu0 0.0
      %1822 = vmatprep.subr.mxu0 0.0
      %1823 = vmatpush1.msra.mxu0 0.0
      %1824 = vmatprep.subr.mxu0 0.0
      %1825 = vmatpush1.msra.mxu0 0.0
      %1826 = vmatprep.mubr.f32.mxu0 0.0
      %1827 = vmatmul.mubr.f32.gmra.mrb[0].mxu0 %v1760
      %v1828 = vpop.f32.mrb[0].mxu0
      %v1829 = vadd.f32 0.0, %v1828
      %v1830 = vpop.f32.mrb[0].mxu0
      %v1831 = vadd.f32 0.0, %v1830
      %1832 = vdwg.mxu0
      %v1833 = vadd.f32 %v1706, %v1829
      %v1834 = vadd.f32 %v1707, %v1831
      %s1835 = scalar_lea.vmem %s10, 48
      %v1836 = vld [vmem:[%s1835] sm:$0xff]
      %1837 = vrot.lane.b32.xlu0 %v1102, 113
      %v1838 = vpop.permute.xlu0 %1837
      %1839 = vrot.lane.b32.xlu0 %v1104, 113
      %v1840 = vpop.permute.xlu0 %1839
      %1841 = vrot.lane.b32.xlu0 %v1106, 113
      %v1842 = vpop.permute.xlu0 %1841
      %1843 = vrot.lane.b32.xlu0 %v1108, 113
      %v1844 = vpop.permute.xlu0 %1843
      %1845 = vrot.lane.b32.xlu0 %v1110, 113
      %v1846 = vpop.permute.xlu0 %1845
      %1847 = vrot.lane.b32.xlu0 %v1103, 113
      %v1848 = vpop.permute.xlu0 %1847
      %1849 = vrot.lane.b32.xlu0 %v1105, 113
      %v1850 = vpop.permute.xlu0 %1849
      %1851 = vrot.lane.b32.xlu0 %v1107, 113
      %v1852 = vpop.permute.xlu0 %1851
      %1853 = vrot.lane.b32.xlu0 %v1109, 113
      %v1854 = vpop.permute.xlu0 %1853
      %1855 = vrot.lane.b32.xlu0 %v1111, 113
      %v1856 = vpop.permute.xlu0 %1855
      %vm1857 = vcmp.lt.s32.totalorder %v444, 113
      %v1858 = vsel %vm1857, %v1838, %v1848
      %v1859 = vsel %vm1857, %v1840, %v1850
      %v1860 = vsel %vm1857, %v1842, %v1852
      %v1861 = vsel %vm1857, %v1844, %v1854
      %v1862 = vsel %vm1857, %v1846, %v1856
      %v1863 = vsel %vm1857, %v1848, %v1838
      %v1864 = vsel %vm1857, %v1850, %v1840
      %v1865 = vsel %vm1857, %v1852, %v1842
      %v1866 = vsel %vm1857, %v1854, %v1844
      %v1867 = vsel %vm1857, %v1856, %v1846
      %vm1868 = vcmp.ge.s32.totalorder %v446, 4294967295
      %vm1869 = vcmp.ge.s32.totalorder %v447, 4294967295
      %vm1870 = vcmp.lt.s32.totalorder %v446, 15
      %vm1871 = vcmp.lt.s32.totalorder %v447, 15
      %vm1872 = vmand %vm1868, %vm1870
      %vm1873 = vmand %vm1869, %vm1871
      %vm1874 = vmand %vm1872, %vm1150
      %vm1875 = vmand %vm1873, %vm1151
      %vm1876 = vmand %vm1874, %vm1154
      %vm1877 = vmand %vm1875, %vm1155
      %v1878 = vsel %vm1876, 1, 0
      %v1879 = vsel %vm1877, 1, 0
      %vm1880 = vcmp.eq.s32.totalorder %v1878, 1
      %vm1881 = vcmp.eq.s32.totalorder %v1879, 1
      %v1882 = vsel %vm1880, %v1858, 0.0
      %v1883 = vsel %vm1881, %v1863, 0.0
      %v1884 = vsel %vm1880, %v1859, 0.0
      %v1885 = vsel %vm1881, %v1864, 0.0
      %v1886 = vsel %vm1880, %v1860, 0.0
      %v1887 = vsel %vm1881, %v1865, 0.0
      %v1888 = vsel %vm1880, %v1861, 0.0
      %v1889 = vsel %vm1881, %v1866, 0.0
      %v1890 = vsel %vm1880, %v1862, 0.0
      %v1891 = vsel %vm1881, %v1867, 0.0
      %v1893 = vsel %vm1223, %v1836, 0
      %1895 = vmatprep.subr.mxu0 %v1883
      %1896 = vmatpush1.msra.mxu0 %v1882
      %1897 = vmatprep.subr.mxu0 %v1885
      %1898 = vmatpush1.msra.mxu0 %v1884
      %1899 = vmatprep.subr.mxu0 %v1887
      %1900 = vmatpush1.msra.mxu0 %v1886
      %1901 = vmatprep.subr.mxu0 %v1889
      %1902 = vmatpush1.msra.mxu0 %v1888
      %1903 = vmatprep.subr.mxu0 %v1891
      %1904 = vmatpush1.msra.mxu0 %v1890
      %1905 = vmatprep.subr.mxu0 0.0
      %1906 = vmatpush1.msra.mxu0 0.0
      %1907 = vmatprep.subr.mxu0 0.0
      %1908 = vmatpush1.msra.mxu0 0.0
      %1909 = vmatprep.subr.mxu0 0.0
      %1910 = vmatpush1.msra.mxu0 0.0
      %1911 = vmatprep.subr.mxu0 0.0
      %1912 = vmatpush1.msra.mxu0 0.0
      %1913 = vmatprep.subr.mxu0 0.0
      %1914 = vmatpush1.msra.mxu0 0.0
      %1915 = vmatprep.subr.mxu0 0.0
      %1916 = vmatpush1.msra.mxu0 0.0
      %1917 = vmatprep.subr.mxu0 0.0
      %1918 = vmatpush1.msra.mxu0 0.0
      %1919 = vmatprep.subr.mxu0 0.0
      %1920 = vmatpush1.msra.mxu0 0.0
      %1921 = vmatprep.subr.mxu0 0.0
      %1922 = vmatpush1.msra.mxu0 0.0
      %1923 = vmatprep.subr.mxu0 0.0
      %1924 = vmatpush1.msra.mxu0 0.0
      %1925 = vmatprep.subr.mxu0 0.0
      %1926 = vmatpush1.msra.mxu0 0.0
      %1927 = vmatprep.subr.mxu0 0.0
      %1928 = vmatpush1.msra.mxu0 0.0
      %1929 = vmatprep.subr.mxu0 0.0
      %1930 = vmatpush1.msra.mxu0 0.0
      %1931 = vmatprep.subr.mxu0 0.0
      %1932 = vmatpush1.msra.mxu0 0.0
      %1933 = vmatprep.subr.mxu0 0.0
      %1934 = vmatpush1.msra.mxu0 0.0
      %1935 = vmatprep.subr.mxu0 0.0
      %1936 = vmatpush1.msra.mxu0 0.0
      %1937 = vmatprep.subr.mxu0 0.0
      %1938 = vmatpush1.msra.mxu0 0.0
      %1939 = vmatprep.subr.mxu0 0.0
      %1940 = vmatpush1.msra.mxu0 0.0
      %1941 = vmatprep.subr.mxu0 0.0
      %1942 = vmatpush1.msra.mxu0 0.0
      %1943 = vmatprep.subr.mxu0 0.0
      %1944 = vmatpush1.msra.mxu0 0.0
      %1945 = vmatprep.subr.mxu0 0.0
      %1946 = vmatpush1.msra.mxu0 0.0
      %1947 = vmatprep.subr.mxu0 0.0
      %1948 = vmatpush1.msra.mxu0 0.0
      %1949 = vmatprep.subr.mxu0 0.0
      %1950 = vmatpush1.msra.mxu0 0.0
      %1951 = vmatprep.subr.mxu0 0.0
      %1952 = vmatpush1.msra.mxu0 0.0
      %1953 = vmatprep.subr.mxu0 0.0
      %1954 = vmatpush1.msra.mxu0 0.0
      %1955 = vmatprep.subr.mxu0 0.0
      %1956 = vmatpush1.msra.mxu0 0.0
      %1957 = vmatprep.subr.mxu0 0.0
      %1958 = vmatpush1.msra.mxu0 0.0
      %1959 = vmatprep.mubr.f32.mxu0 0.0
      %1960 = vmatmul.mubr.f32.gmra.mrb[0].mxu0 %v1893
      %v1961 = vpop.f32.mrb[0].mxu0
      %v1962 = vadd.f32 0.0, %v1961
      %v1963 = vpop.f32.mrb[0].mxu0
      %v1964 = vadd.f32 0.0, %v1963
      %1965 = vdwg.mxu0
      %v1966 = vadd.f32 %v1833, %v1962
      %v1967 = vadd.f32 %v1834, %v1964
      %s1968 = scalar_lea.vmem %s10, 56
      %v1969 = vld [vmem:[%s1968] sm:$0xff]
      %1970 = vrot.lane.b32.xlu0 %v1102, 112
      %v1971 = vpop.permute.xlu0 %1970
      %1972 = vrot.lane.b32.xlu0 %v1104, 112
      %v1973 = vpop.permute.xlu0 %1972
      %1974 = vrot.lane.b32.xlu0 %v1106, 112
      %v1975 = vpop.permute.xlu0 %1974
      %1976 = vrot.lane.b32.xlu0 %v1108, 112
      %v1977 = vpop.permute.xlu0 %1976
      %1978 = vrot.lane.b32.xlu0 %v1110, 112
      %v1979 = vpop.permute.xlu0 %1978
      %1980 = vrot.lane.b32.xlu0 %v1103, 112
      %v1981 = vpop.permute.xlu0 %1980
      %1982 = vrot.lane.b32.xlu0 %v1105, 112
      %v1983 = vpop.permute.xlu0 %1982
      %1984 = vrot.lane.b32.xlu0 %v1107, 112
      %v1985 = vpop.permute.xlu0 %1984
      %1986 = vrot.lane.b32.xlu0 %v1109, 112
      %v1987 = vpop.permute.xlu0 %1986
      %1988 = vrot.lane.b32.xlu0 %v1111, 112
      %v1989 = vpop.permute.xlu0 %1988
      %vm1990 = vcmp.lt.s32.totalorder %v444, 112
      %v1991 = vsel %vm1990, %v1971, %v1981
      %v1992 = vsel %vm1990, %v1973, %v1983
      %v1993 = vsel %vm1990, %v1975, %v1985
      %v1994 = vsel %vm1990, %v1977, %v1987
      %v1995 = vsel %vm1990, %v1979, %v1989
      %v1996 = vsel %vm1990, %v1981, %v1971
      %v1997 = vsel %vm1990, %v1983, %v1973
      %v1998 = vsel %vm1990, %v1985, %v1975
      %v1999 = vsel %vm1990, %v1987, %v1977
      %v2000 = vsel %vm1990, %v1989, %v1979
      %vm2001 = vmand %vm1872, %vm644
      %vm2002 = vmand %vm1873, %vm645
      %vm2003 = vmand %vm2001, %vm648
      %vm2004 = vmand %vm2002, %vm649
      %v2005 = vsel %vm2003, 1, 0
      %v2006 = vsel %vm2004, 1, 0
      %vm2007 = vcmp.eq.s32.totalorder %v2005, 1
      %vm2008 = vcmp.eq.s32.totalorder %v2006, 1
      %v2009 = vsel %vm2007, %v1991, 0.0
      %v2010 = vsel %vm2008, %v1996, 0.0
      %v2011 = vsel %vm2007, %v1992, 0.0
      %v2012 = vsel %vm2008, %v1997, 0.0
      %v2013 = vsel %vm2007, %v1993, 0.0
      %v2014 = vsel %vm2008, %v1998, 0.0
      %v2015 = vsel %vm2007, %v1994, 0.0
      %v2016 = vsel %vm2008, %v1999, 0.0
      %v2017 = vsel %vm2007, %v1995, 0.0
      %v2018 = vsel %vm2008, %v2000, 0.0
      %v2020 = vsel %vm1223, %v1969, 0
      %2022 = vmatprep.subr.mxu0 %v2010
      %2023 = vmatpush1.msra.mxu0 %v2009
      %2024 = vmatprep.subr.mxu0 %v2012
      %2025 = vmatpush1.msra.mxu0 %v2011
      %2026 = vmatprep.subr.mxu0 %v2014
      %2027 = vmatpush1.msra.mxu0 %v2013
      %2028 = vmatprep.subr.mxu0 %v2016
      %2029 = vmatpush1.msra.mxu0 %v2015
      %2030 = vmatprep.subr.mxu0 %v2018
      %2031 = vmatpush1.msra.mxu0 %v2017
      %2032 = vmatprep.subr.mxu0 0.0
      %2033 = vmatpush1.msra.mxu0 0.0
      %2034 = vmatprep.subr.mxu0 0.0
      %2035 = vmatpush1.msra.mxu0 0.0
      %2036 = vmatprep.subr.mxu0 0.0
      %2037 = vmatpush1.msra.mxu0 0.0
      %2038 = vmatprep.subr.mxu0 0.0
      %2039 = vmatpush1.msra.mxu0 0.0
      %2040 = vmatprep.subr.mxu0 0.0
      %2041 = vmatpush1.msra.mxu0 0.0
      %2042 = vmatprep.subr.mxu0 0.0
      %2043 = vmatpush1.msra.mxu0 0.0
      %2044 = vmatprep.subr.mxu0 0.0
      %2045 = vmatpush1.msra.mxu0 0.0
      %2046 = vmatprep.subr.mxu0 0.0
      %2047 = vmatpush1.msra.mxu0 0.0
      %2048 = vmatprep.subr.mxu0 0.0
      %2049 = vmatpush1.msra.mxu0 0.0
      %2050 = vmatprep.subr.mxu0 0.0
      %2051 = vmatpush1.msra.mxu0 0.0
      %2052 = vmatprep.subr.mxu0 0.0
      %2053 = vmatpush1.msra.mxu0 0.0
      %2054 = vmatprep.subr.mxu0 0.0
      %2055 = vmatpush1.msra.mxu0 0.0
      %2056 = vmatprep.subr.mxu0 0.0
      %2057 = vmatpush1.msra.mxu0 0.0
      %2058 = vmatprep.subr.mxu0 0.0
      %2059 = vmatpush1.msra.mxu0 0.0
      %2060 = vmatprep.subr.mxu0 0.0
      %2061 = vmatpush1.msra.mxu0 0.0
      %2062 = vmatprep.subr.mxu0 0.0
      %2063 = vmatpush1.msra.mxu0 0.0
      %2064 = vmatprep.subr.mxu0 0.0
      %2065 = vmatpush1.msra.mxu0 0.0
      %2066 = vmatprep.subr.mxu0 0.0
      %2067 = vmatpush1.msra.mxu0 0.0
      %2068 = vmatprep.subr.mxu0 0.0
      %2069 = vmatpush1.msra.mxu0 0.0
      %2070 = vmatprep.subr.mxu0 0.0
      %2071 = vmatpush1.msra.mxu0 0.0
      %2072 = vmatprep.subr.mxu0 0.0
      %2073 = vmatpush1.msra.mxu0 0.0
      %2074 = vmatprep.subr.mxu0 0.0
      %2075 = vmatpush1.msra.mxu0 0.0
      %2076 = vmatprep.subr.mxu0 0.0
      %2077 = vmatpush1.msra.mxu0 0.0
      %2078 = vmatprep.subr.mxu0 0.0
      %2079 = vmatpush1.msra.mxu0 0.0
      %2080 = vmatprep.subr.mxu0 0.0
      %2081 = vmatpush1.msra.mxu0 0.0
      %2082 = vmatprep.subr.mxu0 0.0
      %2083 = vmatpush1.msra.mxu0 0.0
      %2084 = vmatprep.subr.mxu0 0.0
      %2085 = vmatpush1.msra.mxu0 0.0
      %2086 = vmatprep.mubr.f32.mxu0 0.0
      %2087 = vmatmul.mubr.f32.gmra.mrb[0].mxu0 %v2020
      %v2088 = vpop.f32.mrb[0].mxu0
      %v2089 = vadd.f32 0.0, %v2088
      %v2090 = vpop.f32.mrb[0].mxu0
      %v2091 = vadd.f32 0.0, %v2090
      %2092 = vdwg.mxu0
      %v2093 = vadd.f32 %v1966, %v2089
      %v2094 = vadd.f32 %v1967, %v2091
      %s2095 = scalar_lea.vmem %s10, 64
      %v2096 = vld [vmem:[%s2095] sm:$0xff]
      %2097 = vrot.lane.b32.xlu0 %v1102, 111
      %v2098 = vpop.permute.xlu0 %2097
      %2099 = vrot.lane.b32.xlu0 %v1104, 111
      %v2100 = vpop.permute.xlu0 %2099
      %2101 = vrot.lane.b32.xlu0 %v1106, 111
      %v2102 = vpop.permute.xlu0 %2101
      %2103 = vrot.lane.b32.xlu0 %v1108, 111
      %v2104 = vpop.permute.xlu0 %2103
      %2105 = vrot.lane.b32.xlu0 %v1110, 111
      %v2106 = vpop.permute.xlu0 %2105
      %2107 = vrot.lane.b32.xlu0 %v1103, 111
      %v2108 = vpop.permute.xlu0 %2107
      %2109 = vrot.lane.b32.xlu0 %v1105, 111
      %v2110 = vpop.permute.xlu0 %2109
      %2111 = vrot.lane.b32.xlu0 %v1107, 111
      %v2112 = vpop.permute.xlu0 %2111
      %2113 = vrot.lane.b32.xlu0 %v1109, 111
      %v2114 = vpop.permute.xlu0 %2113
      %2115 = vrot.lane.b32.xlu0 %v1111, 111
      %v2116 = vpop.permute.xlu0 %2115
      %vm2117 = vcmp.lt.s32.totalorder %v444, 111
      %v2118 = vsel %vm2117, %v2098, %v2108
      %v2119 = vsel %vm2117, %v2100, %v2110
      %v2120 = vsel %vm2117, %v2102, %v2112
      %v2121 = vsel %vm2117, %v2104, %v2114
      %v2122 = vsel %vm2117, %v2106, %v2116
      %v2123 = vsel %vm2117, %v2108, %v2098
      %v2124 = vsel %vm2117, %v2110, %v2100
      %v2125 = vsel %vm2117, %v2112, %v2102
      %v2126 = vsel %vm2117, %v2114, %v2104
      %v2127 = vsel %vm2117, %v2116, %v2106
      %vm2128 = vmand %vm1872, %vm1405
      %vm2129 = vmand %vm1873, %vm1406
      %vm2130 = vmand %vm2128, %vm1409
      %vm2131 = vmand %vm2129, %vm1410
      %v2132 = vsel %vm2130, 1, 0
      %v2133 = vsel %vm2131, 1, 0
      %vm2134 = vcmp.eq.s32.totalorder %v2132, 1
      %vm2135 = vcmp.eq.s32.totalorder %v2133, 1
      %v2136 = vsel %vm2134, %v2118, 0.0
      %v2137 = vsel %vm2135, %v2123, 0.0
      %v2138 = vsel %vm2134, %v2119, 0.0
      %v2139 = vsel %vm2135, %v2124, 0.0
      %v2140 = vsel %vm2134, %v2120, 0.0
      %v2141 = vsel %vm2135, %v2125, 0.0
      %v2142 = vsel %vm2134, %v2121, 0.0
      %v2143 = vsel %vm2135, %v2126, 0.0
      %v2144 = vsel %vm2134, %v2122, 0.0
      %v2145 = vsel %vm2135, %v2127, 0.0
      %v2147 = vsel %vm1223, %v2096, 0
      %2149 = vmatprep.subr.mxu0 %v2137
      %2150 = vmatpush1.msra.mxu0 %v2136
      %2151 = vmatprep.subr.mxu0 %v2139
      %2152 = vmatpush1.msra.mxu0 %v2138
      %2153 = vmatprep.subr.mxu0 %v2141
      %2154 = vmatpush1.msra.mxu0 %v2140
      %2155 = vmatprep.subr.mxu0 %v2143
      %2156 = vmatpush1.msra.mxu0 %v2142
      %2157 = vmatprep.subr.mxu0 %v2145
      %2158 = vmatpush1.msra.mxu0 %v2144
      %2159 = vmatprep.subr.mxu0 0.0
      %2160 = vmatpush1.msra.mxu0 0.0
      %2161 = vmatprep.subr.mxu0 0.0
      %2162 = vmatpush1.msra.mxu0 0.0
      %2163 = vmatprep.subr.mxu0 0.0
      %2164 = vmatpush1.msra.mxu0 0.0
      %2165 = vmatprep.subr.mxu0 0.0
      %2166 = vmatpush1.msra.mxu0 0.0
      %2167 = vmatprep.subr.mxu0 0.0
      %2168 = vmatpush1.msra.mxu0 0.0
      %2169 = vmatprep.subr.mxu0 0.0
      %2170 = vmatpush1.msra.mxu0 0.0
      %2171 = vmatprep.subr.mxu0 0.0
      %2172 = vmatpush1.msra.mxu0 0.0
      %2173 = vmatprep.subr.mxu0 0.0
      %2174 = vmatpush1.msra.mxu0 0.0
      %2175 = vmatprep.subr.mxu0 0.0
      %2176 = vmatpush1.msra.mxu0 0.0
      %2177 = vmatprep.subr.mxu0 0.0
      %2178 = vmatpush1.msra.mxu0 0.0
      %2179 = vmatprep.subr.mxu0 0.0
      %2180 = vmatpush1.msra.mxu0 0.0
      %2181 = vmatprep.subr.mxu0 0.0
      %2182 = vmatpush1.msra.mxu0 0.0
      %2183 = vmatprep.subr.mxu0 0.0
      %2184 = vmatpush1.msra.mxu0 0.0
      %2185 = vmatprep.subr.mxu0 0.0
      %2186 = vmatpush1.msra.mxu0 0.0
      %2187 = vmatprep.subr.mxu0 0.0
      %2188 = vmatpush1.msra.mxu0 0.0
      %2189 = vmatprep.subr.mxu0 0.0
      %2190 = vmatpush1.msra.mxu0 0.0
      %2191 = vmatprep.subr.mxu0 0.0
      %2192 = vmatpush1.msra.mxu0 0.0
      %2193 = vmatprep.subr.mxu0 0.0
      %2194 = vmatpush1.msra.mxu0 0.0
      %2195 = vmatprep.subr.mxu0 0.0
      %2196 = vmatpush1.msra.mxu0 0.0
      %2197 = vmatprep.subr.mxu0 0.0
      %2198 = vmatpush1.msra.mxu0 0.0
      %2199 = vmatprep.subr.mxu0 0.0
      %2200 = vmatpush1.msra.mxu0 0.0
      %2201 = vmatprep.subr.mxu0 0.0
      %2202 = vmatpush1.msra.mxu0 0.0
      %2203 = vmatprep.subr.mxu0 0.0
      %2204 = vmatpush1.msra.mxu0 0.0
      %2205 = vmatprep.subr.mxu0 0.0
      %2206 = vmatpush1.msra.mxu0 0.0
      %2207 = vmatprep.subr.mxu0 0.0
      %2208 = vmatpush1.msra.mxu0 0.0
      %2209 = vmatprep.subr.mxu0 0.0
      %2210 = vmatpush1.msra.mxu0 0.0
      %2211 = vmatprep.subr.mxu0 0.0
      %2212 = vmatpush1.msra.mxu0 0.0
      %2213 = vmatprep.mubr.f32.mxu0 0.0
      %2214 = vmatmul.mubr.f32.gmra.mrb[0].mxu0 %v2147
      %v2215 = vpop.f32.mrb[0].mxu0
      %v2216 = vadd.f32 0.0, %v2215
      %v2217 = vpop.f32.mrb[0].mxu0
      %v2218 = vadd.f32 0.0, %v2217
      %2219 = vdwg.mxu0
      %v2220 = vadd.f32 %v2093, %v2216
      %v2221 = vadd.f32 %v2094, %v2218
      %v2222 = vld [vmem:[%s11] sm:$0xff]
      %2224 = vset.pattern.permute.xlu0 0
      %2225 = vperm.xlu0 %2224, %v2222
      %v2226 = vpop.permute.xlu0 %2225
      %v2228 = vmul.f32 %v2220, %v2226
      %v2229 = vmul.f32 %v2221, %v2226
      %v2230 = vld [vmem:[%s12] sm:$0xff]
      %2232 = vset.pattern.permute.xlu0 0
      %2233 = vperm.xlu0 %2232, %v2230
      %v2234 = vpop.permute.xlu0 %2233
      %v2236 = vadd.f32 %v2228, %v2234
      %v2237 = vadd.f32 %v2229, %v2234
      %v2238 = vmax.f32 %v2236, 0.0
      %v2239 = vmax.f32 %v2237, 0.0
      %2240 = vst [vmem:[%s440] sm:$0xff] %v2238
      %2241 = vst [vmem:[%s440 + $0x8] sm:$0xff] %v2239
      %p2242 = scmp.lt.s32.totalorder %s24, 1
      %s2243 = scalar_select %p2242, %s24, 1
      %s2244 = smul.addr %s2243, 2
      %s2245 = smul.addr %s2244, 8
      %s2246 = scalar_lea.vmem %s13, %s2245
      // Predicated region
      $region73: #{aspp_wrapper_forward.1} parent=71 // pred_check
        %p2247 = pneg %p320
      $region74: #{aspp_wrapper_forward.1} parent=71 // pred_check_branch
        %2249 = sbr.rel (%p2247) target = $region76
      $region75: #{aspp_wrapper_forward.1} parent=71 // pred_region
        _
      $region76: #{aspp_wrapper_forward.1} parent=71 // pred_fallthru
        _
    $region72: #{aspp_wrapper_forward.1} parent=5 // pred_fallthru
      _
    %p2250 = scmp.le.s32.totalorder 2, %s19
    // Predicated region
    $region77: #{aspp_wrapper_forward.1} parent=5 // pred_check
      %p2251 = pneg %p2250
    $region78: #{aspp_wrapper_forward.1} parent=5 // pred_check_branch
      %2253 = sbr.rel (%p2251) target = $region80
    $region79: #{aspp_wrapper_forward.1} parent=5 // pred_region
      %s2254 = ssub.s32 %s19, 2
      // Predicated region
      $region81: #{aspp_wrapper_forward.1} parent=79 // pred_check
        %p2255 = pneg %p326
      $region82: #{aspp_wrapper_forward.1} parent=79 // pred_check_branch
        %2257 = sbr.rel (%p2255) target = $region84
      $region83: #{aspp_wrapper_forward.1} parent=79 // pred_region
        %p2258 = scmp.lt.s32.totalorder %s25, 1
        %s2259 = scalar_select %p2258, %s25, 1
        %s2260 = smul.addr %s2259, 2
        %s2261 = smul.addr %s2260, 8
        %s2262 = scalar_lea.vmem %s13, %s2261
      $region84: #{aspp_wrapper_forward.1} parent=79 // pred_fallthru
        _
    $region80: #{aspp_wrapper_forward.1} parent=5 // pred_fallthru
      _
  $region6: #{aspp_wrapper_forward.1} parent=0 // loop_footer
    %s23 = sadd.s32 1, %s19
  $region7: #{aspp_wrapper_forward.1} parent=0 // loop_footer_branch
    %18 = sbr.rel target = $region3
  $region8: #{aspp_wrapper_forward.1} parent=0 // loop_exit
    _

</llo_original>
